<compile_context>
chip_gen: v6e
topology: v6e:2x2x1
jax: 0.10.0
libtpu: 0.0.40
codegen_flags: <defaults>
</compile_context>

<pallas_src>
import math
from functools import partial

import jax
import jax.numpy as jnp
import numpy as np
from jax.experimental import pallas as pl
from jax.experimental.pallas import tpu as pltpu


# ----------------------------------------------------------------------------- kernel
def _attn_kernel(q_ref, k_ref, v_ref, kmask_ref, wo3_ref, bo_ref,
                 out_ref, attn_ref, *, padded):
    """One grid step = (one batch element, one query tile).

    q_ref:    (H, TQ, Dh) bf16  query tile, head-major, pre-scaled by 1/sqrt(Dh)
    k_ref:    (H, Sp, Dh) bf16  full (padded) key sequence, head-major
    v_ref:    (H, Sp, Dh) bf16  full (padded) value sequence, head-major
    kmask_ref:(1, 1, Sp)  f32   0 for valid keys, -1e30 for padding
    wo3_ref:  (H, Dh, E)  bf16  output projection split per head
    bo_ref:   (1, E)      f32   output projection bias
    out_ref:  (TQ, E)     f32   attention output tile
    attn_ref: (TQ, Sp)    f32   head-averaged attention weights tile
    """
    H = q_ref.shape[0]

    # Scores: one batched matmul over heads (bf16 operands, f32 MXU accumulation).
    s = jnp.einsum('hqd,hkd->hqk', q_ref[...], k_ref[...],
                   preferred_element_type=jnp.float32)            # (H, TQ, Sp)
    if padded:
        s = s + kmask_ref[...]                                    # mask padded keys

    # Numerically stable softmax over keys.  Exact reciprocal on the tiny
    # (H, TQ, 1) denominator so exported attention rows sum to 1 (PyTorch parity).
    s = s - jnp.max(s, axis=-1, keepdims=True)
    p = jnp.exp(s)
    p = p * pl.reciprocal(jnp.sum(p, axis=-1, keepdims=True))

    # Head-averaged attention weights (PyTorch average_attn_weights=True).
    attn_ref[...] = (jnp.sum(p, axis=0) * (1.0 / H)).astype(attn_ref.dtype)

    # Weighted values: second batched matmul over heads.
    o3 = jnp.einsum('hqk,hkd->hqd', p.astype(jnp.bfloat16), v_ref[...],
                    preferred_element_type=jnp.float32)           # (H, TQ, Dh)

    # Fused output projection: per-head batched matmul + head sum.  Avoids any
    # in-kernel XLU transpose / lane-crossing reshape of o3.
    o_he = jnp.einsum('hqd,hde->hqe', o3.astype(jnp.bfloat16), wo3_ref[...],
                      preferred_element_type=jnp.float32)         # (H, TQ, E)
    out = jnp.sum(o_he, axis=0) + bo_ref[...]                     # (TQ, E)
    out_ref[...] = out.astype(out_ref.dtype)


# --------------------------------------------------------------------- tiling helpers
def _vmem_capacity_bytes():
    try:
        return int(pltpu.get_tpu_info().vmem_capacity_bytes)
    except Exception:
        return 64 * 1024 * 1024   # v7x per-TensorCore VMEM: the conservative default


def _estimate_step_vmem(tq, sp, H, Dh, E):
    """Rough per-grid-step VMEM bytes (pipelined blocks + in-kernel intermediates)."""
    bf16, f32 = 2, 4
    b = 0
    b += 2 * H * tq * Dh * bf16                       # q tile (double buffered)
    b += 2 * 2 * H * sp * Dh * bf16                   # k and v (double buffered)
    b += 2 * (H * Dh * E * bf16 + E * f32 + sp * f32)  # wo3 / bo / mask
    b += 2 * tq * E * f32                             # out tile (double buffered)
    b += 2 * tq * sp * f32                            # attn tile (double buffered)
    b += H * tq * sp * (2 * f32 + bf16)               # scores + p (f32) + p (bf16)
    b += H * tq * Dh * f32                            # o3
    b += H * tq * E * f32 + tq * E * f32              # per-head out-proj + head sum
    return b


def _choose_q_tile(batch, seq, sp, H, Dh, E, budget):
    """Largest query tile that divides S and keeps the working set under budget."""
    cands = [t for t in (512, 256, 128, 64, 32, 16, 8) if seq % t == 0]
    if not cands:
        cands = [seq]                                 # odd sequence lengths: one tile
    fitting = [t for t in cands if _estimate_step_vmem(t, sp, H, Dh, E) <= budget]
    if not fitting:
        # TODO(synk): add a KV-tile grid axis with online softmax (two passes for
        # the attn-weights output) so very long sequences fit v7x's 64 MiB VMEM.
        return min(cands)
    tq = max(fitting)
    # Keep >= 2 grid points so one v7x TensorCore isn't idle when batch == 1.
    if batch == 1 and seq // tq < 2:
        smaller = [t for t in fitting if seq // t >= 2]
        if smaller:
            tq = max(smaller)
    return tq


# -------------------------------------------------------------------------- pallas call
def _build_attention_call(B, S, Sp, E, H, Dh, TQ, padded, vmem_limit,
                          single_buffer_consts):
    n_q = S // TQ
    # Constant-index operands gain nothing from double buffering; single-buffer
    # them to free VMEM (perf feedback).  Guarded: older JAX may not support it.
    const_kw = dict(pipeline_mode=pl.Buffered(1)) if single_buffer_consts else {}

    grid_spec = pl.GridSpec(
        grid=(B, n_q),
        in_specs=[
            pl.BlockSpec((pl.Squeezed(), H, TQ, Dh), lambda bi, qi: (bi, 0, qi, 0)),  # q tile
            pl.BlockSpec((pl.Squeezed(), H, Sp, Dh), lambda bi, qi: (bi, 0, 0, 0)),   # k
            pl.BlockSpec((pl.Squeezed(), H, Sp, Dh), lambda bi, qi: (bi, 0, 0, 0)),   # v
            pl.BlockSpec((1, 1, Sp), lambda bi, qi: (0, 0, 0), **const_kw),           # key mask
            pl.BlockSpec((H, Dh, E), lambda bi, qi: (0, 0, 0), **const_kw),           # Wo (per head)
            pl.BlockSpec((1, E), lambda bi, qi: (0, 0), **const_kw),                  # bo
        ],
        out_specs=(
            pl.BlockSpec((pl.Squeezed(), TQ, E), lambda bi, qi: (bi, qi, 0)),
            pl.BlockSpec((pl.Squeezed(), TQ, Sp), lambda bi, qi: (bi, qi, 0)),
        ),
    )
    return pl.pallas_call(
        partial(_attn_kernel, padded=padded),
        out_shape=(
            jax.ShapeDtypeStruct((B, S, E), jnp.float32),
            # attn kept f32 to match PyTorch's returned weights.
            # TODO(synk): emit bf16 here if the hook consumer allows (halves the
            # B*S^2 HBM writeback which dominates at large S on v5e/v6e).
            jax.ShapeDtypeStruct((B, S, Sp), jnp.float32),
        ),
        grid_spec=grid_spec,
        compiler_params=pltpu.CompilerParams(
            dimension_semantics=("parallel", "parallel"),
            vmem_limit_bytes=vmem_limit,
        ),
    )


def self_attention_with_hook(x, in_proj_weight, in_proj_bias,
                             out_proj_weight, out_proj_bias, num_heads):
    """Pallas implementation of SelfAttentionWithHook.forward.

    Returns (out, attn_weights); attn_weights is the head-averaged tensor the
    PyTorch module stashes in self.attn_weights.
    """
    B, S, E = x.shape
    H = num_heads
    assert E % H == 0
    Dh = E // H
    scale = 1.0 / math.sqrt(Dh)

    w = jnp.asarray(in_proj_weight, jnp.float32)      # (3E, E)
    b = jnp.asarray(in_proj_bias, jnp.float32)        # (3E,)

    # --- Hoisted Q/K/V projections (computed ONCE, not per query tile).  The
    # softmax scale is folded into the Q rows of the projection.
    scale_vec = jnp.concatenate(
        [jnp.full((E,), scale, jnp.float32), jnp.ones((2 * E,), jnp.float32)])
    w_t = (w * scale_vec[:, None]).T.astype(jnp.bfloat16)         # (E, 3E)
    b_s = b * scale_vec                                           # (3E,)
    qkv = jnp.einsum('bse,ef->bsf', x.astype(jnp.bfloat16), w_t,
                     preferred_element_type=jnp.float32) + b_s    # (B, S, 3E) f32
    q, k, v = jnp.split(qkv, 3, axis=-1)

    def heads(t):   # (B, S, E) -> (B, H, S, Dh) bf16, head-major
        return t.reshape(B, S, H, Dh).transpose(0, 2, 1, 3).astype(jnp.bfloat16)

    q3, k3, v3 = heads(q), heads(k), heads(v)

    # --- Lane-dense attn stores: pad keys to a multiple of 128, mask them out of
    # the softmax with a large negative bias, slice off the padded columns after.
    Sp = S if S % 128 == 0 else ((S + 127) // 128) * 128
    padded = Sp != S
    if padded:
        pad = Sp - S
        k3 = jnp.pad(k3, ((0, 0), (0, 0), (0, pad), (0, 0)))
        v3 = jnp.pad(v3, ((0, 0), (0, 0), (0, pad), (0, 0)))
    kmask = jnp.where(jnp.arange(Sp) < S, 0.0, -1e30)
    kmask = kmask.astype(jnp.float32).reshape(1, 1, Sp)

    # Output projection split per head: out[q,e] = sum_h o3[h,q,:] @ wo3[h,:,e].
    wo3 = jnp.asarray(out_proj_weight, jnp.float32).T.reshape(H, Dh, E)
    wo3 = wo3.astype(jnp.bfloat16)
    bo = jnp.asarray(out_proj_bias, jnp.float32).reshape(1, E)

    # --- VMEM-aware query tiling + vmem limit (v5e/v6e: 128 MiB, v7x: 64 MiB).
    cap = _vmem_capacity_bytes()
    TQ = _choose_q_tile(B, S, Sp, H, Dh, E, budget=int(cap * 0.6))
    est = _estimate_step_vmem(TQ, Sp, H, Dh, E)
    vmem_limit = max(32 * 1024 * 1024, min(int(cap * 0.9), int(est * 1.4)))

    args = (q3, k3, v3, kmask, wo3, bo)
    try:
        out, attn = _build_attention_call(B, S, Sp, E, H, Dh, TQ, padded,
                                          vmem_limit, True)(*args)
    except Exception:
        # BlockSpec.pipeline_mode unsupported on this JAX version: retry with
        # default (double-buffered) constant operands.
        out, attn = _build_attention_call(B, S, Sp, E, H, Dh, TQ, padded,
                                          vmem_limit, False)(*args)

    if padded:
        attn = attn[:, :, :S]
    return out, attn


# ------------------------------------------------------------------------------ reference
def _reference(x, in_proj_weight, in_proj_bias, out_proj_weight, out_proj_bias,
               num_heads):
    """Pure-JAX f32 reference mirroring torch.nn.MultiheadAttention forward."""
    B, S, E = x.shape
    Dh = E // num_heads
    qkv = jnp.einsum('bse,fe->bsf', x, in_proj_weight) + in_proj_bias
    q, k, v = jnp.split(qkv, 3, axis=-1)

    def split_heads(t):  # (B, S, E) -> (B, H, S, Dh)
        return t.reshape(B, S, num_heads, Dh).transpose(0, 2, 1, 3)

    q, k, v = map(split_heads, (q, k, v))
    scores = jnp.einsum('bhqd,bhkd->bhqk', q, k) / math.sqrt(Dh)
    p = jax.nn.softmax(scores, axis=-1)
    o = jnp.einsum('bhqk,bhkd->bhqd', p, v)
    o = o.transpose(0, 2, 1, 3).reshape(B, S, E)
    out = jnp.einsum('bse,fe->bsf', o, out_proj_weight) + out_proj_bias
    return out, p.mean(axis=1)


if __name__ == "__main__":
    B, S, E, H = 2, 8, 32, 4

    key = jax.random.PRNGKey(0)
    kx, kw1, kw2 = jax.random.split(key, 3)

    x = jax.random.normal(kx, (B, S, E), jnp.float32)

    # Deterministic synthetic parameters (shapes match nn.MultiheadAttention):
    #   in_proj_weight (3E, E), in_proj_bias (3E,), out_proj.{weight (E,E), bias (E,)}
    bound = 1.0 / math.sqrt(E)
    in_proj_weight = jax.random.uniform(kw1, (3 * E, E), jnp.float32, -bound, bound)
    in_proj_bias = jnp.zeros((3 * E,), jnp.float32)
    out_proj_weight = jax.random.uniform(kw2, (E, E), jnp.float32, -bound, bound)
    out_proj_bias = jnp.zeros((E,), jnp.float32)

    out, attn_weights = self_attention_with_hook(
        x, in_proj_weight, in_proj_bias, out_proj_weight, out_proj_bias, H)
    out = jax.block_until_ready(out)
    attn_weights = jax.block_until_ready(attn_weights)

    ref_out, ref_attn = _reference(
        x, in_proj_weight, in_proj_bias, out_proj_weight, out_proj_bias, H)

    # bf16 matmul operands -> slightly looser than pure-f32 tolerance.
    assert np.allclose(np.asarray(out), np.asarray(ref_out), atol=2e-2, rtol=2e-2)
    assert np.allclose(np.asarray(attn_weights), np.asarray(ref_attn),
                       atol=2e-2, rtol=2e-2)
    assert attn_weights.shape == (B, S, S)   # averaged over heads, like PyTorch

    print("KERNEL_OK")
</pallas_src>

<mosaic_0001>
module attributes {stable_mosaic.version = 11 : i64} {
  func.func @_attn_kernel(%arg0: i32, %arg1: i32, %arg2: memref<1x4x8x8xbf16, #tpu.memory_space<vmem>>, %arg3: memref<1x4x128x8xbf16, #tpu.memory_space<vmem>>, %arg4: memref<1x4x128x8xbf16, #tpu.memory_space<vmem>>, %arg5: memref<1x1x128xf32, #tpu.memory_space<vmem>>, %arg6: memref<4x8x32xbf16, #tpu.memory_space<vmem>>, %arg7: memref<1x32xf32, #tpu.memory_space<vmem>>, %arg8: memref<1x8x32xf32, #tpu.memory_space<vmem>>, %arg9: memref<1x8x128xf32, #tpu.memory_space<vmem>>) attributes {dimension_semantics = [#tpu.dimension_semantics<parallel>, #tpu.dimension_semantics<parallel>], iteration_bounds = array<i64: 2, 1>, scalar_prefetch = 0 : i64, scratch_operands = 0 : i64, tpu.core_type = #tpu.core_type<tc>, window_params = [{transform_indices = @transform_0, window_bounds = array<i64: 1, 4, 8, 8>}, {transform_indices = @transform_1, window_bounds = array<i64: 1, 4, 128, 8>}, {transform_indices = @transform_2, window_bounds = array<i64: 1, 4, 128, 8>}, {pipeline_mode = #tpu.pipeline_mode<synchronous>, transform_indices = @transform_3, window_bounds = array<i64: 1, 1, 128>}, {pipeline_mode = #tpu.pipeline_mode<synchronous>, transform_indices = @transform_4, window_bounds = array<i64: 4, 8, 32>}, {pipeline_mode = #tpu.pipeline_mode<synchronous>, transform_indices = @transform_5, window_bounds = array<i64: 1, 32>}, {transform_indices = @transform_6, window_bounds = array<i64: 1, 8, 32>}, {transform_indices = @transform_7, window_bounds = array<i64: 1, 8, 128>}]} {
    %c0 = arith.constant 0 : index
    %c0_0 = arith.constant 0 : index
    %c0_1 = arith.constant 0 : index
    %c0_2 = arith.constant 0 : index
    %0 = vector.load %arg2[%c0, %c0_0, %c0_1, %c0_2] : memref<1x4x8x8xbf16, #tpu.memory_space<vmem>>, vector<1x4x8x8xbf16>
    %1 = vector.shape_cast %0 : vector<1x4x8x8xbf16> to vector<4x8x8xbf16>
    %c0_3 = arith.constant 0 : index
    %c0_4 = arith.constant 0 : index
    %c0_5 = arith.constant 0 : index
    %c0_6 = arith.constant 0 : index
    %2 = vector.load %arg3[%c0_3, %c0_4, %c0_5, %c0_6] : memref<1x4x128x8xbf16, #tpu.memory_space<vmem>>, vector<1x4x128x8xbf16>
    %3 = vector.shape_cast %2 : vector<1x4x128x8xbf16> to vector<4x128x8xbf16>
    "tpu.trace_start"() <{level = 10 : i32, message = "hqd,hkd->hqk"}> : () -> ()
    %cst = arith.constant dense<0.000000e+00> : vector<4x8x128xf32>
    %4 = tpu.matmul %1, %3, %cst {dimension_numbers = #tpu.dot_dimension_numbers<[2], [2], [1], [1], [0, 0, 0, 1, 1, 1], [0], [0]>} : vector<4x8x8xbf16>, vector<4x128x8xbf16>, vector<4x8x128xf32> -> vector<4x8x128xf32>
    "tpu.trace_stop"() : () -> ()
    %c0_7 = arith.constant 0 : index
    %c0_8 = arith.constant 0 : index
    %c0_9 = arith.constant 0 : index
    %5 = vector.load %arg5[%c0_7, %c0_8, %c0_9] : memref<1x1x128xf32, #tpu.memory_space<vmem>>, vector<1x1x128xf32>
    %6 = vector.broadcast %5 : vector<1x1x128xf32> to vector<4x8x128xf32>
    %7 = arith.addf %4, %6 : vector<4x8x128xf32>
    %cst_10 = arith.constant dense<0xFF800000> : vector<4x8xf32>
    %8 = vector.multi_reduction <maximumf>, %7, %cst_10 [2] : vector<4x8x128xf32> to vector<4x8xf32>
    %9 = vector.shape_cast %8 : vector<4x8xf32> to vector<4x8x1xf32>
    %10 = vector.broadcast %9 : vector<4x8x1xf32> to vector<4x8x128xf32>
    %11 = arith.subf %7, %10 : vector<4x8x128xf32>
    %12 = math.exp %11 : vector<4x8x128xf32>
    %cst_11 = arith.constant dense<0.000000e+00> : vector<4x8xf32>
    %13 = vector.multi_reduction <add>, %12, %cst_11 [2] : vector<4x8x128xf32> to vector<4x8xf32>
    %14 = vector.shape_cast %13 : vector<4x8xf32> to vector<4x8x1xf32>
    %15 = tpu.reciprocal %14 : vector<4x8x1xf32> -> vector<4x8x1xf32>
    %16 = vector.broadcast %15 : vector<4x8x1xf32> to vector<4x8x128xf32>
    %17 = arith.mulf %12, %16 : vector<4x8x128xf32>
    %cst_12 = arith.constant dense<0.000000e+00> : vector<8x128xf32>
    %18 = vector.multi_reduction <add>, %17, %cst_12 [0] : vector<4x8x128xf32> to vector<8x128xf32>
    %cst_13 = arith.constant 2.500000e-01 : f32
    %19 = vector.broadcast %cst_13 : f32 to vector<8x128xf32>
    %20 = arith.mulf %18, %19 : vector<8x128xf32>
    %c0_14 = arith.constant 0 : index
    %c0_15 = arith.constant 0 : index
    %c0_16 = arith.constant 0 : index
    %21 = vector.load %arg9[%c0_14, %c0_15, %c0_16] : memref<1x8x128xf32, #tpu.memory_space<vmem>>, vector<1x8x128xf32>
    %22 = vector.shape_cast %21 : vector<1x8x128xf32> to vector<8x128xf32>
    %23 = vector.shape_cast %20 : vector<8x128xf32> to vector<1x8x128xf32>
    tpu.vector_store %arg9[%c0_14, %c0_15, %c0_16], %23 {strides = array<i32>} : memref<1x8x128xf32, #tpu.memory_space<vmem>>, vector<1x8x128xf32>,
    %24 = arith.truncf %17 : vector<4x8x128xf32> to vector<4x8x128xbf16>
    %c0_17 = arith.constant 0 : index
    %c0_18 = arith.constant 0 : index
    %c0_19 = arith.constant 0 : index
    %c0_20 = arith.constant 0 : index
    %25 = vector.load %arg4[%c0_17, %c0_18, %c0_19, %c0_20] : memref<1x4x128x8xbf16, #tpu.memory_space<vmem>>, vector<1x4x128x8xbf16>
    %26 = vector.shape_cast %25 : vector<1x4x128x8xbf16> to vector<4x128x8xbf16>
    "tpu.trace_start"() <{level = 10 : i32, message = "hqk,hkd->hqd"}> : () -> ()
    %cst_21 = arith.constant dense<0.000000e+00> : vector<4x8x8xf32>
    %27 = tpu.matmul %24, %26, %cst_21 {dimension_numbers = #tpu.dot_dimension_numbers<[2], [1], [1], [2], [0, 0, 0, 1, 1, 2], [0], [0]>} : vector<4x8x128xbf16>, vector<4x128x8xbf16>, vector<4x8x8xf32> -> vector<4x8x8xf32>
    "tpu.trace_stop"() : () -> ()
    %28 = arith.truncf %27 : vector<4x8x8xf32> to vector<4x8x8xbf16>
    %c0_22 = arith.constant 0 : index
    %c0_23 = arith.constant 0 : index
    %c0_24 = arith.constant 0 : index
    %29 = vector.load %arg6[%c0_22, %c0_23, %c0_24] : memref<4x8x32xbf16, #tpu.memory_space<vmem>>, vector<4x8x32xbf16>
    "tpu.trace_start"() <{level = 10 : i32, message = "hqd,hde->hqe"}> : () -> ()
    %cst_25 = arith.constant dense<0.000000e+00> : vector<4x8x32xf32>
    %30 = tpu.matmul %28, %29, %cst_25 {dimension_numbers = #tpu.dot_dimension_numbers<[2], [1], [1], [2], [0, 0, 0, 1, 1, 2], [0], [0]>} : vector<4x8x8xbf16>, vector<4x8x32xbf16>, vector<4x8x32xf32> -> vector<4x8x32xf32>
    "tpu.trace_stop"() : () -> ()
    %cst_26 = arith.constant dense<0.000000e+00> : vector<8x32xf32>
    %31 = vector.multi_reduction <add>, %30, %cst_26 [0] : vector<4x8x32xf32> to vector<8x32xf32>
    %c0_27 = arith.constant 0 : index
    %c0_28 = arith.constant 0 : index
    %32 = vector.load %arg7[%c0_27, %c0_28] : memref<1x32xf32, #tpu.memory_space<vmem>>, vector<1x32xf32>
    %33 = vector.broadcast %32 : vector<1x32xf32> to vector<8x32xf32>
    %34 = arith.addf %31, %33 : vector<8x32xf32>
    %c0_29 = arith.constant 0 : index
    %c0_30 = arith.constant 0 : index
    %c0_31 = arith.constant 0 : index
    %35 = vector.load %arg8[%c0_29, %c0_30, %c0_31] : memref<1x8x32xf32, #tpu.memory_space<vmem>>, vector<1x8x32xf32>
    %36 = vector.shape_cast %35 : vector<1x8x32xf32> to vector<8x32xf32>
    %37 = vector.shape_cast %34 : vector<8x32xf32> to vector<1x8x32xf32>
    tpu.vector_store %arg8[%c0_29, %c0_30, %c0_31], %37 {strides = array<i32>} : memref<1x8x32xf32, #tpu.memory_space<vmem>>, vector<1x8x32xf32>,
    return
  }
  func.func @transform_0(%arg0: i32, %arg1: i32) -> (i32, i32, i32, i32) {
    %c0_i32 = arith.constant 0 : i32
    %c0_i32_0 = arith.constant 0 : i32
    %c0_i32_1 = arith.constant 0 : i32
    return %arg0, %c0_i32, %arg1, %c0_i32_0 : i32, i32, i32, i32
  }
  func.func @transform_1(%arg0: i32, %arg1: i32) -> (i32, i32, i32, i32) {
    %c0_i32 = arith.constant 0 : i32
    %c0_i32_0 = arith.constant 0 : i32
    %c0_i32_1 = arith.constant 0 : i32
    %c0_i32_2 = arith.constant 0 : i32
    return %arg0, %c0_i32, %c0_i32_0, %c0_i32_1 : i32, i32, i32, i32
  }
  func.func @transform_2(%arg0: i32, %arg1: i32) -> (i32, i32, i32, i32) {
    %c0_i32 = arith.constant 0 : i32
    %c0_i32_0 = arith.constant 0 : i32
    %c0_i32_1 = arith.constant 0 : i32
    %c0_i32_2 = arith.constant 0 : i32
    return %arg0, %c0_i32, %c0_i32_0, %c0_i32_1 : i32, i32, i32, i32
  }
  func.func @transform_3(%arg0: i32, %arg1: i32) -> (i32, i32, i32) {
    %c0_i32 = arith.constant 0 : i32
    %c0_i32_0 = arith.constant 0 : i32
    %c0_i32_1 = arith.constant 0 : i32
    %c0_i32_2 = arith.constant 0 : i32
    return %c0_i32, %c0_i32_0, %c0_i32_1 : i32, i32, i32
  }
  func.func @transform_4(%arg0: i32, %arg1: i32) -> (i32, i32, i32) {
    %c0_i32 = arith.constant 0 : i32
    %c0_i32_0 = arith.constant 0 : i32
    %c0_i32_1 = arith.constant 0 : i32
    %c0_i32_2 = arith.constant 0 : i32
    return %c0_i32, %c0_i32_0, %c0_i32_1 : i32, i32, i32
  }
  func.func @transform_5(%arg0: i32, %arg1: i32) -> (i32, i32) {
    %c0_i32 = arith.constant 0 : i32
    %c0_i32_0 = arith.constant 0 : i32
    %c0_i32_1 = arith.constant 0 : i32
    return %c0_i32, %c0_i32_0 : i32, i32
  }
  func.func @transform_6(%arg0: i32, %arg1: i32) -> (i32, i32, i32) {
    %c0_i32 = arith.constant 0 : i32
    %c0_i32_0 = arith.constant 0 : i32
    return %arg0, %arg1, %c0_i32 : i32, i32, i32
  }
  func.func @transform_7(%arg0: i32, %arg1: i32) -> (i32, i32, i32) {
    %c0_i32 = arith.constant 0 : i32
    %c0_i32_0 = arith.constant 0 : i32
    return %arg0, %arg1, %c0_i32 : i32, i32, i32
  }
}

module attributes {stable_mosaic.version = 11 : i64} {
  func.func @_attn_kernel(%arg0: i32, %arg1: i32, %arg2: memref<1x4x8x8xbf16, #tpu.memory_space<vmem>>, %arg3: memref<1x4x128x8xbf16, #tpu.memory_space<vmem>>, %arg4: memref<1x4x128x8xbf16, #tpu.memory_space<vmem>>, %arg5: memref<1x1x128xf32, #tpu.memory_space<vmem>>, %arg6: memref<4x8x32xbf16, #tpu.memory_space<vmem>>, %arg7: memref<1x32xf32, #tpu.memory_space<vmem>>, %arg8: memref<1x8x32xf32, #tpu.memory_space<vmem>>, %arg9: memref<1x8x128xf32, #tpu.memory_space<vmem>>) attributes {dimension_semantics = [#tpu.dimension_semantics<parallel>, #tpu.dimension_semantics<parallel>], iteration_bounds = array<i64: 2, 1>, scalar_prefetch = 0 : i64, scratch_operands = 0 : i64, tpu.core_type = #tpu.core_type<tc>, window_params = [{transform_indices = @transform_0, window_bounds = array<i64: 1, 4, 8, 8>}, {transform_indices = @transform_1, window_bounds = array<i64: 1, 4, 128, 8>}, {transform_indices = @transform_2, window_bounds = array<i64: 1, 4, 128, 8>}, {pipeline_mode = #tpu.pipeline_mode<synchronous>, transform_indices = @transform_3, window_bounds = array<i64: 1, 1, 128>}, {pipeline_mode = #tpu.pipeline_mode<synchronous>, transform_indices = @transform_4, window_bounds = array<i64: 4, 8, 32>}, {pipeline_mode = #tpu.pipeline_mode<synchronous>, transform_indices = @transform_5, window_bounds = array<i64: 1, 32>}, {transform_indices = @transform_6, window_bounds = array<i64: 1, 8, 32>}, {transform_indices = @transform_7, window_bounds = array<i64: 1, 8, 128>}]} {
    %c0 = arith.constant 0 : index
    %c0_0 = arith.constant 0 : index
    %c0_1 = arith.constant 0 : index
    %c0_2 = arith.constant 0 : index
    %0 = vector.load %arg2[%c0, %c0_0, %c0_1, %c0_2] : memref<1x4x8x8xbf16, #tpu.memory_space<vmem>>, vector<1x4x8x8xbf16>
    %1 = vector.shape_cast %0 : vector<1x4x8x8xbf16> to vector<4x8x8xbf16>
    %c0_3 = arith.constant 0 : index
    %c0_4 = arith.constant 0 : index
    %c0_5 = arith.constant 0 : index
    %c0_6 = arith.constant 0 : index
    %2 = vector.load %arg3[%c0_3, %c0_4, %c0_5, %c0_6] : memref<1x4x128x8xbf16, #tpu.memory_space<vmem>>, vector<1x4x128x8xbf16>
    %3 = vector.shape_cast %2 : vector<1x4x128x8xbf16> to vector<4x128x8xbf16>
    "tpu.trace_start"() <{level = 10 : i32, message = "hqd,hkd->hqk"}> : () -> ()
    %cst = arith.constant dense<0.000000e+00> : vector<4x8x128xf32>
    %4 = tpu.matmul %1, %3, %cst {dimension_numbers = #tpu.dot_dimension_numbers<[2], [2], [1], [1], [0, 0, 0, 1, 1, 1], [0], [0]>} : vector<4x8x8xbf16>, vector<4x128x8xbf16>, vector<4x8x128xf32> -> vector<4x8x128xf32>
    "tpu.trace_stop"() : () -> ()
    %c0_7 = arith.constant 0 : index
    %c0_8 = arith.constant 0 : index
    %c0_9 = arith.constant 0 : index
    %5 = vector.load %arg5[%c0_7, %c0_8, %c0_9] : memref<1x1x128xf32, #tpu.memory_space<vmem>>, vector<1x1x128xf32>
    %6 = vector.broadcast %5 : vector<1x1x128xf32> to vector<4x8x128xf32>
    %7 = arith.addf %4, %6 : vector<4x8x128xf32>
    %cst_10 = arith.constant dense<0xFF800000> : vector<4x8xf32>
    %8 = vector.multi_reduction <maximumf>, %7, %cst_10 [2] : vector<4x8x128xf32> to vector<4x8xf32>
    %9 = vector.shape_cast %8 : vector<4x8xf32> to vector<4x8x1xf32>
    %10 = vector.broadcast %9 : vector<4x8x1xf32> to vector<4x8x128xf32>
    %11 = arith.subf %7, %10 : vector<4x8x128xf32>
    %12 = math.exp %11 : vector<4x8x128xf32>
    %cst_11 = arith.constant dense<0.000000e+00> : vector<4x8xf32>
    %13 = vector.multi_reduction <add>, %12, %cst_11 [2] : vector<4x8x128xf32> to vector<4x8xf32>
    %14 = vector.shape_cast %13 : vector<4x8xf32> to vector<4x8x1xf32>
    %15 = tpu.reciprocal %14 : vector<4x8x1xf32> -> vector<4x8x1xf32>
    %16 = vector.broadcast %15 : vector<4x8x1xf32> to vector<4x8x128xf32>
    %17 = arith.mulf %12, %16 : vector<4x8x128xf32>
    %cst_12 = arith.constant dense<0.000000e+00> : vector<8x128xf32>
    %18 = vector.multi_reduction <add>, %17, %cst_12 [0] : vector<4x8x128xf32> to vector<8x128xf32>
    %cst_13 = arith.constant 2.500000e-01 : f32
    %19 = vector.broadcast %cst_13 : f32 to vector<8x128xf32>
    %20 = arith.mulf %18, %19 : vector<8x128xf32>
    %c0_14 = arith.constant 0 : index
    %c0_15 = arith.constant 0 : index
    %c0_16 = arith.constant 0 : index
    %21 = vector.load %arg9[%c0_14, %c0_15, %c0_16] : memref<1x8x128xf32, #tpu.memory_space<vmem>>, vector<1x8x128xf32>
    %22 = vector.shape_cast %21 : vector<1x8x128xf32> to vector<8x128xf32>
    %23 = vector.shape_cast %20 : vector<8x128xf32> to vector<1x8x128xf32>
    tpu.vector_store %arg9[%c0_14, %c0_15, %c0_16], %23 {strides = array<i32>} : memref<1x8x128xf32, #tpu.memory_space<vmem>>, vector<1x8x128xf32>,
    %24 = arith.truncf %17 : vector<4x8x128xf32> to vector<4x8x128xbf16>
    %c0_17 = arith.constant 0 : index
    %c0_18 = arith.constant 0 : index
    %c0_19 = arith.constant 0 : index
    %c0_20 = arith.constant 0 : index
    %25 = vector.load %arg4[%c0_17, %c0_18, %c0_19, %c0_20] : memref<1x4x128x8xbf16, #tpu.memory_space<vmem>>, vector<1x4x128x8xbf16>
    %26 = vector.shape_cast %25 : vector<1x4x128x8xbf16> to vector<4x128x8xbf16>
    "tpu.trace_start"() <{level = 10 : i32, message = "hqk,hkd->hqd"}> : () -> ()
    %cst_21 = arith.constant dense<0.000000e+00> : vector<4x8x8xf32>
    %27 = tpu.matmul %24, %26, %cst_21 {dimension_numbers = #tpu.dot_dimension_numbers<[2], [1], [1], [2], [0, 0, 0, 1, 1, 2], [0], [0]>} : vector<4x8x128xbf16>, vector<4x128x8xbf16>, vector<4x8x8xf32> -> vector<4x8x8xf32>
    "tpu.trace_stop"() : () -> ()
    %28 = arith.truncf %27 : vector<4x8x8xf32> to vector<4x8x8xbf16>
    %c0_22 = arith.constant 0 : index
    %c0_23 = arith.constant 0 : index
    %c0_24 = arith.constant 0 : index
    %29 = vector.load %arg6[%c0_22, %c0_23, %c0_24] : memref<4x8x32xbf16, #tpu.memory_space<vmem>>, vector<4x8x32xbf16>
    "tpu.trace_start"() <{level = 10 : i32, message = "hqd,hde->hqe"}> : () -> ()
    %cst_25 = arith.constant dense<0.000000e+00> : vector<4x8x32xf32>
    %30 = tpu.matmul %28, %29, %cst_25 {dimension_numbers = #tpu.dot_dimension_numbers<[2], [1], [1], [2], [0, 0, 0, 1, 1, 2], [0], [0]>} : vector<4x8x8xbf16>, vector<4x8x32xbf16>, vector<4x8x32xf32> -> vector<4x8x32xf32>
    "tpu.trace_stop"() : () -> ()
    %cst_26 = arith.constant dense<0.000000e+00> : vector<8x32xf32>
    %31 = vector.multi_reduction <add>, %30, %cst_26 [0] : vector<4x8x32xf32> to vector<8x32xf32>
    %c0_27 = arith.constant 0 : index
    %c0_28 = arith.constant 0 : index
    %32 = vector.load %arg7[%c0_27, %c0_28] : memref<1x32xf32, #tpu.memory_space<vmem>>, vector<1x32xf32>
    %33 = vector.broadcast %32 : vector<1x32xf32> to vector<8x32xf32>
    %34 = arith.addf %31, %33 : vector<8x32xf32>
    %c0_29 = arith.constant 0 : index
    %c0_30 = arith.constant 0 : index
    %c0_31 = arith.constant 0 : index
    %35 = vector.load %arg8[%c0_29, %c0_30, %c0_31] : memref<1x8x32xf32, #tpu.memory_space<vmem>>, vector<1x8x32xf32>
    %36 = vector.shape_cast %35 : vector<1x8x32xf32> to vector<8x32xf32>
    %37 = vector.shape_cast %34 : vector<8x32xf32> to vector<1x8x32xf32>
    tpu.vector_store %arg8[%c0_29, %c0_30, %c0_31], %37 {strides = array<i32>} : memref<1x8x32xf32, #tpu.memory_space<vmem>>, vector<1x8x32xf32>,
    return
  }
  func.func @transform_0(%arg0: i32, %arg1: i32) -> (i32, i32, i32, i32) {
    %c0_i32 = arith.constant 0 : i32
    %c0_i32_0 = arith.constant 0 : i32
    %c0_i32_1 = arith.constant 0 : i32
    return %arg0, %c0_i32, %arg1, %c0_i32_0 : i32, i32, i32, i32
  }
  func.func @transform_1(%arg0: i32, %arg1: i32) -> (i32, i32, i32, i32) {
    %c0_i32 = arith.constant 0 : i32
    %c0_i32_0 = arith.constant 0 : i32
    %c0_i32_1 = arith.constant 0 : i32
    %c0_i32_2 = arith.constant 0 : i32
    return %arg0, %c0_i32, %c0_i32_0, %c0_i32_1 : i32, i32, i32, i32
  }
  func.func @transform_2(%arg0: i32, %arg1: i32) -> (i32, i32, i32, i32) {
    %c0_i32 = arith.constant 0 : i32
    %c0_i32_0 = arith.constant 0 : i32
    %c0_i32_1 = arith.constant 0 : i32
    %c0_i32_2 = arith.constant 0 : i32
    return %arg0, %c0_i32, %c0_i32_0, %c0_i32_1 : i32, i32, i32, i32
  }
  func.func @transform_3(%arg0: i32, %arg1: i32) -> (i32, i32, i32) {
    %c0_i32 = arith.constant 0 : i32
    %c0_i32_0 = arith.constant 0 : i32
    %c0_i32_1 = arith.constant 0 : i32
    %c0_i32_2 = arith.constant 0 : i32
    return %c0_i32, %c0_i32_0, %c0_i32_1 : i32, i32, i32
  }
  func.func @transform_4(%arg0: i32, %arg1: i32) -> (i32, i32, i32) {
    %c0_i32 = arith.constant 0 : i32
    %c0_i32_0 = arith.constant 0 : i32
    %c0_i32_1 = arith.constant 0 : i32
    %c0_i32_2 = arith.constant 0 : i32
    return %c0_i32, %c0_i32_0, %c0_i32_1 : i32, i32, i32
  }
  func.func @transform_5(%arg0: i32, %arg1: i32) -> (i32, i32) {
    %c0_i32 = arith.constant 0 : i32
    %c0_i32_0 = arith.constant 0 : i32
    %c0_i32_1 = arith.constant 0 : i32
    return %c0_i32, %c0_i32_0 : i32, i32
  }
  func.func @transform_6(%arg0: i32, %arg1: i32) -> (i32, i32, i32) {
    %c0_i32 = arith.constant 0 : i32
    %c0_i32_0 = arith.constant 0 : i32
    return %arg0, %arg1, %c0_i32 : i32, i32, i32
  }
  func.func @transform_7(%arg0: i32, %arg1: i32) -> (i32, i32, i32) {
    %c0_i32 = arith.constant 0 : i32
    %c0_i32_0 = arith.constant 0 : i32
    return %arg0, %arg1, %c0_i32 : i32, i32, i32
  }
}

</mosaic_0001>

<llo_original>
// kernel: tpu_custom_call.1
$region0: #{tpu_custom_call.1}
  #allocation0 [shape = 'u32[]', space=smem, size = 0x4, offset = 0x4, fixed_abs, tag = 'smem constant byte address 0x4 - core index']
  #allocation1 [shape = 'u32[144,128]{1,0:T(1,128)}', space=vmem, size = 0x12000, scoped, tag = 'internal scratch']
  %s0 = inlined_call_operand.vmem [shape: bf16[2,4,8,8], index: 0, kind: input, shape index: {}]
  %s1 = inlined_call_operand.vmem [shape: bf16[2,4,128,8], index: 1, kind: input, shape index: {}]
  %s2 = inlined_call_operand.vmem [shape: bf16[2,4,128,8], index: 2, kind: input, shape index: {}]
  %s3 = inlined_call_operand.vmem [shape: f32[1,1,128], index: 3, kind: input, shape index: {}]
  %s4 = inlined_call_operand.vmem [shape: bf16[4,8,32], index: 4, kind: input, shape index: {}]
  %s5 = inlined_call_operand.vmem [shape: f32[1,32], index: 5, kind: input, shape index: {}]
  %s6 = inlined_call_operand.hbm [shape: f32[2,8,32], index: 6, kind: output, shape index: {0}]
  %s7 = inlined_call_operand.hbm [shape: f32[2,8,128], index: 7, kind: output, shape index: {1}]
  %8 = xla_tuple %s6, %s7
  %s9 = sld [smem:[#allocation0]]
  $region65: #{tpu_custom_call.1} parent=0
    _
  %s11 = ssub.s32 1, %s9
  %s12 = scalar_select 0, %s11, %s9
  $region1: #{tpu_custom_call.1} parent=0
    #allocation2 [shape = 'u8[8192]{0}', space=vmem, size = 0x2000, scoped, tag = 'output window, operand 0']
    #allocation3 [shape = 's32[2]{0}', space=sflag, size = 0x8, scoped, tag = 'scoped memory for tpu_custom_call.1']
    #allocation4 [shape = 'u8[8192]{0}', space=vmem, size = 0x2000, scoped, tag = 'output window, operand 1']
    #allocation5 [shape = 's32[2]{0}', space=sflag, size = 0x8, scoped, tag = 'scoped memory for tpu_custom_call.1']
    %13 = vsyncpa [#allocation3], 0
    %s14 = scalar_lea.sflag [#allocation3], 1
    %15 = vsyncpa %s14, 0
    %16 = vsyncpa [#allocation5], 0
    %s17 = scalar_lea.sflag [#allocation5], 1
    %18 = vsyncpa %s17, 0
    loop: start=0, step=1, limit=4
    $region2: #{tpu_custom_call.1} parent=1 // loop_pre_header
      _
    $region3: #{tpu_custom_call.1} parent=1 // loop_header
      %s20 = sphi 0, %s24
      %p21 = scmp.ge.s32.totalorder %s20, 4
      %s27 = sphi 0, %s39
      %s28 = sphi 0, %s35
      %s29 = sphi 0, %s27
      %s30 = sphi 0, %s28
      %s31 = sphi 0, %s29
      %s32 = sphi 0, %s30
      %s44 = sphi 0, %s46
      %s47 = sphi 0, %s44
      %s48 = sphi 0, %s47
      %s64 = sphi 0, %s48
      %s70 = sphi 0, %s72
      %s73 = sphi 0, %s70
      %s74 = sphi 0, %s73
      %s90 = sphi 0, %s74
      %s96 = sphi 0, %s98
      %s99 = sphi 0, %s96
      %s100 = sphi 0, %s99
      %s116 = sphi 0, %s100
      %s120 = sphi 0, %s120
      %s122 = sphi 0, %s120
      %s123 = sphi 0, %s122
      %s137 = sphi 0, %s123
      %s141 = sphi 0, %s141
      %s143 = sphi 0, %s141
      %s144 = sphi 0, %s143
      %s158 = sphi 0, %s144
      %s162 = sphi 0, %s162
      %s164 = sphi 0, %s162
      %s165 = sphi 0, %s164
      %s179 = sphi 0, %s165
      %s187 = sphi 0, %s189
      %s190 = sphi 0, %s187
      %s191 = sphi 0, %s190
      %s207 = sphi 0, %s191
      %s215 = sphi 0, %s217
      %s218 = sphi 0, %s215
      %s219 = sphi 0, %s218
      %s235 = sphi 0, %s219
    $region4: #{tpu_custom_call.1} parent=1 // loop_header_branch
      %23 = sbr.rel (%p21) target = $region8
    $region5: #{tpu_custom_call.1} parent=1 // loop_body
      %s25 = ssub.s32 %s20, 1
      %s26 = ssub.s32 %s20, 2
      %s33 = sadd.s32 1, %s28
      %p34 = scmp.ge.s32.totalorder %s33, 1
      %s35 = scalar_select %p34, 0, %s33
      %s36 = sadd.s32 1, %s27
      %s37 = scalar_select %p34, %s36, %s27
      %p38 = scmp.ge.s32.totalorder %s37, 2
      %s39 = scalar_select %p38, 0, %s37
      %s40 = ssub.s32 %s27, %s39
      %s41 = ssub.s32 %s28, %s35
      %s42 = sor.u32 %s40, %s41
      %p43 = scmp.eq.s32.totalorder %s42, 0
      %s45 = sadd.s32 %s44, 1
      %s46 = scalar_select %p43, %s44, %s45
      %p49 = pneg %p43
      %p50 = scmp.eq.s32.totalorder %s20, 1
      %p51 = por %p49, %p50
      %p52 = scmp.ne.s32.totalorder %s44, %s47
      %p53 = scmp.eq.s32.totalorder %s20, 0
      %p54 = por %p52, %p53
      %p55 = scmp.ne.s32.totalorder %s44, %s47
      %p56 = scmp.eq.s32.totalorder %s25, 1
      %p57 = por %p55, %p56
      %p58 = scmp.ne.s32.totalorder %s47, %s48
      %p59 = scmp.eq.s32.totalorder %s25, 0
      %p60 = por %p58, %p59
      %p61 = scmp.ne.s32.totalorder %s47, %s48
      %p62 = scmp.eq.s32.totalorder %s26, 1
      %p63 = por %p61, %p62
      %p65 = scmp.ne.s32.totalorder %s48, %s64
      %p66 = scmp.eq.s32.totalorder %s26, 0
      %p67 = por %p65, %p66
      %s68 = ssub.s32 %s27, %s39
      %p69 = scmp.eq.s32.totalorder %s68, 0
      %s71 = sadd.s32 %s70, 1
      %s72 = scalar_select %p69, %s70, %s71
      %p75 = pneg %p69
      %p76 = scmp.eq.s32.totalorder %s20, 1
      %p77 = por %p75, %p76
      %p78 = scmp.ne.s32.totalorder %s70, %s73
      %p79 = scmp.eq.s32.totalorder %s20, 0
      %p80 = por %p78, %p79
      %p81 = scmp.ne.s32.totalorder %s70, %s73
      %p82 = scmp.eq.s32.totalorder %s25, 1
      %p83 = por %p81, %p82
      %p84 = scmp.ne.s32.totalorder %s73, %s74
      %p85 = scmp.eq.s32.totalorder %s25, 0
      %p86 = por %p84, %p85
      %p87 = scmp.ne.s32.totalorder %s73, %s74
      %p88 = scmp.eq.s32.totalorder %s26, 1
      %p89 = por %p87, %p88
      %p91 = scmp.ne.s32.totalorder %s74, %s90
      %p92 = scmp.eq.s32.totalorder %s26, 0
      %p93 = por %p91, %p92
      %s94 = ssub.s32 %s27, %s39
      %p95 = scmp.eq.s32.totalorder %s94, 0
      %s97 = sadd.s32 %s96, 1
      %s98 = scalar_select %p95, %s96, %s97
      %p101 = pneg %p95
      %p102 = scmp.eq.s32.totalorder %s20, 1
      %p103 = por %p101, %p102
      %p104 = scmp.ne.s32.totalorder %s96, %s99
      %p105 = scmp.eq.s32.totalorder %s20, 0
      %p106 = por %p104, %p105
      %p107 = scmp.ne.s32.totalorder %s96, %s99
      %p108 = scmp.eq.s32.totalorder %s25, 1
      %p109 = por %p107, %p108
      %p110 = scmp.ne.s32.totalorder %s99, %s100
      %p111 = scmp.eq.s32.totalorder %s25, 0
      %p112 = por %p110, %p111
      %p113 = scmp.ne.s32.totalorder %s99, %s100
      %p114 = scmp.eq.s32.totalorder %s26, 1
      %p115 = por %p113, %p114
      %p117 = scmp.ne.s32.totalorder %s100, %s116
      %p118 = scmp.eq.s32.totalorder %s26, 0
      %p119 = por %p117, %p118
      %s121 = sadd.s32 %s120, 1
      %p124 = scmp.eq.s32.totalorder %s20, 1
      %p125 = scmp.ne.s32.totalorder %s120, %s122
      %p126 = scmp.eq.s32.totalorder %s20, 0
      %p127 = por %p125, %p126
      %p128 = scmp.ne.s32.totalorder %s120, %s122
      %p129 = scmp.eq.s32.totalorder %s25, 1
      %p130 = por %p128, %p129
      %p131 = scmp.ne.s32.totalorder %s122, %s123
      %p132 = scmp.eq.s32.totalorder %s25, 0
      %p133 = por %p131, %p132
      %p134 = scmp.ne.s32.totalorder %s122, %s123
      %p135 = scmp.eq.s32.totalorder %s26, 1
      %p136 = por %p134, %p135
      %p138 = scmp.ne.s32.totalorder %s123, %s137
      %p139 = scmp.eq.s32.totalorder %s26, 0
      %p140 = por %p138, %p139
      %s142 = sadd.s32 %s141, 1
      %p145 = scmp.eq.s32.totalorder %s20, 1
      %p146 = scmp.ne.s32.totalorder %s141, %s143
      %p147 = scmp.eq.s32.totalorder %s20, 0
      %p148 = por %p146, %p147
      %p149 = scmp.ne.s32.totalorder %s141, %s143
      %p150 = scmp.eq.s32.totalorder %s25, 1
      %p151 = por %p149, %p150
      %p152 = scmp.ne.s32.totalorder %s143, %s144
      %p153 = scmp.eq.s32.totalorder %s25, 0
      %p154 = por %p152, %p153
      %p155 = scmp.ne.s32.totalorder %s143, %s144
      %p156 = scmp.eq.s32.totalorder %s26, 1
      %p157 = por %p155, %p156
      %p159 = scmp.ne.s32.totalorder %s144, %s158
      %p160 = scmp.eq.s32.totalorder %s26, 0
      %p161 = por %p159, %p160
      %s163 = sadd.s32 %s162, 1
      %p166 = scmp.eq.s32.totalorder %s20, 1
      %p167 = scmp.ne.s32.totalorder %s162, %s164
      %p168 = scmp.eq.s32.totalorder %s20, 0
      %p169 = por %p167, %p168
      %p170 = scmp.ne.s32.totalorder %s162, %s164
      %p171 = scmp.eq.s32.totalorder %s25, 1
      %p172 = por %p170, %p171
      %p173 = scmp.ne.s32.totalorder %s164, %s165
      %p174 = scmp.eq.s32.totalorder %s25, 0
      %p175 = por %p173, %p174
      %p176 = scmp.ne.s32.totalorder %s164, %s165
      %p177 = scmp.eq.s32.totalorder %s26, 1
      %p178 = por %p176, %p177
      %p180 = scmp.ne.s32.totalorder %s165, %s179
      %p181 = scmp.eq.s32.totalorder %s26, 0
      %p182 = por %p180, %p181
      %s183 = ssub.s32 %s27, %s39
      %s184 = ssub.s32 %s28, %s35
      %s185 = sor.u32 %s183, %s184
      %p186 = scmp.eq.s32.totalorder %s185, 0
      %s188 = sadd.s32 %s187, 1
      %s189 = scalar_select %p186, %s187, %s188
      %p192 = pneg %p186
      %p193 = scmp.eq.s32.totalorder %s20, 1
      %p194 = por %p192, %p193
      %p195 = scmp.ne.s32.totalorder %s187, %s190
      %p196 = scmp.eq.s32.totalorder %s20, 0
      %p197 = por %p195, %p196
      %p198 = scmp.ne.s32.totalorder %s187, %s190
      %p199 = scmp.eq.s32.totalorder %s25, 1
      %p200 = por %p198, %p199
      %p201 = scmp.ne.s32.totalorder %s190, %s191
      %p202 = scmp.eq.s32.totalorder %s25, 0
      %p203 = por %p201, %p202
      %p204 = scmp.ne.s32.totalorder %s190, %s191
      %p205 = scmp.eq.s32.totalorder %s26, 1
      %p206 = por %p204, %p205
      %p208 = scmp.ne.s32.totalorder %s191, %s207
      %p209 = scmp.eq.s32.totalorder %s26, 0
      %p210 = por %p208, %p209
      %s211 = ssub.s32 %s27, %s39
      %s212 = ssub.s32 %s28, %s35
      %s213 = sor.u32 %s211, %s212
      %p214 = scmp.eq.s32.totalorder %s213, 0
      %s216 = sadd.s32 %s215, 1
      %s217 = scalar_select %p214, %s215, %s216
      %p220 = pneg %p214
      %p221 = scmp.eq.s32.totalorder %s20, 1
      %p222 = por %p220, %p221
      %p223 = scmp.ne.s32.totalorder %s215, %s218
      %p224 = scmp.eq.s32.totalorder %s20, 0
      %p225 = por %p223, %p224
      %p226 = scmp.ne.s32.totalorder %s215, %s218
      %p227 = scmp.eq.s32.totalorder %s25, 1
      %p228 = por %p226, %p227
      %p229 = scmp.ne.s32.totalorder %s218, %s219
      %p230 = scmp.eq.s32.totalorder %s25, 0
      %p231 = por %p229, %p230
      %p232 = scmp.ne.s32.totalorder %s218, %s219
      %p233 = scmp.eq.s32.totalorder %s26, 1
      %p234 = por %p232, %p233
      %p236 = scmp.ne.s32.totalorder %s219, %s235
      %p237 = scmp.eq.s32.totalorder %s26, 0
      %p238 = por %p236, %p237
      %p239 = scmp.le.s32.totalorder 1, %s20
      %p240 = scmp.lt.s32.totalorder %s20, 3
      %p241 = pnand %p239, %p240
      %p242 = pneg %p241
      // Predicated region
      $region9: #{tpu_custom_call.1} parent=5 // pred_check
        _
      $region10: #{tpu_custom_call.1} parent=5 // pred_check_branch
        %244 = sbr.rel (%p241) target = $region12
      $region11: #{tpu_custom_call.1} parent=5 // pred_region
        %s245 = ssub.s32 %s20, 1
        // Predicated region
        $region13: #{tpu_custom_call.1} parent=11 // pred_check
          %p246 = pneg %p133
        $region14: #{tpu_custom_call.1} parent=11 // pred_check_branch
          %248 = sbr.rel (%p246) target = $region16
        $region15: #{tpu_custom_call.1} parent=11 // pred_region
          _
        $region16: #{tpu_custom_call.1} parent=11 // pred_fallthru
          _
        // Predicated region
        $region17: #{tpu_custom_call.1} parent=11 // pred_check
          %p249 = pneg %p154
        $region18: #{tpu_custom_call.1} parent=11 // pred_check_branch
          %251 = sbr.rel (%p249) target = $region20
        $region19: #{tpu_custom_call.1} parent=11 // pred_region
          _
        $region20: #{tpu_custom_call.1} parent=11 // pred_fallthru
          _
        // Predicated region
        $region21: #{tpu_custom_call.1} parent=11 // pred_check
          %p252 = pneg %p175
        $region22: #{tpu_custom_call.1} parent=11 // pred_check_branch
          %254 = sbr.rel (%p252) target = $region24
        $region23: #{tpu_custom_call.1} parent=11 // pred_region
          _
        $region24: #{tpu_custom_call.1} parent=11 // pred_fallthru
          _
      $region12: #{tpu_custom_call.1} parent=5 // pred_fallthru
        _
      %p255 = scmp.lt.s32.totalorder %s20, 2
      // Predicated region
      $region25: #{tpu_custom_call.1} parent=5 // pred_check
        %p256 = pneg %p255
      $region26: #{tpu_custom_call.1} parent=5 // pred_check_branch
        %258 = sbr.rel (%p256) target = $region28
      $region27: #{tpu_custom_call.1} parent=5 // pred_region
        // Predicated region
        $region29: #{tpu_custom_call.1} parent=27 // pred_check
          %p259 = pneg %p54
        $region30: #{tpu_custom_call.1} parent=27 // pred_check_branch
          %261 = sbr.rel (%p259) target = $region32
        $region31: #{tpu_custom_call.1} parent=27 // pred_region
          %p262 = scmp.lt.s32.totalorder %s27, 1
          %s263 = scalar_select %p262, %s27, 1
          %p264 = scmp.lt.s32.totalorder %s28, 0
          %s265 = scalar_select %p264, %s28, 0
          %s266 = smul.addr %s263, 4
          %s267 = sadd.s32 %s265, %s266
          %s268 = smul.addr %s267, 4
          %s269 = scalar_lea.vmem %s0, %s268
        $region32: #{tpu_custom_call.1} parent=27 // pred_fallthru
          _
        // Predicated region
        $region33: #{tpu_custom_call.1} parent=27 // pred_check
          %p270 = pneg %p80
        $region34: #{tpu_custom_call.1} parent=27 // pred_check_branch
          %272 = sbr.rel (%p270) target = $region36
        $region35: #{tpu_custom_call.1} parent=27 // pred_region
          %p273 = scmp.lt.s32.totalorder %s27, 1
          %s274 = scalar_select %p273, %s27, 1
          %s275 = smul.addr %s274, 64
          %s276 = smul.addr %s275, 4
          %s277 = scalar_lea.vmem %s1, %s276
        $region36: #{tpu_custom_call.1} parent=27 // pred_fallthru
          _
        // Predicated region
        $region37: #{tpu_custom_call.1} parent=27 // pred_check
          %p278 = pneg %p106
        $region38: #{tpu_custom_call.1} parent=27 // pred_check_branch
          %280 = sbr.rel (%p278) target = $region40
        $region39: #{tpu_custom_call.1} parent=27 // pred_region
          %p281 = scmp.lt.s32.totalorder %s27, 1
          %s282 = scalar_select %p281, %s27, 1
          %s283 = smul.addr %s282, 64
          %s284 = smul.addr %s283, 4
          %s285 = scalar_lea.vmem %s2, %s284
        $region40: #{tpu_custom_call.1} parent=27 // pred_fallthru
          _
      $region28: #{tpu_custom_call.1} parent=5 // pred_fallthru
        _
      %p286 = scmp.le.s32.totalorder 1, %s20
      %p287 = scmp.lt.s32.totalorder %s20, 3
      %p288 = pnand %p286, %p287
      %p289 = pneg %p288
      // Predicated region
      $region41: #{tpu_custom_call.1} parent=5 // pred_check
        _
      $region42: #{tpu_custom_call.1} parent=5 // pred_check_branch
        %291 = sbr.rel (%p288) target = $region44
      $region43: #{tpu_custom_call.1} parent=5 // pred_region
        %s292 = ssub.s32 %s20, 1
        %p293 = scmp.lt.s32.totalorder %s29, 1
        %s294 = scalar_select %p293, %s29, 1
        %p295 = scmp.lt.s32.totalorder %s30, 0
        %s296 = scalar_select %p295, %s30, 0
        %s297 = smul.addr %s294, 4
        %s298 = sadd.s32 %s296, %s297
        %s299 = smul.addr %s298, 4
        %s300 = scalar_lea.vmem %s0, %s299
        %p301 = pneg %p60
        %p302 = pneg %p57
        %p303 = scmp.lt.s32.totalorder %s29, 1
        %s304 = scalar_select %p303, %s29, 1
        %s305 = smul.addr %s304, 64
        %s306 = smul.addr %s305, 4
        %s307 = scalar_lea.vmem %s1, %s306
        %p308 = pneg %p86
        %p309 = pneg %p83
        %p310 = scmp.lt.s32.totalorder %s29, 1
        %s311 = scalar_select %p310, %s29, 1
        %s312 = smul.addr %s311, 64
        %s313 = smul.addr %s312, 4
        %s314 = scalar_lea.vmem %s2, %s313
        %p315 = pneg %p112
        %p316 = pneg %p109
        %p317 = pneg %p133
        %p318 = pneg %p130
        %p319 = pneg %p154
        %p320 = pneg %p151
        %p321 = pneg %p175
        %p322 = pneg %p172
        %p323 = pneg %p203
        %p324 = pneg %p200
        %s325 = sand.u32 %s190, 1
        %s326 = scalar_lea.sflag [#allocation3], %s325
        %s327 = sand.u32 %s190, 1
        %s328 = smul.addr %s327, 8
        %s329 = scalar_lea.vmem [#allocation2], %s328
        %p330 = pneg %p231
        %p331 = pneg %p228
        %s332 = sand.u32 %s218, 1
        %s333 = scalar_lea.sflag [#allocation5], %s332
        %s334 = sand.u32 %s218, 1
        %s335 = smul.addr %s334, 8
        %s336 = scalar_lea.vmem [#allocation4], %s335
        %p337 = scmp.lt.s32.totalorder %s29, 1
        %s338 = scalar_select %p337, %s29, 1
        %p339 = scmp.lt.s32.totalorder %s30, 0
        %s340 = scalar_select %p339, %s30, 0
        %s341 = smul.addr %s338, 4
        %s342 = sadd.s32 %s340, %s341
        %s343 = smul.addr %s342, 4
        %s344 = scalar_lea.vmem %s0, %s343
        %p345 = scmp.lt.s32.totalorder %s29, 1
        %s346 = scalar_select %p345, %s29, 1
        %s347 = smul.addr %s346, 64
        %s348 = smul.addr %s347, 4
        %s349 = scalar_lea.vmem %s1, %s348
        %p350 = scmp.lt.s32.totalorder %s29, 1
        %s351 = scalar_select %p350, %s29, 1
        %s352 = smul.addr %s351, 64
        %s353 = smul.addr %s352, 4
        %s354 = scalar_lea.vmem %s2, %s353
        %v356 = vld [vmem:[%s344] sm:$0xf]
        %v357 = vld [vmem:[%s344 + $0x4] sm:$0xf]
        %v358 = vld [vmem:[%s344 + $0x8] sm:$0xf]
        %v359 = vld [vmem:[%s344 + $0xc] sm:$0xf]
        %v360 = vld [vmem:[%s349] sm:$0xf]
        %v361 = vld [vmem:[%s349 + $0x4] sm:$0xf]
        %v362 = vld [vmem:[%s349 + $0x8] sm:$0xf]
        %v363 = vld [vmem:[%s349 + $0xc] sm:$0xf]
        %v364 = vld [vmem:[%s349 + $0x10] sm:$0xf]
        %v365 = vld [vmem:[%s349 + $0x14] sm:$0xf]
        %v366 = vld [vmem:[%s349 + $0x18] sm:$0xf]
        %v367 = vld [vmem:[%s349 + $0x1c] sm:$0xf]
        %v368 = vld [vmem:[%s349 + $0x20] sm:$0xf]
        %v369 = vld [vmem:[%s349 + $0x24] sm:$0xf]
        %v370 = vld [vmem:[%s349 + $0x28] sm:$0xf]
        %v371 = vld [vmem:[%s349 + $0x2c] sm:$0xf]
        %v372 = vld [vmem:[%s349 + $0x30] sm:$0xf]
        %v373 = vld [vmem:[%s349 + $0x34] sm:$0xf]
        %v374 = vld [vmem:[%s349 + $0x38] sm:$0xf]
        %v375 = vld [vmem:[%s349 + $0x3c] sm:$0xf]
        %v376 = vld [vmem:[%s349 + $0x40] sm:$0xf]
        %v377 = vld [vmem:[%s349 + $0x44] sm:$0xf]
        %v378 = vld [vmem:[%s349 + $0x48] sm:$0xf]
        %v379 = vld [vmem:[%s349 + $0x4c] sm:$0xf]
        %v380 = vld [vmem:[%s349 + $0x50] sm:$0xf]
        %v381 = vld [vmem:[%s349 + $0x54] sm:$0xf]
        %v382 = vld [vmem:[%s349 + $0x58] sm:$0xf]
        %v383 = vld [vmem:[%s349 + $0x5c] sm:$0xf]
        %v384 = vld [vmem:[%s349 + $0x60] sm:$0xf]
        %v385 = vld [vmem:[%s349 + $0x64] sm:$0xf]
        %v386 = vld [vmem:[%s349 + $0x68] sm:$0xf]
        %v387 = vld [vmem:[%s349 + $0x6c] sm:$0xf]
        %v388 = vld [vmem:[%s349 + $0x70] sm:$0xf]
        %v389 = vld [vmem:[%s349 + $0x74] sm:$0xf]
        %v390 = vld [vmem:[%s349 + $0x78] sm:$0xf]
        %v391 = vld [vmem:[%s349 + $0x7c] sm:$0xf]
        %v392 = vld [vmem:[%s349 + $0x80] sm:$0xf]
        %v393 = vld [vmem:[%s349 + $0x84] sm:$0xf]
        %v394 = vld [vmem:[%s349 + $0x88] sm:$0xf]
        %v395 = vld [vmem:[%s349 + $0x8c] sm:$0xf]
        %v396 = vld [vmem:[%s349 + $0x90] sm:$0xf]
        %v397 = vld [vmem:[%s349 + $0x94] sm:$0xf]
        %v398 = vld [vmem:[%s349 + $0x98] sm:$0xf]
        %v399 = vld [vmem:[%s349 + $0x9c] sm:$0xf]
        %v400 = vld [vmem:[%s349 + $0xa0] sm:$0xf]
        %v401 = vld [vmem:[%s349 + $0xa4] sm:$0xf]
        %v402 = vld [vmem:[%s349 + $0xa8] sm:$0xf]
        %v403 = vld [vmem:[%s349 + $0xac] sm:$0xf]
        %v404 = vld [vmem:[%s349 + $0xb0] sm:$0xf]
        %v405 = vld [vmem:[%s349 + $0xb4] sm:$0xf]
        %v406 = vld [vmem:[%s349 + $0xb8] sm:$0xf]
        %v407 = vld [vmem:[%s349 + $0xbc] sm:$0xf]
        %v408 = vld [vmem:[%s349 + $0xc0] sm:$0xf]
        %v409 = vld [vmem:[%s349 + $0xc4] sm:$0xf]
        %v410 = vld [vmem:[%s349 + $0xc8] sm:$0xf]
        %v411 = vld [vmem:[%s349 + $0xcc] sm:$0xf]
        %v412 = vld [vmem:[%s349 + $0xd0] sm:$0xf]
        %v413 = vld [vmem:[%s349 + $0xd4] sm:$0xf]
        %v414 = vld [vmem:[%s349 + $0xd8] sm:$0xf]
        %v415 = vld [vmem:[%s349 + $0xdc] sm:$0xf]
        %v416 = vld [vmem:[%s349 + $0xe0] sm:$0xf]
        %v417 = vld [vmem:[%s349 + $0xe4] sm:$0xf]
        %v418 = vld [vmem:[%s349 + $0xe8] sm:$0xf]
        %v419 = vld [vmem:[%s349 + $0xec] sm:$0xf]
        %v420 = vld [vmem:[%s349 + $0xf0] sm:$0xf]
        %v421 = vld [vmem:[%s349 + $0xf4] sm:$0xf]
        %v422 = vld [vmem:[%s349 + $0xf8] sm:$0xf]
        %v423 = vld [vmem:[%s349 + $0xfc] sm:$0xf]
        %v424 = vld [vmem:[%s3] sm:$0x1]
        %v426 = vlaneseq
        %v427 = vshrl.u32 %v426, 7
        %v428 = vsub.s32 0, %v427
        %v429 = vrot.slane %v424, %v428
        %v447 = vunpack.c.l.b16 %v360
        %v448 = vunpack.c.l.b16 %v361
        %v449 = vunpack.c.l.b16 %v362
        %v450 = vunpack.c.l.b16 %v363
        %v451 = vunpack.c.l.b16 %v364
        %v452 = vunpack.c.l.b16 %v365
        %v453 = vunpack.c.l.b16 %v366
        %v454 = vunpack.c.l.b16 %v367
        %v455 = vunpack.c.l.b16 %v368
        %v456 = vunpack.c.l.b16 %v369
        %v457 = vunpack.c.l.b16 %v370
        %v458 = vunpack.c.l.b16 %v371
        %v459 = vunpack.c.l.b16 %v372
        %v460 = vunpack.c.l.b16 %v373
        %v461 = vunpack.c.l.b16 %v374
        %v462 = vunpack.c.l.b16 %v375
        %v463 = vpack.c.b16 %v448, %v447
        %v464 = vpack.c.b16 %v450, %v449
        %v465 = vpack.c.b16 %v452, %v451
        %v466 = vpack.c.b16 %v454, %v453
        %v467 = vpack.c.b16 %v456, %v455
        %v468 = vpack.c.b16 %v458, %v457
        %v469 = vpack.c.b16 %v460, %v459
        %v470 = vpack.c.b16 %v462, %v461
        %vm471 = vcmask 64512
        %v473 = vsel %vm471, %v356, 0
        %v476 = vsel %vm471, %v463, 0
        %v479 = vsel %vm471, %v464, 0
        %v482 = vsel %vm471, %v465, 0
        %v485 = vsel %vm471, %v466, 0
        %v488 = vsel %vm471, %v467, 0
        %v491 = vsel %vm471, %v468, 0
        %v494 = vsel %vm471, %v469, 0
        %v497 = vsel %vm471, %v470, 0
        %499 = vmatprep.subr.bf16.mxu0 0
        %500 = vmatpush1.bf16.xpose.msra.mxu0 %v497
        %501 = vmatprep.subr.bf16.mxu0 0
        %502 = vmatpush1.bf16.xpose.msra.mxu0 %v494
        %503 = vmatprep.subr.bf16.mxu0 0
        %504 = vmatpush1.bf16.xpose.msra.mxu0 %v491
        %505 = vmatprep.subr.bf16.mxu0 0
        %506 = vmatpush1.bf16.xpose.msra.mxu0 %v488
        %507 = vmatprep.subr.bf16.mxu0 0
        %508 = vmatpush1.bf16.xpose.msra.mxu0 %v485
        %509 = vmatprep.subr.bf16.mxu0 0
        %510 = vmatpush1.bf16.xpose.msra.mxu0 %v482
        %511 = vmatprep.subr.bf16.mxu0 0
        %512 = vmatpush1.bf16.xpose.msra.mxu0 %v479
        %513 = vmatprep.subr.bf16.mxu0 0
        %514 = vmatpush1.bf16.xpose.msra.mxu0 %v476
        %515 = vmatprep.subr.bf16.mxu0 0
        %516 = vmatpush2.bf16.xpose.msra.mxu0 0
        %517 = vmatprep.subr.bf16.mxu0 0
        %518 = vmatpush2.bf16.xpose.msra.mxu0 0
        %519 = vmatprep.subr.bf16.mxu0 0
        %520 = vmatpush2.bf16.xpose.msra.mxu0 0
        %521 = vmatprep.subr.bf16.mxu0 0
        %522 = vmatpush2.bf16.xpose.msra.mxu0 0
        %523 = vmatprep.subr.bf16.mxu0 0
        %524 = vmatpush2.bf16.xpose.msra.mxu0 0
        %525 = vmatprep.subr.bf16.mxu0 0
        %526 = vmatpush2.bf16.xpose.msra.mxu0 0
        %527 = vmatprep.subr.bf16.mxu0 0
        %528 = vmatpush2.bf16.xpose.msra.mxu0 0
        %529 = vmatprep.subr.bf16.mxu0 0
        %530 = vmatpush2.bf16.xpose.msra.mxu0 0
        %531 = vmatprep.mubr.bf16.mxu0 0
        %532 = vmatmul.mubr.bf16.gmra.mxu0 %v473
        %v533 = vpop.f32.mrf.mxu0
        %v534 = vadd.f32 %v429, %v533
        %v535 = vpop.f32.mrf.mxu0
        %v536 = vpop.f32.mrf.mxu0
        %v537 = vpop.f32.mrf.mxu0
        %538 = vdwg.mxu0
        %v555 = vunpack.c.l.b16 %v376
        %v556 = vunpack.c.l.b16 %v377
        %v557 = vunpack.c.l.b16 %v378
        %v558 = vunpack.c.l.b16 %v379
        %v559 = vunpack.c.l.b16 %v380
        %v560 = vunpack.c.l.b16 %v381
        %v561 = vunpack.c.l.b16 %v382
        %v562 = vunpack.c.l.b16 %v383
        %v563 = vunpack.c.l.b16 %v384
        %v564 = vunpack.c.l.b16 %v385
        %v565 = vunpack.c.l.b16 %v386
        %v566 = vunpack.c.l.b16 %v387
        %v567 = vunpack.c.l.b16 %v388
        %v568 = vunpack.c.l.b16 %v389
        %v569 = vunpack.c.l.b16 %v390
        %v570 = vunpack.c.l.b16 %v391
        %v571 = vpack.c.b16 %v556, %v555
        %v572 = vpack.c.b16 %v558, %v557
        %v573 = vpack.c.b16 %v560, %v559
        %v574 = vpack.c.b16 %v562, %v561
        %v575 = vpack.c.b16 %v564, %v563
        %v576 = vpack.c.b16 %v566, %v565
        %v577 = vpack.c.b16 %v568, %v567
        %v578 = vpack.c.b16 %v570, %v569
        %v580 = vsel %vm471, %v357, 0
        %v583 = vsel %vm471, %v571, 0
        %v586 = vsel %vm471, %v572, 0
        %v589 = vsel %vm471, %v573, 0
        %v592 = vsel %vm471, %v574, 0
        %v595 = vsel %vm471, %v575, 0
        %v598 = vsel %vm471, %v576, 0
        %v601 = vsel %vm471, %v577, 0
        %v604 = vsel %vm471, %v578, 0
        %606 = vmatprep.subr.bf16.mxu0 0
        %607 = vmatpush1.bf16.xpose.msra.mxu0 %v604
        %608 = vmatprep.subr.bf16.mxu0 0
        %609 = vmatpush1.bf16.xpose.msra.mxu0 %v601
        %610 = vmatprep.subr.bf16.mxu0 0
        %611 = vmatpush1.bf16.xpose.msra.mxu0 %v598
        %612 = vmatprep.subr.bf16.mxu0 0
        %613 = vmatpush1.bf16.xpose.msra.mxu0 %v595
        %614 = vmatprep.subr.bf16.mxu0 0
        %615 = vmatpush1.bf16.xpose.msra.mxu0 %v592
        %616 = vmatprep.subr.bf16.mxu0 0
        %617 = vmatpush1.bf16.xpose.msra.mxu0 %v589
        %618 = vmatprep.subr.bf16.mxu0 0
        %619 = vmatpush1.bf16.xpose.msra.mxu0 %v586
        %620 = vmatprep.subr.bf16.mxu0 0
        %621 = vmatpush1.bf16.xpose.msra.mxu0 %v583
        %622 = vmatprep.subr.bf16.mxu0 0
        %623 = vmatpush2.bf16.xpose.msra.mxu0 0
        %624 = vmatprep.subr.bf16.mxu0 0
        %625 = vmatpush2.bf16.xpose.msra.mxu0 0
        %626 = vmatprep.subr.bf16.mxu0 0
        %627 = vmatpush2.bf16.xpose.msra.mxu0 0
        %628 = vmatprep.subr.bf16.mxu0 0
        %629 = vmatpush2.bf16.xpose.msra.mxu0 0
        %630 = vmatprep.subr.bf16.mxu0 0
        %631 = vmatpush2.bf16.xpose.msra.mxu0 0
        %632 = vmatprep.subr.bf16.mxu0 0
        %633 = vmatpush2.bf16.xpose.msra.mxu0 0
        %634 = vmatprep.subr.bf16.mxu0 0
        %635 = vmatpush2.bf16.xpose.msra.mxu0 0
        %636 = vmatprep.subr.bf16.mxu0 0
        %637 = vmatpush2.bf16.xpose.msra.mxu0 0
        %638 = vmatprep.mubr.bf16.mxu0 0
        %639 = vmatmul.mubr.bf16.gmra.mxu0 %v580
        %v640 = vpop.f32.mrf.mxu0
        %v641 = vadd.f32 %v429, %v640
        %v642 = vpop.f32.mrf.mxu0
        %v643 = vpop.f32.mrf.mxu0
        %v644 = vpop.f32.mrf.mxu0
        %645 = vdwg.mxu0
        %v662 = vunpack.c.l.b16 %v392
        %v663 = vunpack.c.l.b16 %v393
        %v664 = vunpack.c.l.b16 %v394
        %v665 = vunpack.c.l.b16 %v395
        %v666 = vunpack.c.l.b16 %v396
        %v667 = vunpack.c.l.b16 %v397
        %v668 = vunpack.c.l.b16 %v398
        %v669 = vunpack.c.l.b16 %v399
        %v670 = vunpack.c.l.b16 %v400
        %v671 = vunpack.c.l.b16 %v401
        %v672 = vunpack.c.l.b16 %v402
        %v673 = vunpack.c.l.b16 %v403
        %v674 = vunpack.c.l.b16 %v404
        %v675 = vunpack.c.l.b16 %v405
        %v676 = vunpack.c.l.b16 %v406
        %v677 = vunpack.c.l.b16 %v407
        %v678 = vpack.c.b16 %v663, %v662
        %v679 = vpack.c.b16 %v665, %v664
        %v680 = vpack.c.b16 %v667, %v666
        %v681 = vpack.c.b16 %v669, %v668
        %v682 = vpack.c.b16 %v671, %v670
        %v683 = vpack.c.b16 %v673, %v672
        %v684 = vpack.c.b16 %v675, %v674
        %v685 = vpack.c.b16 %v677, %v676
        %v687 = vsel %vm471, %v358, 0
        %v690 = vsel %vm471, %v678, 0
        %v693 = vsel %vm471, %v679, 0
        %v696 = vsel %vm471, %v680, 0
        %v699 = vsel %vm471, %v681, 0
        %v702 = vsel %vm471, %v682, 0
        %v705 = vsel %vm471, %v683, 0
        %v708 = vsel %vm471, %v684, 0
        %v711 = vsel %vm471, %v685, 0
        %713 = vmatprep.subr.bf16.mxu0 0
        %714 = vmatpush1.bf16.xpose.msra.mxu0 %v711
        %715 = vmatprep.subr.bf16.mxu0 0
        %716 = vmatpush1.bf16.xpose.msra.mxu0 %v708
        %717 = vmatprep.subr.bf16.mxu0 0
        %718 = vmatpush1.bf16.xpose.msra.mxu0 %v705
        %719 = vmatprep.subr.bf16.mxu0 0
        %720 = vmatpush1.bf16.xpose.msra.mxu0 %v702
        %721 = vmatprep.subr.bf16.mxu0 0
        %722 = vmatpush1.bf16.xpose.msra.mxu0 %v699
        %723 = vmatprep.subr.bf16.mxu0 0
        %724 = vmatpush1.bf16.xpose.msra.mxu0 %v696
        %725 = vmatprep.subr.bf16.mxu0 0
        %726 = vmatpush1.bf16.xpose.msra.mxu0 %v693
        %727 = vmatprep.subr.bf16.mxu0 0
        %728 = vmatpush1.bf16.xpose.msra.mxu0 %v690
        %729 = vmatprep.subr.bf16.mxu0 0
        %730 = vmatpush2.bf16.xpose.msra.mxu0 0
        %731 = vmatprep.subr.bf16.mxu0 0
        %732 = vmatpush2.bf16.xpose.msra.mxu0 0
        %733 = vmatprep.subr.bf16.mxu0 0
        %734 = vmatpush2.bf16.xpose.msra.mxu0 0
        %735 = vmatprep.subr.bf16.mxu0 0
        %736 = vmatpush2.bf16.xpose.msra.mxu0 0
        %737 = vmatprep.subr.bf16.mxu0 0
        %738 = vmatpush2.bf16.xpose.msra.mxu0 0
        %739 = vmatprep.subr.bf16.mxu0 0
        %740 = vmatpush2.bf16.xpose.msra.mxu0 0
        %741 = vmatprep.subr.bf16.mxu0 0
        %742 = vmatpush2.bf16.xpose.msra.mxu0 0
        %743 = vmatprep.subr.bf16.mxu0 0
        %744 = vmatpush2.bf16.xpose.msra.mxu0 0
        %745 = vmatprep.mubr.bf16.mxu0 0
        %746 = vmatmul.mubr.bf16.gmra.mxu0 %v687
        %v747 = vpop.f32.mrf.mxu0
        %v748 = vadd.f32 %v429, %v747
        %v749 = vpop.f32.mrf.mxu0
        %v750 = vpop.f32.mrf.mxu0
        %v751 = vpop.f32.mrf.mxu0
        %752 = vdwg.mxu0
        %v769 = vunpack.c.l.b16 %v408
        %v770 = vunpack.c.l.b16 %v409
        %v771 = vunpack.c.l.b16 %v410
        %v772 = vunpack.c.l.b16 %v411
        %v773 = vunpack.c.l.b16 %v412
        %v774 = vunpack.c.l.b16 %v413
        %v775 = vunpack.c.l.b16 %v414
        %v776 = vunpack.c.l.b16 %v415
        %v777 = vunpack.c.l.b16 %v416
        %v778 = vunpack.c.l.b16 %v417
        %v779 = vunpack.c.l.b16 %v418
        %v780 = vunpack.c.l.b16 %v419
        %v781 = vunpack.c.l.b16 %v420
        %v782 = vunpack.c.l.b16 %v421
        %v783 = vunpack.c.l.b16 %v422
        %v784 = vunpack.c.l.b16 %v423
        %v785 = vpack.c.b16 %v770, %v769
        %v786 = vpack.c.b16 %v772, %v771
        %v787 = vpack.c.b16 %v774, %v773
        %v788 = vpack.c.b16 %v776, %v775
        %v789 = vpack.c.b16 %v778, %v777
        %v790 = vpack.c.b16 %v780, %v779
        %v791 = vpack.c.b16 %v782, %v781
        %v792 = vpack.c.b16 %v784, %v783
        %v794 = vsel %vm471, %v359, 0
        %v797 = vsel %vm471, %v785, 0
        %v800 = vsel %vm471, %v786, 0
        %v803 = vsel %vm471, %v787, 0
        %v806 = vsel %vm471, %v788, 0
        %v809 = vsel %vm471, %v789, 0
        %v812 = vsel %vm471, %v790, 0
        %v815 = vsel %vm471, %v791, 0
        %v818 = vsel %vm471, %v792, 0
        %820 = vmatprep.subr.bf16.mxu0 0
        %821 = vmatpush1.bf16.xpose.msra.mxu0 %v818
        %822 = vmatprep.subr.bf16.mxu0 0
        %823 = vmatpush1.bf16.xpose.msra.mxu0 %v815
        %824 = vmatprep.subr.bf16.mxu0 0
        %825 = vmatpush1.bf16.xpose.msra.mxu0 %v812
        %826 = vmatprep.subr.bf16.mxu0 0
        %827 = vmatpush1.bf16.xpose.msra.mxu0 %v809
        %828 = vmatprep.subr.bf16.mxu0 0
        %829 = vmatpush1.bf16.xpose.msra.mxu0 %v806
        %830 = vmatprep.subr.bf16.mxu0 0
        %831 = vmatpush1.bf16.xpose.msra.mxu0 %v803
        %832 = vmatprep.subr.bf16.mxu0 0
        %833 = vmatpush1.bf16.xpose.msra.mxu0 %v800
        %834 = vmatprep.subr.bf16.mxu0 0
        %835 = vmatpush1.bf16.xpose.msra.mxu0 %v797
        %836 = vmatprep.subr.bf16.mxu0 0
        %837 = vmatpush2.bf16.xpose.msra.mxu0 0
        %838 = vmatprep.subr.bf16.mxu0 0
        %839 = vmatpush2.bf16.xpose.msra.mxu0 0
        %840 = vmatprep.subr.bf16.mxu0 0
        %841 = vmatpush2.bf16.xpose.msra.mxu0 0
        %842 = vmatprep.subr.bf16.mxu0 0
        %843 = vmatpush2.bf16.xpose.msra.mxu0 0
        %844 = vmatprep.subr.bf16.mxu0 0
        %845 = vmatpush2.bf16.xpose.msra.mxu0 0
        %846 = vmatprep.subr.bf16.mxu0 0
        %847 = vmatpush2.bf16.xpose.msra.mxu0 0
        %848 = vmatprep.subr.bf16.mxu0 0
        %849 = vmatpush2.bf16.xpose.msra.mxu0 0
        %850 = vmatprep.subr.bf16.mxu0 0
        %851 = vmatpush2.bf16.xpose.msra.mxu0 0
        %852 = vmatprep.mubr.bf16.mxu0 0
        %853 = vmatmul.mubr.bf16.gmra.mxu0 %v794
        %v854 = vpop.f32.mrf.mxu0
        %v855 = vadd.f32 %v429, %v854
        %v856 = vpop.f32.mrf.mxu0
        %v857 = vpop.f32.mrf.mxu0
        %v858 = vpop.f32.mrf.mxu0
        %859 = vdwg.mxu0
        %860 = vmax.xlane.f32.xlu0 %v534
        %v861 = vpop.xlane.xlu0 %860
        %862 = vmax.xlane.f32.xlu0 %v641
        %v863 = vpop.xlane.xlu0 %862
        %864 = vmax.xlane.f32.xlu0 %v748
        %v865 = vpop.xlane.xlu0 %864
        %866 = vmax.xlane.f32.xlu0 %v855
        %v867 = vpop.xlane.xlu0 %866
        %v868 = vsub.f32 %v534, %v861
        %v869 = vsub.f32 %v641, %v863
        %v870 = vsub.f32 %v748, %v865
        %v871 = vsub.f32 %v855, %v867
        %v872 = vmul.f32 %v868, 1.442695
        %v873 = vpow.pop %v872
        %v874 = vmul.f32 %v869, 1.442695
        %v875 = vpow.pop %v874
        %v876 = vmul.f32 %v870, 1.442695
        %v877 = vpow.pop %v876
        %v878 = vmul.f32 %v871, 1.442695
        %v879 = vpow.pop %v878
        %880 = vadd.xlane.f32.xlu0 %v873
        %v881 = vpop.xlane.xlu0 %880
        %882 = vadd.xlane.f32.xlu0 %v875
        %v883 = vpop.xlane.xlu0 %882
        %884 = vadd.xlane.f32.xlu0 %v877
        %v885 = vpop.xlane.xlu0 %884
        %886 = vadd.xlane.f32.xlu0 %v879
        %v887 = vpop.xlane.xlu0 %886
        %v888 = vrcp.pop %v881
        %v889 = vrcp.pop %v883
        %v890 = vrcp.pop %v885
        %v891 = vrcp.pop %v887
        %v892 = vmul.f32 %v873, %v888
        %v893 = vmul.f32 %v875, %v889
        %v894 = vmul.f32 %v877, %v890
        %v895 = vmul.f32 %v879, %v891
        %v896 = vadd.f32 %v892, %v893
        %v897 = vadd.f32 %v896, %v894
        %v898 = vadd.f32 %v897, %v895
        %v899 = vmul.f32 %v898, 0.25
        %900 = vst [vmem:[%s336] sm:$0xff] %v899
        %v901 = vpack.c.bf16 %v892, %v892
        %v902 = vpack.c.bf16 %v893, %v893
        %v903 = vpack.c.bf16 %v894, %v894
        %v904 = vpack.c.bf16 %v895, %v895
        %v905 = vld [vmem:[%s354] sm:$0xf]
        %v906 = vld [vmem:[%s354 + $0x4] sm:$0xf]
        %v907 = vld [vmem:[%s354 + $0x8] sm:$0xf]
        %v908 = vld [vmem:[%s354 + $0xc] sm:$0xf]
        %v909 = vld [vmem:[%s354 + $0x10] sm:$0xf]
        %v910 = vld [vmem:[%s354 + $0x14] sm:$0xf]
        %v911 = vld [vmem:[%s354 + $0x18] sm:$0xf]
        %v912 = vld [vmem:[%s354 + $0x1c] sm:$0xf]
        %v913 = vld [vmem:[%s354 + $0x20] sm:$0xf]
        %v914 = vld [vmem:[%s354 + $0x24] sm:$0xf]
        %v915 = vld [vmem:[%s354 + $0x28] sm:$0xf]
        %v916 = vld [vmem:[%s354 + $0x2c] sm:$0xf]
        %v917 = vld [vmem:[%s354 + $0x30] sm:$0xf]
        %v918 = vld [vmem:[%s354 + $0x34] sm:$0xf]
        %v919 = vld [vmem:[%s354 + $0x38] sm:$0xf]
        %v920 = vld [vmem:[%s354 + $0x3c] sm:$0xf]
        %v921 = vld [vmem:[%s354 + $0x40] sm:$0xf]
        %v922 = vld [vmem:[%s354 + $0x44] sm:$0xf]
        %v923 = vld [vmem:[%s354 + $0x48] sm:$0xf]
        %v924 = vld [vmem:[%s354 + $0x4c] sm:$0xf]
        %v925 = vld [vmem:[%s354 + $0x50] sm:$0xf]
        %v926 = vld [vmem:[%s354 + $0x54] sm:$0xf]
        %v927 = vld [vmem:[%s354 + $0x58] sm:$0xf]
        %v928 = vld [vmem:[%s354 + $0x5c] sm:$0xf]
        %v929 = vld [vmem:[%s354 + $0x60] sm:$0xf]
        %v930 = vld [vmem:[%s354 + $0x64] sm:$0xf]
        %v931 = vld [vmem:[%s354 + $0x68] sm:$0xf]
        %v932 = vld [vmem:[%s354 + $0x6c] sm:$0xf]
        %v933 = vld [vmem:[%s354 + $0x70] sm:$0xf]
        %v934 = vld [vmem:[%s354 + $0x74] sm:$0xf]
        %v935 = vld [vmem:[%s354 + $0x78] sm:$0xf]
        %v936 = vld [vmem:[%s354 + $0x7c] sm:$0xf]
        %v937 = vld [vmem:[%s354 + $0x80] sm:$0xf]
        %v938 = vld [vmem:[%s354 + $0x84] sm:$0xf]
        %v939 = vld [vmem:[%s354 + $0x88] sm:$0xf]
        %v940 = vld [vmem:[%s354 + $0x8c] sm:$0xf]
        %v941 = vld [vmem:[%s354 + $0x90] sm:$0xf]
        %v942 = vld [vmem:[%s354 + $0x94] sm:$0xf]
        %v943 = vld [vmem:[%s354 + $0x98] sm:$0xf]
        %v944 = vld [vmem:[%s354 + $0x9c] sm:$0xf]
        %v945 = vld [vmem:[%s354 + $0xa0] sm:$0xf]
        %v946 = vld [vmem:[%s354 + $0xa4] sm:$0xf]
        %v947 = vld [vmem:[%s354 + $0xa8] sm:$0xf]
        %v948 = vld [vmem:[%s354 + $0xac] sm:$0xf]
        %v949 = vld [vmem:[%s354 + $0xb0] sm:$0xf]
        %v950 = vld [vmem:[%s354 + $0xb4] sm:$0xf]
        %v951 = vld [vmem:[%s354 + $0xb8] sm:$0xf]
        %v952 = vld [vmem:[%s354 + $0xbc] sm:$0xf]
        %v953 = vld [vmem:[%s354 + $0xc0] sm:$0xf]
        %v954 = vld [vmem:[%s354 + $0xc4] sm:$0xf]
        %v955 = vld [vmem:[%s354 + $0xc8] sm:$0xf]
        %v956 = vld [vmem:[%s354 + $0xcc] sm:$0xf]
        %v957 = vld [vmem:[%s354 + $0xd0] sm:$0xf]
        %v958 = vld [vmem:[%s354 + $0xd4] sm:$0xf]
        %v959 = vld [vmem:[%s354 + $0xd8] sm:$0xf]
        %v960 = vld [vmem:[%s354 + $0xdc] sm:$0xf]
        %v961 = vld [vmem:[%s354 + $0xe0] sm:$0xf]
        %v962 = vld [vmem:[%s354 + $0xe4] sm:$0xf]
        %v963 = vld [vmem:[%s354 + $0xe8] sm:$0xf]
        %v964 = vld [vmem:[%s354 + $0xec] sm:$0xf]
        %v965 = vld [vmem:[%s354 + $0xf0] sm:$0xf]
        %v966 = vld [vmem:[%s354 + $0xf4] sm:$0xf]
        %v967 = vld [vmem:[%s354 + $0xf8] sm:$0xf]
        %v968 = vld [vmem:[%s354 + $0xfc] sm:$0xf]
        %v985 = vunpack.c.l.b16 %v905
        %v986 = vunpack.c.l.b16 %v906
        %v987 = vunpack.c.l.b16 %v907
        %v988 = vunpack.c.l.b16 %v908
        %v989 = vunpack.c.l.b16 %v909
        %v990 = vunpack.c.l.b16 %v910
        %v991 = vunpack.c.l.b16 %v911
        %v992 = vunpack.c.l.b16 %v912
        %v993 = vunpack.c.l.b16 %v913
        %v994 = vunpack.c.l.b16 %v914
        %v995 = vunpack.c.l.b16 %v915
        %v996 = vunpack.c.l.b16 %v916
        %v997 = vunpack.c.l.b16 %v917
        %v998 = vunpack.c.l.b16 %v918
        %v999 = vunpack.c.l.b16 %v919
        %v1000 = vunpack.c.l.b16 %v920
        %v1001 = vpack.c.b16 %v986, %v985
        %v1002 = vpack.c.b16 %v988, %v987
        %v1003 = vpack.c.b16 %v990, %v989
        %v1004 = vpack.c.b16 %v992, %v991
        %v1005 = vpack.c.b16 %v994, %v993
        %v1006 = vpack.c.b16 %v996, %v995
        %v1007 = vpack.c.b16 %v998, %v997
        %v1008 = vpack.c.b16 %v1000, %v999
        %1017 = vmatprep.subr.bf16.mxu0 0
        %1018 = vmatpush1.bf16.msra.mxu0 %v1008
        %1019 = vmatprep.subr.bf16.mxu0 0
        %1020 = vmatpush1.bf16.msra.mxu0 %v1007
        %1021 = vmatprep.subr.bf16.mxu0 0
        %1022 = vmatpush1.bf16.msra.mxu0 %v1006
        %1023 = vmatprep.subr.bf16.mxu0 0
        %1024 = vmatpush1.bf16.msra.mxu0 %v1005
        %1025 = vmatprep.subr.bf16.mxu0 0
        %1026 = vmatpush1.bf16.msra.mxu0 %v1004
        %1027 = vmatprep.subr.bf16.mxu0 0
        %1028 = vmatpush1.bf16.msra.mxu0 %v1003
        %1029 = vmatprep.subr.bf16.mxu0 0
        %1030 = vmatpush1.bf16.msra.mxu0 %v1002
        %1031 = vmatprep.subr.bf16.mxu0 0
        %1032 = vmatpush1.bf16.msra.mxu0 %v1001
        %1033 = vmatprep.subr.bf16.mxu0 0
        %1034 = vmatpush2.bf16.msra.mxu0 0
        %1035 = vmatprep.subr.bf16.mxu0 0
        %1036 = vmatpush2.bf16.msra.mxu0 0
        %1037 = vmatprep.subr.bf16.mxu0 0
        %1038 = vmatpush2.bf16.msra.mxu0 0
        %1039 = vmatprep.subr.bf16.mxu0 0
        %1040 = vmatpush2.bf16.msra.mxu0 0
        %1041 = vmatprep.subr.bf16.mxu0 0
        %1042 = vmatpush2.bf16.msra.mxu0 0
        %1043 = vmatprep.subr.bf16.mxu0 0
        %1044 = vmatpush2.bf16.msra.mxu0 0
        %1045 = vmatprep.subr.bf16.mxu0 0
        %1046 = vmatpush2.bf16.msra.mxu0 0
        %1047 = vmatprep.subr.bf16.mxu0 0
        %1048 = vmatpush2.bf16.msra.mxu0 0
        %1049 = vmatprep.mubr.bf16.mxu0 0
        %1050 = vmatmul.mubr.bf16.gmra.mxu0 %v901
        %v1051 = vpop.f32.mrf.mxu0
        %v1052 = vadd.f32 0.0, %v1051
        %v1053 = vpop.f32.mrf.mxu0
        %v1054 = vpop.f32.mrf.mxu0
        %v1055 = vpop.f32.mrf.mxu0
        %1056 = vdwg.mxu0
        %v1073 = vunpack.c.l.b16 %v921
        %v1074 = vunpack.c.l.b16 %v922
        %v1075 = vunpack.c.l.b16 %v923
        %v1076 = vunpack.c.l.b16 %v924
        %v1077 = vunpack.c.l.b16 %v925
        %v1078 = vunpack.c.l.b16 %v926
        %v1079 = vunpack.c.l.b16 %v927
        %v1080 = vunpack.c.l.b16 %v928
        %v1081 = vunpack.c.l.b16 %v929
        %v1082 = vunpack.c.l.b16 %v930
        %v1083 = vunpack.c.l.b16 %v931
        %v1084 = vunpack.c.l.b16 %v932
        %v1085 = vunpack.c.l.b16 %v933
        %v1086 = vunpack.c.l.b16 %v934
        %v1087 = vunpack.c.l.b16 %v935
        %v1088 = vunpack.c.l.b16 %v936
        %v1089 = vpack.c.b16 %v1074, %v1073
        %v1090 = vpack.c.b16 %v1076, %v1075
        %v1091 = vpack.c.b16 %v1078, %v1077
        %v1092 = vpack.c.b16 %v1080, %v1079
        %v1093 = vpack.c.b16 %v1082, %v1081
        %v1094 = vpack.c.b16 %v1084, %v1083
        %v1095 = vpack.c.b16 %v1086, %v1085
        %v1096 = vpack.c.b16 %v1088, %v1087
        %1105 = vmatprep.subr.bf16.mxu0 0
        %1106 = vmatpush1.bf16.msra.mxu0 %v1096
        %1107 = vmatprep.subr.bf16.mxu0 0
        %1108 = vmatpush1.bf16.msra.mxu0 %v1095
        %1109 = vmatprep.subr.bf16.mxu0 0
        %1110 = vmatpush1.bf16.msra.mxu0 %v1094
        %1111 = vmatprep.subr.bf16.mxu0 0
        %1112 = vmatpush1.bf16.msra.mxu0 %v1093
        %1113 = vmatprep.subr.bf16.mxu0 0
        %1114 = vmatpush1.bf16.msra.mxu0 %v1092
        %1115 = vmatprep.subr.bf16.mxu0 0
        %1116 = vmatpush1.bf16.msra.mxu0 %v1091
        %1117 = vmatprep.subr.bf16.mxu0 0
        %1118 = vmatpush1.bf16.msra.mxu0 %v1090
        %1119 = vmatprep.subr.bf16.mxu0 0
        %1120 = vmatpush1.bf16.msra.mxu0 %v1089
        %1121 = vmatprep.subr.bf16.mxu0 0
        %1122 = vmatpush2.bf16.msra.mxu0 0
        %1123 = vmatprep.subr.bf16.mxu0 0
        %1124 = vmatpush2.bf16.msra.mxu0 0
        %1125 = vmatprep.subr.bf16.mxu0 0
        %1126 = vmatpush2.bf16.msra.mxu0 0
        %1127 = vmatprep.subr.bf16.mxu0 0
        %1128 = vmatpush2.bf16.msra.mxu0 0
        %1129 = vmatprep.subr.bf16.mxu0 0
        %1130 = vmatpush2.bf16.msra.mxu0 0
        %1131 = vmatprep.subr.bf16.mxu0 0
        %1132 = vmatpush2.bf16.msra.mxu0 0
        %1133 = vmatprep.subr.bf16.mxu0 0
        %1134 = vmatpush2.bf16.msra.mxu0 0
        %1135 = vmatprep.subr.bf16.mxu0 0
        %1136 = vmatpush2.bf16.msra.mxu0 0
        %1137 = vmatprep.mubr.bf16.mxu0 0
        %1138 = vmatmul.mubr.bf16.gmra.mxu0 %v902
        %v1139 = vpop.f32.mrf.mxu0
        %v1140 = vadd.f32 0.0, %v1139
        %v1141 = vpop.f32.mrf.mxu0
        %v1142 = vpop.f32.mrf.mxu0
        %v1143 = vpop.f32.mrf.mxu0
        %1144 = vdwg.mxu0
        %v1161 = vunpack.c.l.b16 %v937
        %v1162 = vunpack.c.l.b16 %v938
        %v1163 = vunpack.c.l.b16 %v939
        %v1164 = vunpack.c.l.b16 %v940
        %v1165 = vunpack.c.l.b16 %v941
        %v1166 = vunpack.c.l.b16 %v942
        %v1167 = vunpack.c.l.b16 %v943
        %v1168 = vunpack.c.l.b16 %v944
        %v1169 = vunpack.c.l.b16 %v945
        %v1170 = vunpack.c.l.b16 %v946
        %v1171 = vunpack.c.l.b16 %v947
        %v1172 = vunpack.c.l.b16 %v948
        %v1173 = vunpack.c.l.b16 %v949
        %v1174 = vunpack.c.l.b16 %v950
        %v1175 = vunpack.c.l.b16 %v951
        %v1176 = vunpack.c.l.b16 %v952
        %v1177 = vpack.c.b16 %v1162, %v1161
        %v1178 = vpack.c.b16 %v1164, %v1163
        %v1179 = vpack.c.b16 %v1166, %v1165
        %v1180 = vpack.c.b16 %v1168, %v1167
        %v1181 = vpack.c.b16 %v1170, %v1169
        %v1182 = vpack.c.b16 %v1172, %v1171
        %v1183 = vpack.c.b16 %v1174, %v1173
        %v1184 = vpack.c.b16 %v1176, %v1175
        %1193 = vmatprep.subr.bf16.mxu0 0
        %1194 = vmatpush1.bf16.msra.mxu0 %v1184
        %1195 = vmatprep.subr.bf16.mxu0 0
        %1196 = vmatpush1.bf16.msra.mxu0 %v1183
        %1197 = vmatprep.subr.bf16.mxu0 0
        %1198 = vmatpush1.bf16.msra.mxu0 %v1182
        %1199 = vmatprep.subr.bf16.mxu0 0
        %1200 = vmatpush1.bf16.msra.mxu0 %v1181
        %1201 = vmatprep.subr.bf16.mxu0 0
        %1202 = vmatpush1.bf16.msra.mxu0 %v1180
        %1203 = vmatprep.subr.bf16.mxu0 0
        %1204 = vmatpush1.bf16.msra.mxu0 %v1179
        %1205 = vmatprep.subr.bf16.mxu0 0
        %1206 = vmatpush1.bf16.msra.mxu0 %v1178
        %1207 = vmatprep.subr.bf16.mxu0 0
        %1208 = vmatpush1.bf16.msra.mxu0 %v1177
        %1209 = vmatprep.subr.bf16.mxu0 0
        %1210 = vmatpush2.bf16.msra.mxu0 0
        %1211 = vmatprep.subr.bf16.mxu0 0
        %1212 = vmatpush2.bf16.msra.mxu0 0
        %1213 = vmatprep.subr.bf16.mxu0 0
        %1214 = vmatpush2.bf16.msra.mxu0 0
        %1215 = vmatprep.subr.bf16.mxu0 0
        %1216 = vmatpush2.bf16.msra.mxu0 0
        %1217 = vmatprep.subr.bf16.mxu0 0
        %1218 = vmatpush2.bf16.msra.mxu0 0
        %1219 = vmatprep.subr.bf16.mxu0 0
        %1220 = vmatpush2.bf16.msra.mxu0 0
        %1221 = vmatprep.subr.bf16.mxu0 0
        %1222 = vmatpush2.bf16.msra.mxu0 0
        %1223 = vmatprep.subr.bf16.mxu0 0
        %1224 = vmatpush2.bf16.msra.mxu0 0
        %1225 = vmatprep.mubr.bf16.mxu0 0
        %1226 = vmatmul.mubr.bf16.gmra.mxu0 %v903
        %v1227 = vpop.f32.mrf.mxu0
        %v1228 = vadd.f32 0.0, %v1227
        %v1229 = vpop.f32.mrf.mxu0
        %v1230 = vpop.f32.mrf.mxu0
        %v1231 = vpop.f32.mrf.mxu0
        %1232 = vdwg.mxu0
        %v1249 = vunpack.c.l.b16 %v953
        %v1250 = vunpack.c.l.b16 %v954
        %v1251 = vunpack.c.l.b16 %v955
        %v1252 = vunpack.c.l.b16 %v956
        %v1253 = vunpack.c.l.b16 %v957
        %v1254 = vunpack.c.l.b16 %v958
        %v1255 = vunpack.c.l.b16 %v959
        %v1256 = vunpack.c.l.b16 %v960
        %v1257 = vunpack.c.l.b16 %v961
        %v1258 = vunpack.c.l.b16 %v962
        %v1259 = vunpack.c.l.b16 %v963
        %v1260 = vunpack.c.l.b16 %v964
        %v1261 = vunpack.c.l.b16 %v965
        %v1262 = vunpack.c.l.b16 %v966
        %v1263 = vunpack.c.l.b16 %v967
        %v1264 = vunpack.c.l.b16 %v968
        %v1265 = vpack.c.b16 %v1250, %v1249
        %v1266 = vpack.c.b16 %v1252, %v1251
        %v1267 = vpack.c.b16 %v1254, %v1253
        %v1268 = vpack.c.b16 %v1256, %v1255
        %v1269 = vpack.c.b16 %v1258, %v1257
        %v1270 = vpack.c.b16 %v1260, %v1259
        %v1271 = vpack.c.b16 %v1262, %v1261
        %v1272 = vpack.c.b16 %v1264, %v1263
        %1281 = vmatprep.subr.bf16.mxu0 0
        %1282 = vmatpush1.bf16.msra.mxu0 %v1272
        %1283 = vmatprep.subr.bf16.mxu0 0
        %1284 = vmatpush1.bf16.msra.mxu0 %v1271
        %1285 = vmatprep.subr.bf16.mxu0 0
        %1286 = vmatpush1.bf16.msra.mxu0 %v1270
        %1287 = vmatprep.subr.bf16.mxu0 0
        %1288 = vmatpush1.bf16.msra.mxu0 %v1269
        %1289 = vmatprep.subr.bf16.mxu0 0
        %1290 = vmatpush1.bf16.msra.mxu0 %v1268
        %1291 = vmatprep.subr.bf16.mxu0 0
        %1292 = vmatpush1.bf16.msra.mxu0 %v1267
        %1293 = vmatprep.subr.bf16.mxu0 0
        %1294 = vmatpush1.bf16.msra.mxu0 %v1266
        %1295 = vmatprep.subr.bf16.mxu0 0
        %1296 = vmatpush1.bf16.msra.mxu0 %v1265
        %1297 = vmatprep.subr.bf16.mxu0 0
        %1298 = vmatpush2.bf16.msra.mxu0 0
        %1299 = vmatprep.subr.bf16.mxu0 0
        %1300 = vmatpush2.bf16.msra.mxu0 0
        %1301 = vmatprep.subr.bf16.mxu0 0
        %1302 = vmatpush2.bf16.msra.mxu0 0
        %1303 = vmatprep.subr.bf16.mxu0 0
        %1304 = vmatpush2.bf16.msra.mxu0 0
        %1305 = vmatprep.subr.bf16.mxu0 0
        %1306 = vmatpush2.bf16.msra.mxu0 0
        %1307 = vmatprep.subr.bf16.mxu0 0
        %1308 = vmatpush2.bf16.msra.mxu0 0
        %1309 = vmatprep.subr.bf16.mxu0 0
        %1310 = vmatpush2.bf16.msra.mxu0 0
        %1311 = vmatprep.subr.bf16.mxu0 0
        %1312 = vmatpush2.bf16.msra.mxu0 0
        %1313 = vmatprep.mubr.bf16.mxu0 0
        %1314 = vmatmul.mubr.bf16.gmra.mxu0 %v904
        %v1315 = vpop.f32.mrf.mxu0
        %v1316 = vadd.f32 0.0, %v1315
        %v1317 = vpop.f32.mrf.mxu0
        %v1318 = vpop.f32.mrf.mxu0
        %v1319 = vpop.f32.mrf.mxu0
        %1320 = vdwg.mxu0
        %v1321 = vpack.c.bf16 %v1052, %v1052
        %v1322 = vpack.c.bf16 %v1140, %v1140
        %v1323 = vpack.c.bf16 %v1228, %v1228
        %v1324 = vpack.c.bf16 %v1316, %v1316
        %v1325 = vld [vmem:[%s4] sm:$0xf]
        %v1326 = vld [vmem:[%s4 + $0x4] sm:$0xf]
        %v1327 = vld [vmem:[%s4 + $0x8] sm:$0xf]
        %v1328 = vld [vmem:[%s4 + $0xc] sm:$0xf]
        %v1330 = vsel %vm471, %v1321, 0
        %vm1332 = vcmask 1043456
        %v1334 = vsel %vm1332, %v1325, 0
        %1336 = vmatprep.subr.bf16.mxu0 0
        %1337 = vmatpush1.bf16.msra.mxu0 0
        %1338 = vmatprep.subr.bf16.mxu0 0
        %1339 = vmatpush1.bf16.msra.mxu0 0
        %1340 = vmatprep.subr.bf16.mxu0 0
        %1341 = vmatpush1.bf16.msra.mxu0 0
        %1342 = vmatprep.subr.bf16.mxu0 0
        %1343 = vmatpush1.bf16.msra.mxu0 0
        %1344 = vmatprep.subr.bf16.mxu0 0
        %1345 = vmatpush1.bf16.msra.mxu0 0
        %1346 = vmatprep.subr.bf16.mxu0 0
        %1347 = vmatpush1.bf16.msra.mxu0 0
        %1348 = vmatprep.subr.bf16.mxu0 0
        %1349 = vmatpush1.bf16.msra.mxu0 0
        %1350 = vmatprep.subr.bf16.mxu0 0
        %1351 = vmatpush1.bf16.msra.mxu0 %v1334
        %1352 = vmatprep.subr.bf16.mxu0 0
        %1353 = vmatpush2.bf16.msra.mxu0 0
        %1354 = vmatprep.subr.bf16.mxu0 0
        %1355 = vmatpush2.bf16.msra.mxu0 0
        %1356 = vmatprep.subr.bf16.mxu0 0
        %1357 = vmatpush2.bf16.msra.mxu0 0
        %1358 = vmatprep.subr.bf16.mxu0 0
        %1359 = vmatpush2.bf16.msra.mxu0 0
        %1360 = vmatprep.subr.bf16.mxu0 0
        %1361 = vmatpush2.bf16.msra.mxu0 0
        %1362 = vmatprep.subr.bf16.mxu0 0
        %1363 = vmatpush2.bf16.msra.mxu0 0
        %1364 = vmatprep.subr.bf16.mxu0 0
        %1365 = vmatpush2.bf16.msra.mxu0 0
        %1366 = vmatprep.subr.bf16.mxu0 0
        %1367 = vmatpush2.bf16.msra.mxu0 0
        %1368 = vmatprep.mubr.bf16.mxu0 0
        %1369 = vmatmul.mubr.bf16.gmra.mxu0 %v1330
        %v1370 = vpop.f32.mrf.mxu0
        %v1371 = vadd.f32 0.0, %v1370
        %v1372 = vpop.f32.mrf.mxu0
        %v1373 = vpop.f32.mrf.mxu0
        %v1374 = vpop.f32.mrf.mxu0
        %1375 = vdwg.mxu0
        %v1377 = vsel %vm471, %v1322, 0
        %v1380 = vsel %vm1332, %v1326, 0
        %1382 = vmatprep.subr.bf16.mxu0 0
        %1383 = vmatpush1.bf16.msra.mxu0 0
        %1384 = vmatprep.subr.bf16.mxu0 0
        %1385 = vmatpush1.bf16.msra.mxu0 0
        %1386 = vmatprep.subr.bf16.mxu0 0
        %1387 = vmatpush1.bf16.msra.mxu0 0
        %1388 = vmatprep.subr.bf16.mxu0 0
        %1389 = vmatpush1.bf16.msra.mxu0 0
        %1390 = vmatprep.subr.bf16.mxu0 0
        %1391 = vmatpush1.bf16.msra.mxu0 0
        %1392 = vmatprep.subr.bf16.mxu0 0
        %1393 = vmatpush1.bf16.msra.mxu0 0
        %1394 = vmatprep.subr.bf16.mxu0 0
        %1395 = vmatpush1.bf16.msra.mxu0 0
        %1396 = vmatprep.subr.bf16.mxu0 0
        %1397 = vmatpush1.bf16.msra.mxu0 %v1380
        %1398 = vmatprep.subr.bf16.mxu0 0
        %1399 = vmatpush2.bf16.msra.mxu0 0
        %1400 = vmatprep.subr.bf16.mxu0 0
        %1401 = vmatpush2.bf16.msra.mxu0 0
        %1402 = vmatprep.subr.bf16.mxu0 0
        %1403 = vmatpush2.bf16.msra.mxu0 0
        %1404 = vmatprep.subr.bf16.mxu0 0
        %1405 = vmatpush2.bf16.msra.mxu0 0
        %1406 = vmatprep.subr.bf16.mxu0 0
        %1407 = vmatpush2.bf16.msra.mxu0 0
        %1408 = vmatprep.subr.bf16.mxu0 0
        %1409 = vmatpush2.bf16.msra.mxu0 0
        %1410 = vmatprep.subr.bf16.mxu0 0
        %1411 = vmatpush2.bf16.msra.mxu0 0
        %1412 = vmatprep.subr.bf16.mxu0 0
        %1413 = vmatpush2.bf16.msra.mxu0 0
        %1414 = vmatprep.mubr.bf16.mxu0 0
        %1415 = vmatmul.mubr.bf16.gmra.mxu0 %v1377
        %v1416 = vpop.f32.mrf.mxu0
        %v1417 = vadd.f32 0.0, %v1416
        %v1418 = vpop.f32.mrf.mxu0
        %v1419 = vpop.f32.mrf.mxu0
        %v1420 = vpop.f32.mrf.mxu0
        %1421 = vdwg.mxu0
        %v1423 = vsel %vm471, %v1323, 0
        %v1426 = vsel %vm1332, %v1327, 0
        %1428 = vmatprep.subr.bf16.mxu0 0
        %1429 = vmatpush1.bf16.msra.mxu0 0
        %1430 = vmatprep.subr.bf16.mxu0 0
        %1431 = vmatpush1.bf16.msra.mxu0 0
        %1432 = vmatprep.subr.bf16.mxu0 0
        %1433 = vmatpush1.bf16.msra.mxu0 0
        %1434 = vmatprep.subr.bf16.mxu0 0
        %1435 = vmatpush1.bf16.msra.mxu0 0
        %1436 = vmatprep.subr.bf16.mxu0 0
        %1437 = vmatpush1.bf16.msra.mxu0 0
        %1438 = vmatprep.subr.bf16.mxu0 0
        %1439 = vmatpush1.bf16.msra.mxu0 0
        %1440 = vmatprep.subr.bf16.mxu0 0
        %1441 = vmatpush1.bf16.msra.mxu0 0
        %1442 = vmatprep.subr.bf16.mxu0 0
        %1443 = vmatpush1.bf16.msra.mxu0 %v1426
        %1444 = vmatprep.subr.bf16.mxu0 0
        %1445 = vmatpush2.bf16.msra.mxu0 0
        %1446 = vmatprep.subr.bf16.mxu0 0
        %1447 = vmatpush2.bf16.msra.mxu0 0
        %1448 = vmatprep.subr.bf16.mxu0 0
        %1449 = vmatpush2.bf16.msra.mxu0 0
        %1450 = vmatprep.subr.bf16.mxu0 0
        %1451 = vmatpush2.bf16.msra.mxu0 0
        %1452 = vmatprep.subr.bf16.mxu0 0
        %1453 = vmatpush2.bf16.msra.mxu0 0
        %1454 = vmatprep.subr.bf16.mxu0 0
        %1455 = vmatpush2.bf16.msra.mxu0 0
        %1456 = vmatprep.subr.bf16.mxu0 0
        %1457 = vmatpush2.bf16.msra.mxu0 0
        %1458 = vmatprep.subr.bf16.mxu0 0
        %1459 = vmatpush2.bf16.msra.mxu0 0
        %1460 = vmatprep.mubr.bf16.mxu0 0
        %1461 = vmatmul.mubr.bf16.gmra.mxu0 %v1423
        %v1462 = vpop.f32.mrf.mxu0
        %v1463 = vadd.f32 0.0, %v1462
        %v1464 = vpop.f32.mrf.mxu0
        %v1465 = vpop.f32.mrf.mxu0
        %v1466 = vpop.f32.mrf.mxu0
        %1467 = vdwg.mxu0
        %v1469 = vsel %vm471, %v1324, 0
        %v1472 = vsel %vm1332, %v1328, 0
        %1474 = vmatprep.subr.bf16.mxu0 0
        %1475 = vmatpush1.bf16.msra.mxu0 0
        %1476 = vmatprep.subr.bf16.mxu0 0
        %1477 = vmatpush1.bf16.msra.mxu0 0
        %1478 = vmatprep.subr.bf16.mxu0 0
        %1479 = vmatpush1.bf16.msra.mxu0 0
        %1480 = vmatprep.subr.bf16.mxu0 0
        %1481 = vmatpush1.bf16.msra.mxu0 0
        %1482 = vmatprep.subr.bf16.mxu0 0
        %1483 = vmatpush1.bf16.msra.mxu0 0
        %1484 = vmatprep.subr.bf16.mxu0 0
        %1485 = vmatpush1.bf16.msra.mxu0 0
        %1486 = vmatprep.subr.bf16.mxu0 0
        %1487 = vmatpush1.bf16.msra.mxu0 0
        %1488 = vmatprep.subr.bf16.mxu0 0
        %1489 = vmatpush1.bf16.msra.mxu0 %v1472
        %1490 = vmatprep.subr.bf16.mxu0 0
        %1491 = vmatpush2.bf16.msra.mxu0 0
        %1492 = vmatprep.subr.bf16.mxu0 0
        %1493 = vmatpush2.bf16.msra.mxu0 0
        %1494 = vmatprep.subr.bf16.mxu0 0
        %1495 = vmatpush2.bf16.msra.mxu0 0
        %1496 = vmatprep.subr.bf16.mxu0 0
        %1497 = vmatpush2.bf16.msra.mxu0 0
        %1498 = vmatprep.subr.bf16.mxu0 0
        %1499 = vmatpush2.bf16.msra.mxu0 0
        %1500 = vmatprep.subr.bf16.mxu0 0
        %1501 = vmatpush2.bf16.msra.mxu0 0
        %1502 = vmatprep.subr.bf16.mxu0 0
        %1503 = vmatpush2.bf16.msra.mxu0 0
        %1504 = vmatprep.subr.bf16.mxu0 0
        %1505 = vmatpush2.bf16.msra.mxu0 0
        %1506 = vmatprep.mubr.bf16.mxu0 0
        %1507 = vmatmul.mubr.bf16.gmra.mxu0 %v1469
        %v1508 = vpop.f32.mrf.mxu0
        %v1509 = vadd.f32 0.0, %v1508
        %v1510 = vpop.f32.mrf.mxu0
        %v1511 = vpop.f32.mrf.mxu0
        %v1512 = vpop.f32.mrf.mxu0
        %1513 = vdwg.mxu0
        %vm1514 = vcmask 261120
        %v1515 = vsel %vm1514, %v1371, 0.0
        %v1516 = vsel %vm1514, %v1417, 0.0
        %v1517 = vadd.f32 %v1515, %v1516
        %v1518 = vsel %vm1514, %v1463, 0.0
        %v1519 = vadd.f32 %v1517, %v1518
        %v1520 = vsel %vm1514, %v1509, 0.0
        %v1521 = vadd.f32 %v1519, %v1520
        %v1522 = vld [vmem:[%s5] sm:$0x1]
        %v1524 = vlaneseq
        %v1525 = vshrl.u32 %v1524, 7
        %v1526 = vsub.s32 0, %v1525
        %v1527 = vrot.slane %v1522, %v1526
        %v1529 = vadd.f32 %v1521, %v1527
        %1530 = vst.msk [vmem:[%s329] sm:$0xff] %vm1514, %v1529
        %s1531 = sand.u32 %s190, 1
        %s1532 = scalar_lea.sflag [#allocation3], %s1531
        %s1533 = sand.u32 %s190, 1
        %s1534 = smul.addr %s1533, 8
        %s1535 = scalar_lea.vmem [#allocation2], %s1534
        %s1536 = sand.u32 %s218, 1
        %s1537 = scalar_lea.sflag [#allocation5], %s1536
        %s1538 = sand.u32 %s218, 1
        %s1539 = smul.addr %s1538, 8
        %s1540 = scalar_lea.vmem [#allocation4], %s1539
        // Predicated region
        $region45: #{tpu_custom_call.1} parent=43 // pred_check
          %p1541 = pneg %p200
        $region46: #{tpu_custom_call.1} parent=43 // pred_check_branch
          %1543 = sbr.rel (%p1541) target = $region48
        $region47: #{tpu_custom_call.1} parent=43 // pred_region
          %s1545 = ssub.s32 128, 128
          %1546 = vsyncadd %s1532, %s1545
          %s1547 = sadd.s32 %s30, %s29
          %s1548 = smul.addr %s1547, 128
          %s1549 = scalar_lea.hbm %s6, %s1548
          %s1551 = sshll.u32 %s1535, 4
          %s1552 = int_to_ptr.vmem [resolvable:$true] %s1551
          %1554 = dma.vmem_to_hbm [thread:$0]  %s1552, 128, %s1549, %s1532
        $region48: #{tpu_custom_call.1} parent=43 // pred_fallthru
          _
        // Predicated region
        $region49: #{tpu_custom_call.1} parent=43 // pred_check
          %p1555 = pneg %p228
        $region50: #{tpu_custom_call.1} parent=43 // pred_check_branch
          %1557 = sbr.rel (%p1555) target = $region52
        $region51: #{tpu_custom_call.1} parent=43 // pred_region
          %s1559 = ssub.s32 128, 128
          %1560 = vsyncadd %s1537, %s1559
          %s1561 = sadd.s32 %s30, %s29
          %s1562 = smul.addr %s1561, 128
          %s1563 = scalar_lea.hbm %s7, %s1562
          %s1565 = sshll.u32 %s1540, 4
          %s1566 = int_to_ptr.vmem [resolvable:$true] %s1565
          %1568 = dma.vmem_to_hbm [thread:$0]  %s1566, 128, %s1563, %s1537
        $region52: #{tpu_custom_call.1} parent=43 // pred_fallthru
          _
      $region44: #{tpu_custom_call.1} parent=5 // pred_fallthru
        _
      %p1569 = scmp.le.s32.totalorder 2, %s20
      // Predicated region
      $region53: #{tpu_custom_call.1} parent=5 // pred_check
        %p1570 = pneg %p1569
      $region54: #{tpu_custom_call.1} parent=5 // pred_check_branch
        %1572 = sbr.rel (%p1570) target = $region56
      $region55: #{tpu_custom_call.1} parent=5 // pred_region
        %s1573 = ssub.s32 %s20, 2
        // Predicated region
        $region57: #{tpu_custom_call.1} parent=55 // pred_check
          %p1574 = pneg %p206
        $region58: #{tpu_custom_call.1} parent=55 // pred_check_branch
          %1576 = sbr.rel (%p1574) target = $region60
        $region59: #{tpu_custom_call.1} parent=55 // pred_region
          %s1577 = sand.u32 %s191, 1
          %s1578 = scalar_lea.sflag [#allocation3], %s1577
          %s1579 = sand.u32 %s191, 1
          %s1580 = smul.addr %s1579, 8
          %s1581 = scalar_lea.vmem [#allocation2], %s1580
          %1582 = dma.done %s1578, 128
        $region60: #{tpu_custom_call.1} parent=55 // pred_fallthru
          _
        // Predicated region
        $region61: #{tpu_custom_call.1} parent=55 // pred_check
          %p1583 = pneg %p234
        $region62: #{tpu_custom_call.1} parent=55 // pred_check_branch
          %1585 = sbr.rel (%p1583) target = $region64
        $region63: #{tpu_custom_call.1} parent=55 // pred_region
          %s1586 = sand.u32 %s219, 1
          %s1587 = scalar_lea.sflag [#allocation5], %s1586
          %s1588 = sand.u32 %s219, 1
          %s1589 = smul.addr %s1588, 8
          %s1590 = scalar_lea.vmem [#allocation4], %s1589
          %1591 = dma.done %s1587, 128
        $region64: #{tpu_custom_call.1} parent=55 // pred_fallthru
          _
      $region56: #{tpu_custom_call.1} parent=5 // pred_fallthru
        _
    $region6: #{tpu_custom_call.1} parent=1 // loop_footer
      %s24 = sadd.s32 1, %s20
    $region7: #{tpu_custom_call.1} parent=1 // loop_footer_branch
      %19 = sbr.rel target = $region3
    $region8: #{tpu_custom_call.1} parent=1 // loop_exit
      _
    %1592 = vsyncpa [#allocation3], 1
    %s1593 = scalar_lea.sflag [#allocation3], 1
    %1594 = vsyncpa %s1593, 1
    %1595 = vsyncpa [#allocation5], 1
    %s1596 = scalar_lea.sflag [#allocation5], 1
    %1597 = vsyncpa %s1596, 1

// kernel: tpu_custom_call.1
$region0: #{tpu_custom_call.1}
  #allocation0 [shape = 'u32[]', space=smem, size = 0x4, offset = 0x4, fixed_abs, tag = 'smem constant byte address 0x4 - core index']
  #allocation1 [shape = 'u32[144,128]{1,0:T(1,128)}', space=vmem, size = 0x12000, scoped, tag = 'internal scratch']
  %s0 = inlined_call_operand.vmem [shape: bf16[2,4,8,8], index: 0, kind: input, shape index: {}]
  %s1 = inlined_call_operand.vmem [shape: bf16[2,4,128,8], index: 1, kind: input, shape index: {}]
  %s2 = inlined_call_operand.vmem [shape: bf16[2,4,128,8], index: 2, kind: input, shape index: {}]
  %s3 = inlined_call_operand.vmem [shape: f32[1,1,128], index: 3, kind: input, shape index: {}]
  %s4 = inlined_call_operand.vmem [shape: bf16[4,8,32], index: 4, kind: input, shape index: {}]
  %s5 = inlined_call_operand.vmem [shape: f32[1,32], index: 5, kind: input, shape index: {}]
  %s6 = inlined_call_operand.hbm [shape: f32[2,8,32], index: 6, kind: output, shape index: {0}]
  %s7 = inlined_call_operand.hbm [shape: f32[2,8,128], index: 7, kind: output, shape index: {1}]
  %8 = xla_tuple %s6, %s7
  %s9 = sld [smem:[#allocation0]]
  $region65: #{tpu_custom_call.1} parent=0
    _
  %s11 = ssub.s32 1, %s9
  %s12 = scalar_select 0, %s11, %s9
  $region1: #{tpu_custom_call.1} parent=0
    #allocation2 [shape = 'u8[8192]{0}', space=vmem, size = 0x2000, scoped, tag = 'output window, operand 0']
    #allocation3 [shape = 's32[2]{0}', space=sflag, size = 0x8, scoped, tag = 'scoped memory for tpu_custom_call.1']
    #allocation4 [shape = 'u8[8192]{0}', space=vmem, size = 0x2000, scoped, tag = 'output window, operand 1']
    #allocation5 [shape = 's32[2]{0}', space=sflag, size = 0x8, scoped, tag = 'scoped memory for tpu_custom_call.1']
    %13 = vsyncpa [#allocation3], 0
    %s14 = scalar_lea.sflag [#allocation3], 1
    %15 = vsyncpa %s14, 0
    %16 = vsyncpa [#allocation5], 0
    %s17 = scalar_lea.sflag [#allocation5], 1
    %18 = vsyncpa %s17, 0
    loop: start=0, step=1, limit=4
    $region2: #{tpu_custom_call.1} parent=1 // loop_pre_header
      _
    $region3: #{tpu_custom_call.1} parent=1 // loop_header
      %s20 = sphi 0, %s24
      %p21 = scmp.ge.s32.totalorder %s20, 4
      %s27 = sphi 0, %s39
      %s28 = sphi 0, %s35
      %s29 = sphi 0, %s27
      %s30 = sphi 0, %s28
      %s31 = sphi 0, %s29
      %s32 = sphi 0, %s30
      %s44 = sphi 0, %s46
      %s47 = sphi 0, %s44
      %s48 = sphi 0, %s47
      %s64 = sphi 0, %s48
      %s70 = sphi 0, %s72
      %s73 = sphi 0, %s70
      %s74 = sphi 0, %s73
      %s90 = sphi 0, %s74
      %s96 = sphi 0, %s98
      %s99 = sphi 0, %s96
      %s100 = sphi 0, %s99
      %s116 = sphi 0, %s100
      %s120 = sphi 0, %s120
      %s122 = sphi 0, %s120
      %s123 = sphi 0, %s122
      %s137 = sphi 0, %s123
      %s141 = sphi 0, %s141
      %s143 = sphi 0, %s141
      %s144 = sphi 0, %s143
      %s158 = sphi 0, %s144
      %s162 = sphi 0, %s162
      %s164 = sphi 0, %s162
      %s165 = sphi 0, %s164
      %s179 = sphi 0, %s165
      %s187 = sphi 0, %s189
      %s190 = sphi 0, %s187
      %s191 = sphi 0, %s190
      %s207 = sphi 0, %s191
      %s215 = sphi 0, %s217
      %s218 = sphi 0, %s215
      %s219 = sphi 0, %s218
      %s235 = sphi 0, %s219
    $region4: #{tpu_custom_call.1} parent=1 // loop_header_branch
      %23 = sbr.rel (%p21) target = $region8
    $region5: #{tpu_custom_call.1} parent=1 // loop_body
      %s25 = ssub.s32 %s20, 1
      %s26 = ssub.s32 %s20, 2
      %s33 = sadd.s32 1, %s28
      %p34 = scmp.ge.s32.totalorder %s33, 1
      %s35 = scalar_select %p34, 0, %s33
      %s36 = sadd.s32 1, %s27
      %s37 = scalar_select %p34, %s36, %s27
      %p38 = scmp.ge.s32.totalorder %s37, 2
      %s39 = scalar_select %p38, 0, %s37
      %s40 = ssub.s32 %s27, %s39
      %s41 = ssub.s32 %s28, %s35
      %s42 = sor.u32 %s40, %s41
      %p43 = scmp.eq.s32.totalorder %s42, 0
      %s45 = sadd.s32 %s44, 1
      %s46 = scalar_select %p43, %s44, %s45
      %p49 = pneg %p43
      %p50 = scmp.eq.s32.totalorder %s20, 1
      %p51 = por %p49, %p50
      %p52 = scmp.ne.s32.totalorder %s44, %s47
      %p53 = scmp.eq.s32.totalorder %s20, 0
      %p54 = por %p52, %p53
      %p55 = scmp.ne.s32.totalorder %s44, %s47
      %p56 = scmp.eq.s32.totalorder %s25, 1
      %p57 = por %p55, %p56
      %p58 = scmp.ne.s32.totalorder %s47, %s48
      %p59 = scmp.eq.s32.totalorder %s25, 0
      %p60 = por %p58, %p59
      %p61 = scmp.ne.s32.totalorder %s47, %s48
      %p62 = scmp.eq.s32.totalorder %s26, 1
      %p63 = por %p61, %p62
      %p65 = scmp.ne.s32.totalorder %s48, %s64
      %p66 = scmp.eq.s32.totalorder %s26, 0
      %p67 = por %p65, %p66
      %s68 = ssub.s32 %s27, %s39
      %p69 = scmp.eq.s32.totalorder %s68, 0
      %s71 = sadd.s32 %s70, 1
      %s72 = scalar_select %p69, %s70, %s71
      %p75 = pneg %p69
      %p76 = scmp.eq.s32.totalorder %s20, 1
      %p77 = por %p75, %p76
      %p78 = scmp.ne.s32.totalorder %s70, %s73
      %p79 = scmp.eq.s32.totalorder %s20, 0
      %p80 = por %p78, %p79
      %p81 = scmp.ne.s32.totalorder %s70, %s73
      %p82 = scmp.eq.s32.totalorder %s25, 1
      %p83 = por %p81, %p82
      %p84 = scmp.ne.s32.totalorder %s73, %s74
      %p85 = scmp.eq.s32.totalorder %s25, 0
      %p86 = por %p84, %p85
      %p87 = scmp.ne.s32.totalorder %s73, %s74
      %p88 = scmp.eq.s32.totalorder %s26, 1
      %p89 = por %p87, %p88
      %p91 = scmp.ne.s32.totalorder %s74, %s90
      %p92 = scmp.eq.s32.totalorder %s26, 0
      %p93 = por %p91, %p92
      %s94 = ssub.s32 %s27, %s39
      %p95 = scmp.eq.s32.totalorder %s94, 0
      %s97 = sadd.s32 %s96, 1
      %s98 = scalar_select %p95, %s96, %s97
      %p101 = pneg %p95
      %p102 = scmp.eq.s32.totalorder %s20, 1
      %p103 = por %p101, %p102
      %p104 = scmp.ne.s32.totalorder %s96, %s99
      %p105 = scmp.eq.s32.totalorder %s20, 0
      %p106 = por %p104, %p105
      %p107 = scmp.ne.s32.totalorder %s96, %s99
      %p108 = scmp.eq.s32.totalorder %s25, 1
      %p109 = por %p107, %p108
      %p110 = scmp.ne.s32.totalorder %s99, %s100
      %p111 = scmp.eq.s32.totalorder %s25, 0
      %p112 = por %p110, %p111
      %p113 = scmp.ne.s32.totalorder %s99, %s100
      %p114 = scmp.eq.s32.totalorder %s26, 1
      %p115 = por %p113, %p114
      %p117 = scmp.ne.s32.totalorder %s100, %s116
      %p118 = scmp.eq.s32.totalorder %s26, 0
      %p119 = por %p117, %p118
      %s121 = sadd.s32 %s120, 1
      %p124 = scmp.eq.s32.totalorder %s20, 1
      %p125 = scmp.ne.s32.totalorder %s120, %s122
      %p126 = scmp.eq.s32.totalorder %s20, 0
      %p127 = por %p125, %p126
      %p128 = scmp.ne.s32.totalorder %s120, %s122
      %p129 = scmp.eq.s32.totalorder %s25, 1
      %p130 = por %p128, %p129
      %p131 = scmp.ne.s32.totalorder %s122, %s123
      %p132 = scmp.eq.s32.totalorder %s25, 0
      %p133 = por %p131, %p132
      %p134 = scmp.ne.s32.totalorder %s122, %s123
      %p135 = scmp.eq.s32.totalorder %s26, 1
      %p136 = por %p134, %p135
      %p138 = scmp.ne.s32.totalorder %s123, %s137
      %p139 = scmp.eq.s32.totalorder %s26, 0
      %p140 = por %p138, %p139
      %s142 = sadd.s32 %s141, 1
      %p145 = scmp.eq.s32.totalorder %s20, 1
      %p146 = scmp.ne.s32.totalorder %s141, %s143
      %p147 = scmp.eq.s32.totalorder %s20, 0
      %p148 = por %p146, %p147
      %p149 = scmp.ne.s32.totalorder %s141, %s143
      %p150 = scmp.eq.s32.totalorder %s25, 1
      %p151 = por %p149, %p150
      %p152 = scmp.ne.s32.totalorder %s143, %s144
      %p153 = scmp.eq.s32.totalorder %s25, 0
      %p154 = por %p152, %p153
      %p155 = scmp.ne.s32.totalorder %s143, %s144
      %p156 = scmp.eq.s32.totalorder %s26, 1
      %p157 = por %p155, %p156
      %p159 = scmp.ne.s32.totalorder %s144, %s158
      %p160 = scmp.eq.s32.totalorder %s26, 0
      %p161 = por %p159, %p160
      %s163 = sadd.s32 %s162, 1
      %p166 = scmp.eq.s32.totalorder %s20, 1
      %p167 = scmp.ne.s32.totalorder %s162, %s164
      %p168 = scmp.eq.s32.totalorder %s20, 0
      %p169 = por %p167, %p168
      %p170 = scmp.ne.s32.totalorder %s162, %s164
      %p171 = scmp.eq.s32.totalorder %s25, 1
      %p172 = por %p170, %p171
      %p173 = scmp.ne.s32.totalorder %s164, %s165
      %p174 = scmp.eq.s32.totalorder %s25, 0
      %p175 = por %p173, %p174
      %p176 = scmp.ne.s32.totalorder %s164, %s165
      %p177 = scmp.eq.s32.totalorder %s26, 1
      %p178 = por %p176, %p177
      %p180 = scmp.ne.s32.totalorder %s165, %s179
      %p181 = scmp.eq.s32.totalorder %s26, 0
      %p182 = por %p180, %p181
      %s183 = ssub.s32 %s27, %s39
      %s184 = ssub.s32 %s28, %s35
      %s185 = sor.u32 %s183, %s184
      %p186 = scmp.eq.s32.totalorder %s185, 0
      %s188 = sadd.s32 %s187, 1
      %s189 = scalar_select %p186, %s187, %s188
      %p192 = pneg %p186
      %p193 = scmp.eq.s32.totalorder %s20, 1
      %p194 = por %p192, %p193
      %p195 = scmp.ne.s32.totalorder %s187, %s190
      %p196 = scmp.eq.s32.totalorder %s20, 0
      %p197 = por %p195, %p196
      %p198 = scmp.ne.s32.totalorder %s187, %s190
      %p199 = scmp.eq.s32.totalorder %s25, 1
      %p200 = por %p198, %p199
      %p201 = scmp.ne.s32.totalorder %s190, %s191
      %p202 = scmp.eq.s32.totalorder %s25, 0
      %p203 = por %p201, %p202
      %p204 = scmp.ne.s32.totalorder %s190, %s191
      %p205 = scmp.eq.s32.totalorder %s26, 1
      %p206 = por %p204, %p205
      %p208 = scmp.ne.s32.totalorder %s191, %s207
      %p209 = scmp.eq.s32.totalorder %s26, 0
      %p210 = por %p208, %p209
      %s211 = ssub.s32 %s27, %s39
      %s212 = ssub.s32 %s28, %s35
      %s213 = sor.u32 %s211, %s212
      %p214 = scmp.eq.s32.totalorder %s213, 0
      %s216 = sadd.s32 %s215, 1
      %s217 = scalar_select %p214, %s215, %s216
      %p220 = pneg %p214
      %p221 = scmp.eq.s32.totalorder %s20, 1
      %p222 = por %p220, %p221
      %p223 = scmp.ne.s32.totalorder %s215, %s218
      %p224 = scmp.eq.s32.totalorder %s20, 0
      %p225 = por %p223, %p224
      %p226 = scmp.ne.s32.totalorder %s215, %s218
      %p227 = scmp.eq.s32.totalorder %s25, 1
      %p228 = por %p226, %p227
      %p229 = scmp.ne.s32.totalorder %s218, %s219
      %p230 = scmp.eq.s32.totalorder %s25, 0
      %p231 = por %p229, %p230
      %p232 = scmp.ne.s32.totalorder %s218, %s219
      %p233 = scmp.eq.s32.totalorder %s26, 1
      %p234 = por %p232, %p233
      %p236 = scmp.ne.s32.totalorder %s219, %s235
      %p237 = scmp.eq.s32.totalorder %s26, 0
      %p238 = por %p236, %p237
      %p239 = scmp.le.s32.totalorder 1, %s20
      %p240 = scmp.lt.s32.totalorder %s20, 3
      %p241 = pnand %p239, %p240
      %p242 = pneg %p241
      // Predicated region
      $region9: #{tpu_custom_call.1} parent=5 // pred_check
        _
      $region10: #{tpu_custom_call.1} parent=5 // pred_check_branch
        %244 = sbr.rel (%p241) target = $region12
      $region11: #{tpu_custom_call.1} parent=5 // pred_region
        %s245 = ssub.s32 %s20, 1
        // Predicated region
        $region13: #{tpu_custom_call.1} parent=11 // pred_check
          %p246 = pneg %p133
        $region14: #{tpu_custom_call.1} parent=11 // pred_check_branch
          %248 = sbr.rel (%p246) target = $region16
        $region15: #{tpu_custom_call.1} parent=11 // pred_region
          _
        $region16: #{tpu_custom_call.1} parent=11 // pred_fallthru
          _
        // Predicated region
        $region17: #{tpu_custom_call.1} parent=11 // pred_check
          %p249 = pneg %p154
        $region18: #{tpu_custom_call.1} parent=11 // pred_check_branch
          %251 = sbr.rel (%p249) target = $region20
        $region19: #{tpu_custom_call.1} parent=11 // pred_region
          _
        $region20: #{tpu_custom_call.1} parent=11 // pred_fallthru
          _
        // Predicated region
        $region21: #{tpu_custom_call.1} parent=11 // pred_check
          %p252 = pneg %p175
        $region22: #{tpu_custom_call.1} parent=11 // pred_check_branch
          %254 = sbr.rel (%p252) target = $region24
        $region23: #{tpu_custom_call.1} parent=11 // pred_region
          _
        $region24: #{tpu_custom_call.1} parent=11 // pred_fallthru
          _
      $region12: #{tpu_custom_call.1} parent=5 // pred_fallthru
        _
      %p255 = scmp.lt.s32.totalorder %s20, 2
      // Predicated region
      $region25: #{tpu_custom_call.1} parent=5 // pred_check
        %p256 = pneg %p255
      $region26: #{tpu_custom_call.1} parent=5 // pred_check_branch
        %258 = sbr.rel (%p256) target = $region28
      $region27: #{tpu_custom_call.1} parent=5 // pred_region
        // Predicated region
        $region29: #{tpu_custom_call.1} parent=27 // pred_check
          %p259 = pneg %p54
        $region30: #{tpu_custom_call.1} parent=27 // pred_check_branch
          %261 = sbr.rel (%p259) target = $region32
        $region31: #{tpu_custom_call.1} parent=27 // pred_region
          %p262 = scmp.lt.s32.totalorder %s27, 1
          %s263 = scalar_select %p262, %s27, 1
          %p264 = scmp.lt.s32.totalorder %s28, 0
          %s265 = scalar_select %p264, %s28, 0
          %s266 = smul.addr %s263, 4
          %s267 = sadd.s32 %s265, %s266
          %s268 = smul.addr %s267, 4
          %s269 = scalar_lea.vmem %s0, %s268
        $region32: #{tpu_custom_call.1} parent=27 // pred_fallthru
          _
        // Predicated region
        $region33: #{tpu_custom_call.1} parent=27 // pred_check
          %p270 = pneg %p80
        $region34: #{tpu_custom_call.1} parent=27 // pred_check_branch
          %272 = sbr.rel (%p270) target = $region36
        $region35: #{tpu_custom_call.1} parent=27 // pred_region
          %p273 = scmp.lt.s32.totalorder %s27, 1
          %s274 = scalar_select %p273, %s27, 1
          %s275 = smul.addr %s274, 64
          %s276 = smul.addr %s275, 4
          %s277 = scalar_lea.vmem %s1, %s276
        $region36: #{tpu_custom_call.1} parent=27 // pred_fallthru
          _
        // Predicated region
        $region37: #{tpu_custom_call.1} parent=27 // pred_check
          %p278 = pneg %p106
        $region38: #{tpu_custom_call.1} parent=27 // pred_check_branch
          %280 = sbr.rel (%p278) target = $region40
        $region39: #{tpu_custom_call.1} parent=27 // pred_region
          %p281 = scmp.lt.s32.totalorder %s27, 1
          %s282 = scalar_select %p281, %s27, 1
          %s283 = smul.addr %s282, 64
          %s284 = smul.addr %s283, 4
          %s285 = scalar_lea.vmem %s2, %s284
        $region40: #{tpu_custom_call.1} parent=27 // pred_fallthru
          _
      $region28: #{tpu_custom_call.1} parent=5 // pred_fallthru
        _
      %p286 = scmp.le.s32.totalorder 1, %s20
      %p287 = scmp.lt.s32.totalorder %s20, 3
      %p288 = pnand %p286, %p287
      %p289 = pneg %p288
      // Predicated region
      $region41: #{tpu_custom_call.1} parent=5 // pred_check
        _
      $region42: #{tpu_custom_call.1} parent=5 // pred_check_branch
        %291 = sbr.rel (%p288) target = $region44
      $region43: #{tpu_custom_call.1} parent=5 // pred_region
        %s292 = ssub.s32 %s20, 1
        %p293 = scmp.lt.s32.totalorder %s29, 1
        %s294 = scalar_select %p293, %s29, 1
        %p295 = scmp.lt.s32.totalorder %s30, 0
        %s296 = scalar_select %p295, %s30, 0
        %s297 = smul.addr %s294, 4
        %s298 = sadd.s32 %s296, %s297
        %s299 = smul.addr %s298, 4
        %s300 = scalar_lea.vmem %s0, %s299
        %p301 = pneg %p60
        %p302 = pneg %p57
        %p303 = scmp.lt.s32.totalorder %s29, 1
        %s304 = scalar_select %p303, %s29, 1
        %s305 = smul.addr %s304, 64
        %s306 = smul.addr %s305, 4
        %s307 = scalar_lea.vmem %s1, %s306
        %p308 = pneg %p86
        %p309 = pneg %p83
        %p310 = scmp.lt.s32.totalorder %s29, 1
        %s311 = scalar_select %p310, %s29, 1
        %s312 = smul.addr %s311, 64
        %s313 = smul.addr %s312, 4
        %s314 = scalar_lea.vmem %s2, %s313
        %p315 = pneg %p112
        %p316 = pneg %p109
        %p317 = pneg %p133
        %p318 = pneg %p130
        %p319 = pneg %p154
        %p320 = pneg %p151
        %p321 = pneg %p175
        %p322 = pneg %p172
        %p323 = pneg %p203
        %p324 = pneg %p200
        %s325 = sand.u32 %s190, 1
        %s326 = scalar_lea.sflag [#allocation3], %s325
        %s327 = sand.u32 %s190, 1
        %s328 = smul.addr %s327, 8
        %s329 = scalar_lea.vmem [#allocation2], %s328
        %p330 = pneg %p231
        %p331 = pneg %p228
        %s332 = sand.u32 %s218, 1
        %s333 = scalar_lea.sflag [#allocation5], %s332
        %s334 = sand.u32 %s218, 1
        %s335 = smul.addr %s334, 8
        %s336 = scalar_lea.vmem [#allocation4], %s335
        %p337 = scmp.lt.s32.totalorder %s29, 1
        %s338 = scalar_select %p337, %s29, 1
        %p339 = scmp.lt.s32.totalorder %s30, 0
        %s340 = scalar_select %p339, %s30, 0
        %s341 = smul.addr %s338, 4
        %s342 = sadd.s32 %s340, %s341
        %s343 = smul.addr %s342, 4
        %s344 = scalar_lea.vmem %s0, %s343
        %p345 = scmp.lt.s32.totalorder %s29, 1
        %s346 = scalar_select %p345, %s29, 1
        %s347 = smul.addr %s346, 64
        %s348 = smul.addr %s347, 4
        %s349 = scalar_lea.vmem %s1, %s348
        %p350 = scmp.lt.s32.totalorder %s29, 1
        %s351 = scalar_select %p350, %s29, 1
        %s352 = smul.addr %s351, 64
        %s353 = smul.addr %s352, 4
        %s354 = scalar_lea.vmem %s2, %s353
        %v356 = vld [vmem:[%s344] sm:$0xf]
        %v357 = vld [vmem:[%s344 + $0x4] sm:$0xf]
        %v358 = vld [vmem:[%s344 + $0x8] sm:$0xf]
        %v359 = vld [vmem:[%s344 + $0xc] sm:$0xf]
        %v360 = vld [vmem:[%s349] sm:$0xf]
        %v361 = vld [vmem:[%s349 + $0x4] sm:$0xf]
        %v362 = vld [vmem:[%s349 + $0x8] sm:$0xf]
        %v363 = vld [vmem:[%s349 + $0xc] sm:$0xf]
        %v364 = vld [vmem:[%s349 + $0x10] sm:$0xf]
        %v365 = vld [vmem:[%s349 + $0x14] sm:$0xf]
        %v366 = vld [vmem:[%s349 + $0x18] sm:$0xf]
        %v367 = vld [vmem:[%s349 + $0x1c] sm:$0xf]
        %v368 = vld [vmem:[%s349 + $0x20] sm:$0xf]
        %v369 = vld [vmem:[%s349 + $0x24] sm:$0xf]
        %v370 = vld [vmem:[%s349 + $0x28] sm:$0xf]
        %v371 = vld [vmem:[%s349 + $0x2c] sm:$0xf]
        %v372 = vld [vmem:[%s349 + $0x30] sm:$0xf]
        %v373 = vld [vmem:[%s349 + $0x34] sm:$0xf]
        %v374 = vld [vmem:[%s349 + $0x38] sm:$0xf]
        %v375 = vld [vmem:[%s349 + $0x3c] sm:$0xf]
        %v376 = vld [vmem:[%s349 + $0x40] sm:$0xf]
        %v377 = vld [vmem:[%s349 + $0x44] sm:$0xf]
        %v378 = vld [vmem:[%s349 + $0x48] sm:$0xf]
        %v379 = vld [vmem:[%s349 + $0x4c] sm:$0xf]
        %v380 = vld [vmem:[%s349 + $0x50] sm:$0xf]
        %v381 = vld [vmem:[%s349 + $0x54] sm:$0xf]
        %v382 = vld [vmem:[%s349 + $0x58] sm:$0xf]
        %v383 = vld [vmem:[%s349 + $0x5c] sm:$0xf]
        %v384 = vld [vmem:[%s349 + $0x60] sm:$0xf]
        %v385 = vld [vmem:[%s349 + $0x64] sm:$0xf]
        %v386 = vld [vmem:[%s349 + $0x68] sm:$0xf]
        %v387 = vld [vmem:[%s349 + $0x6c] sm:$0xf]
        %v388 = vld [vmem:[%s349 + $0x70] sm:$0xf]
        %v389 = vld [vmem:[%s349 + $0x74] sm:$0xf]
        %v390 = vld [vmem:[%s349 + $0x78] sm:$0xf]
        %v391 = vld [vmem:[%s349 + $0x7c] sm:$0xf]
        %v392 = vld [vmem:[%s349 + $0x80] sm:$0xf]
        %v393 = vld [vmem:[%s349 + $0x84] sm:$0xf]
        %v394 = vld [vmem:[%s349 + $0x88] sm:$0xf]
        %v395 = vld [vmem:[%s349 + $0x8c] sm:$0xf]
        %v396 = vld [vmem:[%s349 + $0x90] sm:$0xf]
        %v397 = vld [vmem:[%s349 + $0x94] sm:$0xf]
        %v398 = vld [vmem:[%s349 + $0x98] sm:$0xf]
        %v399 = vld [vmem:[%s349 + $0x9c] sm:$0xf]
        %v400 = vld [vmem:[%s349 + $0xa0] sm:$0xf]
        %v401 = vld [vmem:[%s349 + $0xa4] sm:$0xf]
        %v402 = vld [vmem:[%s349 + $0xa8] sm:$0xf]
        %v403 = vld [vmem:[%s349 + $0xac] sm:$0xf]
        %v404 = vld [vmem:[%s349 + $0xb0] sm:$0xf]
        %v405 = vld [vmem:[%s349 + $0xb4] sm:$0xf]
        %v406 = vld [vmem:[%s349 + $0xb8] sm:$0xf]
        %v407 = vld [vmem:[%s349 + $0xbc] sm:$0xf]
        %v408 = vld [vmem:[%s349 + $0xc0] sm:$0xf]
        %v409 = vld [vmem:[%s349 + $0xc4] sm:$0xf]
        %v410 = vld [vmem:[%s349 + $0xc8] sm:$0xf]
        %v411 = vld [vmem:[%s349 + $0xcc] sm:$0xf]
        %v412 = vld [vmem:[%s349 + $0xd0] sm:$0xf]
        %v413 = vld [vmem:[%s349 + $0xd4] sm:$0xf]
        %v414 = vld [vmem:[%s349 + $0xd8] sm:$0xf]
        %v415 = vld [vmem:[%s349 + $0xdc] sm:$0xf]
        %v416 = vld [vmem:[%s349 + $0xe0] sm:$0xf]
        %v417 = vld [vmem:[%s349 + $0xe4] sm:$0xf]
        %v418 = vld [vmem:[%s349 + $0xe8] sm:$0xf]
        %v419 = vld [vmem:[%s349 + $0xec] sm:$0xf]
        %v420 = vld [vmem:[%s349 + $0xf0] sm:$0xf]
        %v421 = vld [vmem:[%s349 + $0xf4] sm:$0xf]
        %v422 = vld [vmem:[%s349 + $0xf8] sm:$0xf]
        %v423 = vld [vmem:[%s349 + $0xfc] sm:$0xf]
        %v424 = vld [vmem:[%s3] sm:$0x1]
        %v426 = vlaneseq
        %v427 = vshrl.u32 %v426, 7
        %v428 = vsub.s32 0, %v427
        %v429 = vrot.slane %v424, %v428
        %v447 = vunpack.c.l.b16 %v360
        %v448 = vunpack.c.l.b16 %v361
        %v449 = vunpack.c.l.b16 %v362
        %v450 = vunpack.c.l.b16 %v363
        %v451 = vunpack.c.l.b16 %v364
        %v452 = vunpack.c.l.b16 %v365
        %v453 = vunpack.c.l.b16 %v366
        %v454 = vunpack.c.l.b16 %v367
        %v455 = vunpack.c.l.b16 %v368
        %v456 = vunpack.c.l.b16 %v369
        %v457 = vunpack.c.l.b16 %v370
        %v458 = vunpack.c.l.b16 %v371
        %v459 = vunpack.c.l.b16 %v372
        %v460 = vunpack.c.l.b16 %v373
        %v461 = vunpack.c.l.b16 %v374
        %v462 = vunpack.c.l.b16 %v375
        %v463 = vpack.c.b16 %v448, %v447
        %v464 = vpack.c.b16 %v450, %v449
        %v465 = vpack.c.b16 %v452, %v451
        %v466 = vpack.c.b16 %v454, %v453
        %v467 = vpack.c.b16 %v456, %v455
        %v468 = vpack.c.b16 %v458, %v457
        %v469 = vpack.c.b16 %v460, %v459
        %v470 = vpack.c.b16 %v462, %v461
        %vm471 = vcmask 64512
        %v473 = vsel %vm471, %v356, 0
        %v476 = vsel %vm471, %v463, 0
        %v479 = vsel %vm471, %v464, 0
        %v482 = vsel %vm471, %v465, 0
        %v485 = vsel %vm471, %v466, 0
        %v488 = vsel %vm471, %v467, 0
        %v491 = vsel %vm471, %v468, 0
        %v494 = vsel %vm471, %v469, 0
        %v497 = vsel %vm471, %v470, 0
        %499 = vmatprep.subr.bf16.mxu0 0
        %500 = vmatpush1.bf16.xpose.msra.mxu0 %v497
        %501 = vmatprep.subr.bf16.mxu0 0
        %502 = vmatpush1.bf16.xpose.msra.mxu0 %v494
        %503 = vmatprep.subr.bf16.mxu0 0
        %504 = vmatpush1.bf16.xpose.msra.mxu0 %v491
        %505 = vmatprep.subr.bf16.mxu0 0
        %506 = vmatpush1.bf16.xpose.msra.mxu0 %v488
        %507 = vmatprep.subr.bf16.mxu0 0
        %508 = vmatpush1.bf16.xpose.msra.mxu0 %v485
        %509 = vmatprep.subr.bf16.mxu0 0
        %510 = vmatpush1.bf16.xpose.msra.mxu0 %v482
        %511 = vmatprep.subr.bf16.mxu0 0
        %512 = vmatpush1.bf16.xpose.msra.mxu0 %v479
        %513 = vmatprep.subr.bf16.mxu0 0
        %514 = vmatpush1.bf16.xpose.msra.mxu0 %v476
        %515 = vmatprep.subr.bf16.mxu0 0
        %516 = vmatpush2.bf16.xpose.msra.mxu0 0
        %517 = vmatprep.subr.bf16.mxu0 0
        %518 = vmatpush2.bf16.xpose.msra.mxu0 0
        %519 = vmatprep.subr.bf16.mxu0 0
        %520 = vmatpush2.bf16.xpose.msra.mxu0 0
        %521 = vmatprep.subr.bf16.mxu0 0
        %522 = vmatpush2.bf16.xpose.msra.mxu0 0
        %523 = vmatprep.subr.bf16.mxu0 0
        %524 = vmatpush2.bf16.xpose.msra.mxu0 0
        %525 = vmatprep.subr.bf16.mxu0 0
        %526 = vmatpush2.bf16.xpose.msra.mxu0 0
        %527 = vmatprep.subr.bf16.mxu0 0
        %528 = vmatpush2.bf16.xpose.msra.mxu0 0
        %529 = vmatprep.subr.bf16.mxu0 0
        %530 = vmatpush2.bf16.xpose.msra.mxu0 0
        %531 = vmatprep.mubr.bf16.mxu0 0
        %532 = vmatmul.mubr.bf16.gmra.mxu0 %v473
        %v533 = vpop.f32.mrf.mxu0
        %v534 = vadd.f32 %v429, %v533
        %v535 = vpop.f32.mrf.mxu0
        %v536 = vpop.f32.mrf.mxu0
        %v537 = vpop.f32.mrf.mxu0
        %538 = vdwg.mxu0
        %v555 = vunpack.c.l.b16 %v376
        %v556 = vunpack.c.l.b16 %v377
        %v557 = vunpack.c.l.b16 %v378
        %v558 = vunpack.c.l.b16 %v379
        %v559 = vunpack.c.l.b16 %v380
        %v560 = vunpack.c.l.b16 %v381
        %v561 = vunpack.c.l.b16 %v382
        %v562 = vunpack.c.l.b16 %v383
        %v563 = vunpack.c.l.b16 %v384
        %v564 = vunpack.c.l.b16 %v385
        %v565 = vunpack.c.l.b16 %v386
        %v566 = vunpack.c.l.b16 %v387
        %v567 = vunpack.c.l.b16 %v388
        %v568 = vunpack.c.l.b16 %v389
        %v569 = vunpack.c.l.b16 %v390
        %v570 = vunpack.c.l.b16 %v391
        %v571 = vpack.c.b16 %v556, %v555
        %v572 = vpack.c.b16 %v558, %v557
        %v573 = vpack.c.b16 %v560, %v559
        %v574 = vpack.c.b16 %v562, %v561
        %v575 = vpack.c.b16 %v564, %v563
        %v576 = vpack.c.b16 %v566, %v565
        %v577 = vpack.c.b16 %v568, %v567
        %v578 = vpack.c.b16 %v570, %v569
        %v580 = vsel %vm471, %v357, 0
        %v583 = vsel %vm471, %v571, 0
        %v586 = vsel %vm471, %v572, 0
        %v589 = vsel %vm471, %v573, 0
        %v592 = vsel %vm471, %v574, 0
        %v595 = vsel %vm471, %v575, 0
        %v598 = vsel %vm471, %v576, 0
        %v601 = vsel %vm471, %v577, 0
        %v604 = vsel %vm471, %v578, 0
        %606 = vmatprep.subr.bf16.mxu0 0
        %607 = vmatpush1.bf16.xpose.msra.mxu0 %v604
        %608 = vmatprep.subr.bf16.mxu0 0
        %609 = vmatpush1.bf16.xpose.msra.mxu0 %v601
        %610 = vmatprep.subr.bf16.mxu0 0
        %611 = vmatpush1.bf16.xpose.msra.mxu0 %v598
        %612 = vmatprep.subr.bf16.mxu0 0
        %613 = vmatpush1.bf16.xpose.msra.mxu0 %v595
        %614 = vmatprep.subr.bf16.mxu0 0
        %615 = vmatpush1.bf16.xpose.msra.mxu0 %v592
        %616 = vmatprep.subr.bf16.mxu0 0
        %617 = vmatpush1.bf16.xpose.msra.mxu0 %v589
        %618 = vmatprep.subr.bf16.mxu0 0
        %619 = vmatpush1.bf16.xpose.msra.mxu0 %v586
        %620 = vmatprep.subr.bf16.mxu0 0
        %621 = vmatpush1.bf16.xpose.msra.mxu0 %v583
        %622 = vmatprep.subr.bf16.mxu0 0
        %623 = vmatpush2.bf16.xpose.msra.mxu0 0
        %624 = vmatprep.subr.bf16.mxu0 0
        %625 = vmatpush2.bf16.xpose.msra.mxu0 0
        %626 = vmatprep.subr.bf16.mxu0 0
        %627 = vmatpush2.bf16.xpose.msra.mxu0 0
        %628 = vmatprep.subr.bf16.mxu0 0
        %629 = vmatpush2.bf16.xpose.msra.mxu0 0
        %630 = vmatprep.subr.bf16.mxu0 0
        %631 = vmatpush2.bf16.xpose.msra.mxu0 0
        %632 = vmatprep.subr.bf16.mxu0 0
        %633 = vmatpush2.bf16.xpose.msra.mxu0 0
        %634 = vmatprep.subr.bf16.mxu0 0
        %635 = vmatpush2.bf16.xpose.msra.mxu0 0
        %636 = vmatprep.subr.bf16.mxu0 0
        %637 = vmatpush2.bf16.xpose.msra.mxu0 0
        %638 = vmatprep.mubr.bf16.mxu0 0
        %639 = vmatmul.mubr.bf16.gmra.mxu0 %v580
        %v640 = vpop.f32.mrf.mxu0
        %v641 = vadd.f32 %v429, %v640
        %v642 = vpop.f32.mrf.mxu0
        %v643 = vpop.f32.mrf.mxu0
        %v644 = vpop.f32.mrf.mxu0
        %645 = vdwg.mxu0
        %v662 = vunpack.c.l.b16 %v392
        %v663 = vunpack.c.l.b16 %v393
        %v664 = vunpack.c.l.b16 %v394
        %v665 = vunpack.c.l.b16 %v395
        %v666 = vunpack.c.l.b16 %v396
        %v667 = vunpack.c.l.b16 %v397
        %v668 = vunpack.c.l.b16 %v398
        %v669 = vunpack.c.l.b16 %v399
        %v670 = vunpack.c.l.b16 %v400
        %v671 = vunpack.c.l.b16 %v401
        %v672 = vunpack.c.l.b16 %v402
        %v673 = vunpack.c.l.b16 %v403
        %v674 = vunpack.c.l.b16 %v404
        %v675 = vunpack.c.l.b16 %v405
        %v676 = vunpack.c.l.b16 %v406
        %v677 = vunpack.c.l.b16 %v407
        %v678 = vpack.c.b16 %v663, %v662
        %v679 = vpack.c.b16 %v665, %v664
        %v680 = vpack.c.b16 %v667, %v666
        %v681 = vpack.c.b16 %v669, %v668
        %v682 = vpack.c.b16 %v671, %v670
        %v683 = vpack.c.b16 %v673, %v672
        %v684 = vpack.c.b16 %v675, %v674
        %v685 = vpack.c.b16 %v677, %v676
        %v687 = vsel %vm471, %v358, 0
        %v690 = vsel %vm471, %v678, 0
        %v693 = vsel %vm471, %v679, 0
        %v696 = vsel %vm471, %v680, 0
        %v699 = vsel %vm471, %v681, 0
        %v702 = vsel %vm471, %v682, 0
        %v705 = vsel %vm471, %v683, 0
        %v708 = vsel %vm471, %v684, 0
        %v711 = vsel %vm471, %v685, 0
        %713 = vmatprep.subr.bf16.mxu0 0
        %714 = vmatpush1.bf16.xpose.msra.mxu0 %v711
        %715 = vmatprep.subr.bf16.mxu0 0
        %716 = vmatpush1.bf16.xpose.msra.mxu0 %v708
        %717 = vmatprep.subr.bf16.mxu0 0
        %718 = vmatpush1.bf16.xpose.msra.mxu0 %v705
        %719 = vmatprep.subr.bf16.mxu0 0
        %720 = vmatpush1.bf16.xpose.msra.mxu0 %v702
        %721 = vmatprep.subr.bf16.mxu0 0
        %722 = vmatpush1.bf16.xpose.msra.mxu0 %v699
        %723 = vmatprep.subr.bf16.mxu0 0
        %724 = vmatpush1.bf16.xpose.msra.mxu0 %v696
        %725 = vmatprep.subr.bf16.mxu0 0
        %726 = vmatpush1.bf16.xpose.msra.mxu0 %v693
        %727 = vmatprep.subr.bf16.mxu0 0
        %728 = vmatpush1.bf16.xpose.msra.mxu0 %v690
        %729 = vmatprep.subr.bf16.mxu0 0
        %730 = vmatpush2.bf16.xpose.msra.mxu0 0
        %731 = vmatprep.subr.bf16.mxu0 0
        %732 = vmatpush2.bf16.xpose.msra.mxu0 0
        %733 = vmatprep.subr.bf16.mxu0 0
        %734 = vmatpush2.bf16.xpose.msra.mxu0 0
        %735 = vmatprep.subr.bf16.mxu0 0
        %736 = vmatpush2.bf16.xpose.msra.mxu0 0
        %737 = vmatprep.subr.bf16.mxu0 0
        %738 = vmatpush2.bf16.xpose.msra.mxu0 0
        %739 = vmatprep.subr.bf16.mxu0 0
        %740 = vmatpush2.bf16.xpose.msra.mxu0 0
        %741 = vmatprep.subr.bf16.mxu0 0
        %742 = vmatpush2.bf16.xpose.msra.mxu0 0
        %743 = vmatprep.subr.bf16.mxu0 0
        %744 = vmatpush2.bf16.xpose.msra.mxu0 0
        %745 = vmatprep.mubr.bf16.mxu0 0
        %746 = vmatmul.mubr.bf16.gmra.mxu0 %v687
        %v747 = vpop.f32.mrf.mxu0
        %v748 = vadd.f32 %v429, %v747
        %v749 = vpop.f32.mrf.mxu0
        %v750 = vpop.f32.mrf.mxu0
        %v751 = vpop.f32.mrf.mxu0
        %752 = vdwg.mxu0
        %v769 = vunpack.c.l.b16 %v408
        %v770 = vunpack.c.l.b16 %v409
        %v771 = vunpack.c.l.b16 %v410
        %v772 = vunpack.c.l.b16 %v411
        %v773 = vunpack.c.l.b16 %v412
        %v774 = vunpack.c.l.b16 %v413
        %v775 = vunpack.c.l.b16 %v414
        %v776 = vunpack.c.l.b16 %v415
        %v777 = vunpack.c.l.b16 %v416
        %v778 = vunpack.c.l.b16 %v417
        %v779 = vunpack.c.l.b16 %v418
        %v780 = vunpack.c.l.b16 %v419
        %v781 = vunpack.c.l.b16 %v420
        %v782 = vunpack.c.l.b16 %v421
        %v783 = vunpack.c.l.b16 %v422
        %v784 = vunpack.c.l.b16 %v423
        %v785 = vpack.c.b16 %v770, %v769
        %v786 = vpack.c.b16 %v772, %v771
        %v787 = vpack.c.b16 %v774, %v773
        %v788 = vpack.c.b16 %v776, %v775
        %v789 = vpack.c.b16 %v778, %v777
        %v790 = vpack.c.b16 %v780, %v779
        %v791 = vpack.c.b16 %v782, %v781
        %v792 = vpack.c.b16 %v784, %v783
        %v794 = vsel %vm471, %v359, 0
        %v797 = vsel %vm471, %v785, 0
        %v800 = vsel %vm471, %v786, 0
        %v803 = vsel %vm471, %v787, 0
        %v806 = vsel %vm471, %v788, 0
        %v809 = vsel %vm471, %v789, 0
        %v812 = vsel %vm471, %v790, 0
        %v815 = vsel %vm471, %v791, 0
        %v818 = vsel %vm471, %v792, 0
        %820 = vmatprep.subr.bf16.mxu0 0
        %821 = vmatpush1.bf16.xpose.msra.mxu0 %v818
        %822 = vmatprep.subr.bf16.mxu0 0
        %823 = vmatpush1.bf16.xpose.msra.mxu0 %v815
        %824 = vmatprep.subr.bf16.mxu0 0
        %825 = vmatpush1.bf16.xpose.msra.mxu0 %v812
        %826 = vmatprep.subr.bf16.mxu0 0
        %827 = vmatpush1.bf16.xpose.msra.mxu0 %v809
        %828 = vmatprep.subr.bf16.mxu0 0
        %829 = vmatpush1.bf16.xpose.msra.mxu0 %v806
        %830 = vmatprep.subr.bf16.mxu0 0
        %831 = vmatpush1.bf16.xpose.msra.mxu0 %v803
        %832 = vmatprep.subr.bf16.mxu0 0
        %833 = vmatpush1.bf16.xpose.msra.mxu0 %v800
        %834 = vmatprep.subr.bf16.mxu0 0
        %835 = vmatpush1.bf16.xpose.msra.mxu0 %v797
        %836 = vmatprep.subr.bf16.mxu0 0
        %837 = vmatpush2.bf16.xpose.msra.mxu0 0
        %838 = vmatprep.subr.bf16.mxu0 0
        %839 = vmatpush2.bf16.xpose.msra.mxu0 0
        %840 = vmatprep.subr.bf16.mxu0 0
        %841 = vmatpush2.bf16.xpose.msra.mxu0 0
        %842 = vmatprep.subr.bf16.mxu0 0
        %843 = vmatpush2.bf16.xpose.msra.mxu0 0
        %844 = vmatprep.subr.bf16.mxu0 0
        %845 = vmatpush2.bf16.xpose.msra.mxu0 0
        %846 = vmatprep.subr.bf16.mxu0 0
        %847 = vmatpush2.bf16.xpose.msra.mxu0 0
        %848 = vmatprep.subr.bf16.mxu0 0
        %849 = vmatpush2.bf16.xpose.msra.mxu0 0
        %850 = vmatprep.subr.bf16.mxu0 0
        %851 = vmatpush2.bf16.xpose.msra.mxu0 0
        %852 = vmatprep.mubr.bf16.mxu0 0
        %853 = vmatmul.mubr.bf16.gmra.mxu0 %v794
        %v854 = vpop.f32.mrf.mxu0
        %v855 = vadd.f32 %v429, %v854
        %v856 = vpop.f32.mrf.mxu0
        %v857 = vpop.f32.mrf.mxu0
        %v858 = vpop.f32.mrf.mxu0
        %859 = vdwg.mxu0
        %860 = vmax.xlane.f32.xlu0 %v534
        %v861 = vpop.xlane.xlu0 %860
        %862 = vmax.xlane.f32.xlu0 %v641
        %v863 = vpop.xlane.xlu0 %862
        %864 = vmax.xlane.f32.xlu0 %v748
        %v865 = vpop.xlane.xlu0 %864
        %866 = vmax.xlane.f32.xlu0 %v855
        %v867 = vpop.xlane.xlu0 %866
        %v868 = vsub.f32 %v534, %v861
        %v869 = vsub.f32 %v641, %v863
        %v870 = vsub.f32 %v748, %v865
        %v871 = vsub.f32 %v855, %v867
        %v872 = vmul.f32 %v868, 1.442695
        %v873 = vpow.pop %v872
        %v874 = vmul.f32 %v869, 1.442695
        %v875 = vpow.pop %v874
        %v876 = vmul.f32 %v870, 1.442695
        %v877 = vpow.pop %v876
        %v878 = vmul.f32 %v871, 1.442695
        %v879 = vpow.pop %v878
        %880 = vadd.xlane.f32.xlu0 %v873
        %v881 = vpop.xlane.xlu0 %880
        %882 = vadd.xlane.f32.xlu0 %v875
        %v883 = vpop.xlane.xlu0 %882
        %884 = vadd.xlane.f32.xlu0 %v877
        %v885 = vpop.xlane.xlu0 %884
        %886 = vadd.xlane.f32.xlu0 %v879
        %v887 = vpop.xlane.xlu0 %886
        %v888 = vrcp.pop %v881
        %v889 = vrcp.pop %v883
        %v890 = vrcp.pop %v885
        %v891 = vrcp.pop %v887
        %v892 = vmul.f32 %v873, %v888
        %v893 = vmul.f32 %v875, %v889
        %v894 = vmul.f32 %v877, %v890
        %v895 = vmul.f32 %v879, %v891
        %v896 = vadd.f32 %v892, %v893
        %v897 = vadd.f32 %v896, %v894
        %v898 = vadd.f32 %v897, %v895
        %v899 = vmul.f32 %v898, 0.25
        %900 = vst [vmem:[%s336] sm:$0xff] %v899
        %v901 = vpack.c.bf16 %v892, %v892
        %v902 = vpack.c.bf16 %v893, %v893
        %v903 = vpack.c.bf16 %v894, %v894
        %v904 = vpack.c.bf16 %v895, %v895
        %v905 = vld [vmem:[%s354] sm:$0xf]
        %v906 = vld [vmem:[%s354 + $0x4] sm:$0xf]
        %v907 = vld [vmem:[%s354 + $0x8] sm:$0xf]
        %v908 = vld [vmem:[%s354 + $0xc] sm:$0xf]
        %v909 = vld [vmem:[%s354 + $0x10] sm:$0xf]
        %v910 = vld [vmem:[%s354 + $0x14] sm:$0xf]
        %v911 = vld [vmem:[%s354 + $0x18] sm:$0xf]
        %v912 = vld [vmem:[%s354 + $0x1c] sm:$0xf]
        %v913 = vld [vmem:[%s354 + $0x20] sm:$0xf]
        %v914 = vld [vmem:[%s354 + $0x24] sm:$0xf]
        %v915 = vld [vmem:[%s354 + $0x28] sm:$0xf]
        %v916 = vld [vmem:[%s354 + $0x2c] sm:$0xf]
        %v917 = vld [vmem:[%s354 + $0x30] sm:$0xf]
        %v918 = vld [vmem:[%s354 + $0x34] sm:$0xf]
        %v919 = vld [vmem:[%s354 + $0x38] sm:$0xf]
        %v920 = vld [vmem:[%s354 + $0x3c] sm:$0xf]
        %v921 = vld [vmem:[%s354 + $0x40] sm:$0xf]
        %v922 = vld [vmem:[%s354 + $0x44] sm:$0xf]
        %v923 = vld [vmem:[%s354 + $0x48] sm:$0xf]
        %v924 = vld [vmem:[%s354 + $0x4c] sm:$0xf]
        %v925 = vld [vmem:[%s354 + $0x50] sm:$0xf]
        %v926 = vld [vmem:[%s354 + $0x54] sm:$0xf]
        %v927 = vld [vmem:[%s354 + $0x58] sm:$0xf]
        %v928 = vld [vmem:[%s354 + $0x5c] sm:$0xf]
        %v929 = vld [vmem:[%s354 + $0x60] sm:$0xf]
        %v930 = vld [vmem:[%s354 + $0x64] sm:$0xf]
        %v931 = vld [vmem:[%s354 + $0x68] sm:$0xf]
        %v932 = vld [vmem:[%s354 + $0x6c] sm:$0xf]
        %v933 = vld [vmem:[%s354 + $0x70] sm:$0xf]
        %v934 = vld [vmem:[%s354 + $0x74] sm:$0xf]
        %v935 = vld [vmem:[%s354 + $0x78] sm:$0xf]
        %v936 = vld [vmem:[%s354 + $0x7c] sm:$0xf]
        %v937 = vld [vmem:[%s354 + $0x80] sm:$0xf]
        %v938 = vld [vmem:[%s354 + $0x84] sm:$0xf]
        %v939 = vld [vmem:[%s354 + $0x88] sm:$0xf]
        %v940 = vld [vmem:[%s354 + $0x8c] sm:$0xf]
        %v941 = vld [vmem:[%s354 + $0x90] sm:$0xf]
        %v942 = vld [vmem:[%s354 + $0x94] sm:$0xf]
        %v943 = vld [vmem:[%s354 + $0x98] sm:$0xf]
        %v944 = vld [vmem:[%s354 + $0x9c] sm:$0xf]
        %v945 = vld [vmem:[%s354 + $0xa0] sm:$0xf]
        %v946 = vld [vmem:[%s354 + $0xa4] sm:$0xf]
        %v947 = vld [vmem:[%s354 + $0xa8] sm:$0xf]
        %v948 = vld [vmem:[%s354 + $0xac] sm:$0xf]
        %v949 = vld [vmem:[%s354 + $0xb0] sm:$0xf]
        %v950 = vld [vmem:[%s354 + $0xb4] sm:$0xf]
        %v951 = vld [vmem:[%s354 + $0xb8] sm:$0xf]
        %v952 = vld [vmem:[%s354 + $0xbc] sm:$0xf]
        %v953 = vld [vmem:[%s354 + $0xc0] sm:$0xf]
        %v954 = vld [vmem:[%s354 + $0xc4] sm:$0xf]
        %v955 = vld [vmem:[%s354 + $0xc8] sm:$0xf]
        %v956 = vld [vmem:[%s354 + $0xcc] sm:$0xf]
        %v957 = vld [vmem:[%s354 + $0xd0] sm:$0xf]
        %v958 = vld [vmem:[%s354 + $0xd4] sm:$0xf]
        %v959 = vld [vmem:[%s354 + $0xd8] sm:$0xf]
        %v960 = vld [vmem:[%s354 + $0xdc] sm:$0xf]
        %v961 = vld [vmem:[%s354 + $0xe0] sm:$0xf]
        %v962 = vld [vmem:[%s354 + $0xe4] sm:$0xf]
        %v963 = vld [vmem:[%s354 + $0xe8] sm:$0xf]
        %v964 = vld [vmem:[%s354 + $0xec] sm:$0xf]
        %v965 = vld [vmem:[%s354 + $0xf0] sm:$0xf]
        %v966 = vld [vmem:[%s354 + $0xf4] sm:$0xf]
        %v967 = vld [vmem:[%s354 + $0xf8] sm:$0xf]
        %v968 = vld [vmem:[%s354 + $0xfc] sm:$0xf]
        %v985 = vunpack.c.l.b16 %v905
        %v986 = vunpack.c.l.b16 %v906
        %v987 = vunpack.c.l.b16 %v907
        %v988 = vunpack.c.l.b16 %v908
        %v989 = vunpack.c.l.b16 %v909
        %v990 = vunpack.c.l.b16 %v910
        %v991 = vunpack.c.l.b16 %v911
        %v992 = vunpack.c.l.b16 %v912
        %v993 = vunpack.c.l.b16 %v913
        %v994 = vunpack.c.l.b16 %v914
        %v995 = vunpack.c.l.b16 %v915
        %v996 = vunpack.c.l.b16 %v916
        %v997 = vunpack.c.l.b16 %v917
        %v998 = vunpack.c.l.b16 %v918
        %v999 = vunpack.c.l.b16 %v919
        %v1000 = vunpack.c.l.b16 %v920
        %v1001 = vpack.c.b16 %v986, %v985
        %v1002 = vpack.c.b16 %v988, %v987
        %v1003 = vpack.c.b16 %v990, %v989
        %v1004 = vpack.c.b16 %v992, %v991
        %v1005 = vpack.c.b16 %v994, %v993
        %v1006 = vpack.c.b16 %v996, %v995
        %v1007 = vpack.c.b16 %v998, %v997
        %v1008 = vpack.c.b16 %v1000, %v999
        %1017 = vmatprep.subr.bf16.mxu0 0
        %1018 = vmatpush1.bf16.msra.mxu0 %v1008
        %1019 = vmatprep.subr.bf16.mxu0 0
        %1020 = vmatpush1.bf16.msra.mxu0 %v1007
        %1021 = vmatprep.subr.bf16.mxu0 0
        %1022 = vmatpush1.bf16.msra.mxu0 %v1006
        %1023 = vmatprep.subr.bf16.mxu0 0
        %1024 = vmatpush1.bf16.msra.mxu0 %v1005
        %1025 = vmatprep.subr.bf16.mxu0 0
        %1026 = vmatpush1.bf16.msra.mxu0 %v1004
        %1027 = vmatprep.subr.bf16.mxu0 0
        %1028 = vmatpush1.bf16.msra.mxu0 %v1003
        %1029 = vmatprep.subr.bf16.mxu0 0
        %1030 = vmatpush1.bf16.msra.mxu0 %v1002
        %1031 = vmatprep.subr.bf16.mxu0 0
        %1032 = vmatpush1.bf16.msra.mxu0 %v1001
        %1033 = vmatprep.subr.bf16.mxu0 0
        %1034 = vmatpush2.bf16.msra.mxu0 0
        %1035 = vmatprep.subr.bf16.mxu0 0
        %1036 = vmatpush2.bf16.msra.mxu0 0
        %1037 = vmatprep.subr.bf16.mxu0 0
        %1038 = vmatpush2.bf16.msra.mxu0 0
        %1039 = vmatprep.subr.bf16.mxu0 0
        %1040 = vmatpush2.bf16.msra.mxu0 0
        %1041 = vmatprep.subr.bf16.mxu0 0
        %1042 = vmatpush2.bf16.msra.mxu0 0
        %1043 = vmatprep.subr.bf16.mxu0 0
        %1044 = vmatpush2.bf16.msra.mxu0 0
        %1045 = vmatprep.subr.bf16.mxu0 0
        %1046 = vmatpush2.bf16.msra.mxu0 0
        %1047 = vmatprep.subr.bf16.mxu0 0
        %1048 = vmatpush2.bf16.msra.mxu0 0
        %1049 = vmatprep.mubr.bf16.mxu0 0
        %1050 = vmatmul.mubr.bf16.gmra.mxu0 %v901
        %v1051 = vpop.f32.mrf.mxu0
        %v1052 = vadd.f32 0.0, %v1051
        %v1053 = vpop.f32.mrf.mxu0
        %v1054 = vpop.f32.mrf.mxu0
        %v1055 = vpop.f32.mrf.mxu0
        %1056 = vdwg.mxu0
        %v1073 = vunpack.c.l.b16 %v921
        %v1074 = vunpack.c.l.b16 %v922
        %v1075 = vunpack.c.l.b16 %v923
        %v1076 = vunpack.c.l.b16 %v924
        %v1077 = vunpack.c.l.b16 %v925
        %v1078 = vunpack.c.l.b16 %v926
        %v1079 = vunpack.c.l.b16 %v927
        %v1080 = vunpack.c.l.b16 %v928
        %v1081 = vunpack.c.l.b16 %v929
        %v1082 = vunpack.c.l.b16 %v930
        %v1083 = vunpack.c.l.b16 %v931
        %v1084 = vunpack.c.l.b16 %v932
        %v1085 = vunpack.c.l.b16 %v933
        %v1086 = vunpack.c.l.b16 %v934
        %v1087 = vunpack.c.l.b16 %v935
        %v1088 = vunpack.c.l.b16 %v936
        %v1089 = vpack.c.b16 %v1074, %v1073
        %v1090 = vpack.c.b16 %v1076, %v1075
        %v1091 = vpack.c.b16 %v1078, %v1077
        %v1092 = vpack.c.b16 %v1080, %v1079
        %v1093 = vpack.c.b16 %v1082, %v1081
        %v1094 = vpack.c.b16 %v1084, %v1083
        %v1095 = vpack.c.b16 %v1086, %v1085
        %v1096 = vpack.c.b16 %v1088, %v1087
        %1105 = vmatprep.subr.bf16.mxu0 0
        %1106 = vmatpush1.bf16.msra.mxu0 %v1096
        %1107 = vmatprep.subr.bf16.mxu0 0
        %1108 = vmatpush1.bf16.msra.mxu0 %v1095
        %1109 = vmatprep.subr.bf16.mxu0 0
        %1110 = vmatpush1.bf16.msra.mxu0 %v1094
        %1111 = vmatprep.subr.bf16.mxu0 0
        %1112 = vmatpush1.bf16.msra.mxu0 %v1093
        %1113 = vmatprep.subr.bf16.mxu0 0
        %1114 = vmatpush1.bf16.msra.mxu0 %v1092
        %1115 = vmatprep.subr.bf16.mxu0 0
        %1116 = vmatpush1.bf16.msra.mxu0 %v1091
        %1117 = vmatprep.subr.bf16.mxu0 0
        %1118 = vmatpush1.bf16.msra.mxu0 %v1090
        %1119 = vmatprep.subr.bf16.mxu0 0
        %1120 = vmatpush1.bf16.msra.mxu0 %v1089
        %1121 = vmatprep.subr.bf16.mxu0 0
        %1122 = vmatpush2.bf16.msra.mxu0 0
        %1123 = vmatprep.subr.bf16.mxu0 0
        %1124 = vmatpush2.bf16.msra.mxu0 0
        %1125 = vmatprep.subr.bf16.mxu0 0
        %1126 = vmatpush2.bf16.msra.mxu0 0
        %1127 = vmatprep.subr.bf16.mxu0 0
        %1128 = vmatpush2.bf16.msra.mxu0 0
        %1129 = vmatprep.subr.bf16.mxu0 0
        %1130 = vmatpush2.bf16.msra.mxu0 0
        %1131 = vmatprep.subr.bf16.mxu0 0
        %1132 = vmatpush2.bf16.msra.mxu0 0
        %1133 = vmatprep.subr.bf16.mxu0 0
        %1134 = vmatpush2.bf16.msra.mxu0 0
        %1135 = vmatprep.subr.bf16.mxu0 0
        %1136 = vmatpush2.bf16.msra.mxu0 0
        %1137 = vmatprep.mubr.bf16.mxu0 0
        %1138 = vmatmul.mubr.bf16.gmra.mxu0 %v902
        %v1139 = vpop.f32.mrf.mxu0
        %v1140 = vadd.f32 0.0, %v1139
        %v1141 = vpop.f32.mrf.mxu0
        %v1142 = vpop.f32.mrf.mxu0
        %v1143 = vpop.f32.mrf.mxu0
        %1144 = vdwg.mxu0
        %v1161 = vunpack.c.l.b16 %v937
        %v1162 = vunpack.c.l.b16 %v938
        %v1163 = vunpack.c.l.b16 %v939
        %v1164 = vunpack.c.l.b16 %v940
        %v1165 = vunpack.c.l.b16 %v941
        %v1166 = vunpack.c.l.b16 %v942
        %v1167 = vunpack.c.l.b16 %v943
        %v1168 = vunpack.c.l.b16 %v944
        %v1169 = vunpack.c.l.b16 %v945
        %v1170 = vunpack.c.l.b16 %v946
        %v1171 = vunpack.c.l.b16 %v947
        %v1172 = vunpack.c.l.b16 %v948
        %v1173 = vunpack.c.l.b16 %v949
        %v1174 = vunpack.c.l.b16 %v950
        %v1175 = vunpack.c.l.b16 %v951
        %v1176 = vunpack.c.l.b16 %v952
        %v1177 = vpack.c.b16 %v1162, %v1161
        %v1178 = vpack.c.b16 %v1164, %v1163
        %v1179 = vpack.c.b16 %v1166, %v1165
        %v1180 = vpack.c.b16 %v1168, %v1167
        %v1181 = vpack.c.b16 %v1170, %v1169
        %v1182 = vpack.c.b16 %v1172, %v1171
        %v1183 = vpack.c.b16 %v1174, %v1173
        %v1184 = vpack.c.b16 %v1176, %v1175
        %1193 = vmatprep.subr.bf16.mxu0 0
        %1194 = vmatpush1.bf16.msra.mxu0 %v1184
        %1195 = vmatprep.subr.bf16.mxu0 0
        %1196 = vmatpush1.bf16.msra.mxu0 %v1183
        %1197 = vmatprep.subr.bf16.mxu0 0
        %1198 = vmatpush1.bf16.msra.mxu0 %v1182
        %1199 = vmatprep.subr.bf16.mxu0 0
        %1200 = vmatpush1.bf16.msra.mxu0 %v1181
        %1201 = vmatprep.subr.bf16.mxu0 0
        %1202 = vmatpush1.bf16.msra.mxu0 %v1180
        %1203 = vmatprep.subr.bf16.mxu0 0
        %1204 = vmatpush1.bf16.msra.mxu0 %v1179
        %1205 = vmatprep.subr.bf16.mxu0 0
        %1206 = vmatpush1.bf16.msra.mxu0 %v1178
        %1207 = vmatprep.subr.bf16.mxu0 0
        %1208 = vmatpush1.bf16.msra.mxu0 %v1177
        %1209 = vmatprep.subr.bf16.mxu0 0
        %1210 = vmatpush2.bf16.msra.mxu0 0
        %1211 = vmatprep.subr.bf16.mxu0 0
        %1212 = vmatpush2.bf16.msra.mxu0 0
        %1213 = vmatprep.subr.bf16.mxu0 0
        %1214 = vmatpush2.bf16.msra.mxu0 0
        %1215 = vmatprep.subr.bf16.mxu0 0
        %1216 = vmatpush2.bf16.msra.mxu0 0
        %1217 = vmatprep.subr.bf16.mxu0 0
        %1218 = vmatpush2.bf16.msra.mxu0 0
        %1219 = vmatprep.subr.bf16.mxu0 0
        %1220 = vmatpush2.bf16.msra.mxu0 0
        %1221 = vmatprep.subr.bf16.mxu0 0
        %1222 = vmatpush2.bf16.msra.mxu0 0
        %1223 = vmatprep.subr.bf16.mxu0 0
        %1224 = vmatpush2.bf16.msra.mxu0 0
        %1225 = vmatprep.mubr.bf16.mxu0 0
        %1226 = vmatmul.mubr.bf16.gmra.mxu0 %v903
        %v1227 = vpop.f32.mrf.mxu0
        %v1228 = vadd.f32 0.0, %v1227
        %v1229 = vpop.f32.mrf.mxu0
        %v1230 = vpop.f32.mrf.mxu0
        %v1231 = vpop.f32.mrf.mxu0
        %1232 = vdwg.mxu0
        %v1249 = vunpack.c.l.b16 %v953
        %v1250 = vunpack.c.l.b16 %v954
        %v1251 = vunpack.c.l.b16 %v955
        %v1252 = vunpack.c.l.b16 %v956
        %v1253 = vunpack.c.l.b16 %v957
        %v1254 = vunpack.c.l.b16 %v958
        %v1255 = vunpack.c.l.b16 %v959
        %v1256 = vunpack.c.l.b16 %v960
        %v1257 = vunpack.c.l.b16 %v961
        %v1258 = vunpack.c.l.b16 %v962
        %v1259 = vunpack.c.l.b16 %v963
        %v1260 = vunpack.c.l.b16 %v964
        %v1261 = vunpack.c.l.b16 %v965
        %v1262 = vunpack.c.l.b16 %v966
        %v1263 = vunpack.c.l.b16 %v967
        %v1264 = vunpack.c.l.b16 %v968
        %v1265 = vpack.c.b16 %v1250, %v1249
        %v1266 = vpack.c.b16 %v1252, %v1251
        %v1267 = vpack.c.b16 %v1254, %v1253
        %v1268 = vpack.c.b16 %v1256, %v1255
        %v1269 = vpack.c.b16 %v1258, %v1257
        %v1270 = vpack.c.b16 %v1260, %v1259
        %v1271 = vpack.c.b16 %v1262, %v1261
        %v1272 = vpack.c.b16 %v1264, %v1263
        %1281 = vmatprep.subr.bf16.mxu0 0
        %1282 = vmatpush1.bf16.msra.mxu0 %v1272
        %1283 = vmatprep.subr.bf16.mxu0 0
        %1284 = vmatpush1.bf16.msra.mxu0 %v1271
        %1285 = vmatprep.subr.bf16.mxu0 0
        %1286 = vmatpush1.bf16.msra.mxu0 %v1270
        %1287 = vmatprep.subr.bf16.mxu0 0
        %1288 = vmatpush1.bf16.msra.mxu0 %v1269
        %1289 = vmatprep.subr.bf16.mxu0 0
        %1290 = vmatpush1.bf16.msra.mxu0 %v1268
        %1291 = vmatprep.subr.bf16.mxu0 0
        %1292 = vmatpush1.bf16.msra.mxu0 %v1267
        %1293 = vmatprep.subr.bf16.mxu0 0
        %1294 = vmatpush1.bf16.msra.mxu0 %v1266
        %1295 = vmatprep.subr.bf16.mxu0 0
        %1296 = vmatpush1.bf16.msra.mxu0 %v1265
        %1297 = vmatprep.subr.bf16.mxu0 0
        %1298 = vmatpush2.bf16.msra.mxu0 0
        %1299 = vmatprep.subr.bf16.mxu0 0
        %1300 = vmatpush2.bf16.msra.mxu0 0
        %1301 = vmatprep.subr.bf16.mxu0 0
        %1302 = vmatpush2.bf16.msra.mxu0 0
        %1303 = vmatprep.subr.bf16.mxu0 0
        %1304 = vmatpush2.bf16.msra.mxu0 0
        %1305 = vmatprep.subr.bf16.mxu0 0
        %1306 = vmatpush2.bf16.msra.mxu0 0
        %1307 = vmatprep.subr.bf16.mxu0 0
        %1308 = vmatpush2.bf16.msra.mxu0 0
        %1309 = vmatprep.subr.bf16.mxu0 0
        %1310 = vmatpush2.bf16.msra.mxu0 0
        %1311 = vmatprep.subr.bf16.mxu0 0
        %1312 = vmatpush2.bf16.msra.mxu0 0
        %1313 = vmatprep.mubr.bf16.mxu0 0
        %1314 = vmatmul.mubr.bf16.gmra.mxu0 %v904
        %v1315 = vpop.f32.mrf.mxu0
        %v1316 = vadd.f32 0.0, %v1315
        %v1317 = vpop.f32.mrf.mxu0
        %v1318 = vpop.f32.mrf.mxu0
        %v1319 = vpop.f32.mrf.mxu0
        %1320 = vdwg.mxu0
        %v1321 = vpack.c.bf16 %v1052, %v1052
        %v1322 = vpack.c.bf16 %v1140, %v1140
        %v1323 = vpack.c.bf16 %v1228, %v1228
        %v1324 = vpack.c.bf16 %v1316, %v1316
        %v1325 = vld [vmem:[%s4] sm:$0xf]
        %v1326 = vld [vmem:[%s4 + $0x4] sm:$0xf]
        %v1327 = vld [vmem:[%s4 + $0x8] sm:$0xf]
        %v1328 = vld [vmem:[%s4 + $0xc] sm:$0xf]
        %v1330 = vsel %vm471, %v1321, 0
        %vm1332 = vcmask 1043456
        %v1334 = vsel %vm1332, %v1325, 0
        %1336 = vmatprep.subr.bf16.mxu0 0
        %1337 = vmatpush1.bf16.msra.mxu0 0
        %1338 = vmatprep.subr.bf16.mxu0 0
        %1339 = vmatpush1.bf16.msra.mxu0 0
        %1340 = vmatprep.subr.bf16.mxu0 0
        %1341 = vmatpush1.bf16.msra.mxu0 0
        %1342 = vmatprep.subr.bf16.mxu0 0
        %1343 = vmatpush1.bf16.msra.mxu0 0
        %1344 = vmatprep.subr.bf16.mxu0 0
        %1345 = vmatpush1.bf16.msra.mxu0 0
        %1346 = vmatprep.subr.bf16.mxu0 0
        %1347 = vmatpush1.bf16.msra.mxu0 0
        %1348 = vmatprep.subr.bf16.mxu0 0
        %1349 = vmatpush1.bf16.msra.mxu0 0
        %1350 = vmatprep.subr.bf16.mxu0 0
        %1351 = vmatpush1.bf16.msra.mxu0 %v1334
        %1352 = vmatprep.subr.bf16.mxu0 0
        %1353 = vmatpush2.bf16.msra.mxu0 0
        %1354 = vmatprep.subr.bf16.mxu0 0
        %1355 = vmatpush2.bf16.msra.mxu0 0
        %1356 = vmatprep.subr.bf16.mxu0 0
        %1357 = vmatpush2.bf16.msra.mxu0 0
        %1358 = vmatprep.subr.bf16.mxu0 0
        %1359 = vmatpush2.bf16.msra.mxu0 0
        %1360 = vmatprep.subr.bf16.mxu0 0
        %1361 = vmatpush2.bf16.msra.mxu0 0
        %1362 = vmatprep.subr.bf16.mxu0 0
        %1363 = vmatpush2.bf16.msra.mxu0 0
        %1364 = vmatprep.subr.bf16.mxu0 0
        %1365 = vmatpush2.bf16.msra.mxu0 0
        %1366 = vmatprep.subr.bf16.mxu0 0
        %1367 = vmatpush2.bf16.msra.mxu0 0
        %1368 = vmatprep.mubr.bf16.mxu0 0
        %1369 = vmatmul.mubr.bf16.gmra.mxu0 %v1330
        %v1370 = vpop.f32.mrf.mxu0
        %v1371 = vadd.f32 0.0, %v1370
        %v1372 = vpop.f32.mrf.mxu0
        %v1373 = vpop.f32.mrf.mxu0
        %v1374 = vpop.f32.mrf.mxu0
        %1375 = vdwg.mxu0
        %v1377 = vsel %vm471, %v1322, 0
        %v1380 = vsel %vm1332, %v1326, 0
        %1382 = vmatprep.subr.bf16.mxu0 0
        %1383 = vmatpush1.bf16.msra.mxu0 0
        %1384 = vmatprep.subr.bf16.mxu0 0
        %1385 = vmatpush1.bf16.msra.mxu0 0
        %1386 = vmatprep.subr.bf16.mxu0 0
        %1387 = vmatpush1.bf16.msra.mxu0 0
        %1388 = vmatprep.subr.bf16.mxu0 0
        %1389 = vmatpush1.bf16.msra.mxu0 0
        %1390 = vmatprep.subr.bf16.mxu0 0
        %1391 = vmatpush1.bf16.msra.mxu0 0
        %1392 = vmatprep.subr.bf16.mxu0 0
        %1393 = vmatpush1.bf16.msra.mxu0 0
        %1394 = vmatprep.subr.bf16.mxu0 0
        %1395 = vmatpush1.bf16.msra.mxu0 0
        %1396 = vmatprep.subr.bf16.mxu0 0
        %1397 = vmatpush1.bf16.msra.mxu0 %v1380
        %1398 = vmatprep.subr.bf16.mxu0 0
        %1399 = vmatpush2.bf16.msra.mxu0 0
        %1400 = vmatprep.subr.bf16.mxu0 0
        %1401 = vmatpush2.bf16.msra.mxu0 0
        %1402 = vmatprep.subr.bf16.mxu0 0
        %1403 = vmatpush2.bf16.msra.mxu0 0
        %1404 = vmatprep.subr.bf16.mxu0 0
        %1405 = vmatpush2.bf16.msra.mxu0 0
        %1406 = vmatprep.subr.bf16.mxu0 0
        %1407 = vmatpush2.bf16.msra.mxu0 0
        %1408 = vmatprep.subr.bf16.mxu0 0
        %1409 = vmatpush2.bf16.msra.mxu0 0
        %1410 = vmatprep.subr.bf16.mxu0 0
        %1411 = vmatpush2.bf16.msra.mxu0 0
        %1412 = vmatprep.subr.bf16.mxu0 0
        %1413 = vmatpush2.bf16.msra.mxu0 0
        %1414 = vmatprep.mubr.bf16.mxu0 0
        %1415 = vmatmul.mubr.bf16.gmra.mxu0 %v1377
        %v1416 = vpop.f32.mrf.mxu0
        %v1417 = vadd.f32 0.0, %v1416
        %v1418 = vpop.f32.mrf.mxu0
        %v1419 = vpop.f32.mrf.mxu0
        %v1420 = vpop.f32.mrf.mxu0
        %1421 = vdwg.mxu0
        %v1423 = vsel %vm471, %v1323, 0
        %v1426 = vsel %vm1332, %v1327, 0
        %1428 = vmatprep.subr.bf16.mxu0 0
        %1429 = vmatpush1.bf16.msra.mxu0 0
        %1430 = vmatprep.subr.bf16.mxu0 0
        %1431 = vmatpush1.bf16.msra.mxu0 0
        %1432 = vmatprep.subr.bf16.mxu0 0
        %1433 = vmatpush1.bf16.msra.mxu0 0
        %1434 = vmatprep.subr.bf16.mxu0 0
        %1435 = vmatpush1.bf16.msra.mxu0 0
        %1436 = vmatprep.subr.bf16.mxu0 0
        %1437 = vmatpush1.bf16.msra.mxu0 0
        %1438 = vmatprep.subr.bf16.mxu0 0
        %1439 = vmatpush1.bf16.msra.mxu0 0
        %1440 = vmatprep.subr.bf16.mxu0 0
        %1441 = vmatpush1.bf16.msra.mxu0 0
        %1442 = vmatprep.subr.bf16.mxu0 0
        %1443 = vmatpush1.bf16.msra.mxu0 %v1426
        %1444 = vmatprep.subr.bf16.mxu0 0
        %1445 = vmatpush2.bf16.msra.mxu0 0
        %1446 = vmatprep.subr.bf16.mxu0 0
        %1447 = vmatpush2.bf16.msra.mxu0 0
        %1448 = vmatprep.subr.bf16.mxu0 0
        %1449 = vmatpush2.bf16.msra.mxu0 0
        %1450 = vmatprep.subr.bf16.mxu0 0
        %1451 = vmatpush2.bf16.msra.mxu0 0
        %1452 = vmatprep.subr.bf16.mxu0 0
        %1453 = vmatpush2.bf16.msra.mxu0 0
        %1454 = vmatprep.subr.bf16.mxu0 0
        %1455 = vmatpush2.bf16.msra.mxu0 0
        %1456 = vmatprep.subr.bf16.mxu0 0
        %1457 = vmatpush2.bf16.msra.mxu0 0
        %1458 = vmatprep.subr.bf16.mxu0 0
        %1459 = vmatpush2.bf16.msra.mxu0 0
        %1460 = vmatprep.mubr.bf16.mxu0 0
        %1461 = vmatmul.mubr.bf16.gmra.mxu0 %v1423
        %v1462 = vpop.f32.mrf.mxu0
        %v1463 = vadd.f32 0.0, %v1462
        %v1464 = vpop.f32.mrf.mxu0
        %v1465 = vpop.f32.mrf.mxu0
        %v1466 = vpop.f32.mrf.mxu0
        %1467 = vdwg.mxu0
        %v1469 = vsel %vm471, %v1324, 0
        %v1472 = vsel %vm1332, %v1328, 0
        %1474 = vmatprep.subr.bf16.mxu0 0
        %1475 = vmatpush1.bf16.msra.mxu0 0
        %1476 = vmatprep.subr.bf16.mxu0 0
        %1477 = vmatpush1.bf16.msra.mxu0 0
        %1478 = vmatprep.subr.bf16.mxu0 0
        %1479 = vmatpush1.bf16.msra.mxu0 0
        %1480 = vmatprep.subr.bf16.mxu0 0
        %1481 = vmatpush1.bf16.msra.mxu0 0
        %1482 = vmatprep.subr.bf16.mxu0 0
        %1483 = vmatpush1.bf16.msra.mxu0 0
        %1484 = vmatprep.subr.bf16.mxu0 0
        %1485 = vmatpush1.bf16.msra.mxu0 0
        %1486 = vmatprep.subr.bf16.mxu0 0
        %1487 = vmatpush1.bf16.msra.mxu0 0
        %1488 = vmatprep.subr.bf16.mxu0 0
        %1489 = vmatpush1.bf16.msra.mxu0 %v1472
        %1490 = vmatprep.subr.bf16.mxu0 0
        %1491 = vmatpush2.bf16.msra.mxu0 0
        %1492 = vmatprep.subr.bf16.mxu0 0
        %1493 = vmatpush2.bf16.msra.mxu0 0
        %1494 = vmatprep.subr.bf16.mxu0 0
        %1495 = vmatpush2.bf16.msra.mxu0 0
        %1496 = vmatprep.subr.bf16.mxu0 0
        %1497 = vmatpush2.bf16.msra.mxu0 0
        %1498 = vmatprep.subr.bf16.mxu0 0
        %1499 = vmatpush2.bf16.msra.mxu0 0
        %1500 = vmatprep.subr.bf16.mxu0 0
        %1501 = vmatpush2.bf16.msra.mxu0 0
        %1502 = vmatprep.subr.bf16.mxu0 0
        %1503 = vmatpush2.bf16.msra.mxu0 0
        %1504 = vmatprep.subr.bf16.mxu0 0
        %1505 = vmatpush2.bf16.msra.mxu0 0
        %1506 = vmatprep.mubr.bf16.mxu0 0
        %1507 = vmatmul.mubr.bf16.gmra.mxu0 %v1469
        %v1508 = vpop.f32.mrf.mxu0
        %v1509 = vadd.f32 0.0, %v1508
        %v1510 = vpop.f32.mrf.mxu0
        %v1511 = vpop.f32.mrf.mxu0
        %v1512 = vpop.f32.mrf.mxu0
        %1513 = vdwg.mxu0
        %vm1514 = vcmask 261120
        %v1515 = vsel %vm1514, %v1371, 0.0
        %v1516 = vsel %vm1514, %v1417, 0.0
        %v1517 = vadd.f32 %v1515, %v1516
        %v1518 = vsel %vm1514, %v1463, 0.0
        %v1519 = vadd.f32 %v1517, %v1518
        %v1520 = vsel %vm1514, %v1509, 0.0
        %v1521 = vadd.f32 %v1519, %v1520
        %v1522 = vld [vmem:[%s5] sm:$0x1]
        %v1524 = vlaneseq
        %v1525 = vshrl.u32 %v1524, 7
        %v1526 = vsub.s32 0, %v1525
        %v1527 = vrot.slane %v1522, %v1526
        %v1529 = vadd.f32 %v1521, %v1527
        %1530 = vst.msk [vmem:[%s329] sm:$0xff] %vm1514, %v1529
        %s1531 = sand.u32 %s190, 1
        %s1532 = scalar_lea.sflag [#allocation3], %s1531
        %s1533 = sand.u32 %s190, 1
        %s1534 = smul.addr %s1533, 8
        %s1535 = scalar_lea.vmem [#allocation2], %s1534
        %s1536 = sand.u32 %s218, 1
        %s1537 = scalar_lea.sflag [#allocation5], %s1536
        %s1538 = sand.u32 %s218, 1
        %s1539 = smul.addr %s1538, 8
        %s1540 = scalar_lea.vmem [#allocation4], %s1539
        // Predicated region
        $region45: #{tpu_custom_call.1} parent=43 // pred_check
          %p1541 = pneg %p200
        $region46: #{tpu_custom_call.1} parent=43 // pred_check_branch
          %1543 = sbr.rel (%p1541) target = $region48
        $region47: #{tpu_custom_call.1} parent=43 // pred_region
          %s1545 = ssub.s32 128, 128
          %1546 = vsyncadd %s1532, %s1545
          %s1547 = sadd.s32 %s30, %s29
          %s1548 = smul.addr %s1547, 128
          %s1549 = scalar_lea.hbm %s6, %s1548
          %s1551 = sshll.u32 %s1535, 4
          %s1552 = int_to_ptr.vmem [resolvable:$true] %s1551
          %1554 = dma.vmem_to_hbm [thread:$0]  %s1552, 128, %s1549, %s1532
        $region48: #{tpu_custom_call.1} parent=43 // pred_fallthru
          _
        // Predicated region
        $region49: #{tpu_custom_call.1} parent=43 // pred_check
          %p1555 = pneg %p228
        $region50: #{tpu_custom_call.1} parent=43 // pred_check_branch
          %1557 = sbr.rel (%p1555) target = $region52
        $region51: #{tpu_custom_call.1} parent=43 // pred_region
          %s1559 = ssub.s32 128, 128
          %1560 = vsyncadd %s1537, %s1559
          %s1561 = sadd.s32 %s30, %s29
          %s1562 = smul.addr %s1561, 128
          %s1563 = scalar_lea.hbm %s7, %s1562
          %s1565 = sshll.u32 %s1540, 4
          %s1566 = int_to_ptr.vmem [resolvable:$true] %s1565
          %1568 = dma.vmem_to_hbm [thread:$0]  %s1566, 128, %s1563, %s1537
        $region52: #{tpu_custom_call.1} parent=43 // pred_fallthru
          _
      $region44: #{tpu_custom_call.1} parent=5 // pred_fallthru
        _
      %p1569 = scmp.le.s32.totalorder 2, %s20
      // Predicated region
      $region53: #{tpu_custom_call.1} parent=5 // pred_check
        %p1570 = pneg %p1569
      $region54: #{tpu_custom_call.1} parent=5 // pred_check_branch
        %1572 = sbr.rel (%p1570) target = $region56
      $region55: #{tpu_custom_call.1} parent=5 // pred_region
        %s1573 = ssub.s32 %s20, 2
        // Predicated region
        $region57: #{tpu_custom_call.1} parent=55 // pred_check
          %p1574 = pneg %p206
        $region58: #{tpu_custom_call.1} parent=55 // pred_check_branch
          %1576 = sbr.rel (%p1574) target = $region60
        $region59: #{tpu_custom_call.1} parent=55 // pred_region
          %s1577 = sand.u32 %s191, 1
          %s1578 = scalar_lea.sflag [#allocation3], %s1577
          %s1579 = sand.u32 %s191, 1
          %s1580 = smul.addr %s1579, 8
          %s1581 = scalar_lea.vmem [#allocation2], %s1580
          %1582 = dma.done %s1578, 128
        $region60: #{tpu_custom_call.1} parent=55 // pred_fallthru
          _
        // Predicated region
        $region61: #{tpu_custom_call.1} parent=55 // pred_check
          %p1583 = pneg %p234
        $region62: #{tpu_custom_call.1} parent=55 // pred_check_branch
          %1585 = sbr.rel (%p1583) target = $region64
        $region63: #{tpu_custom_call.1} parent=55 // pred_region
          %s1586 = sand.u32 %s219, 1
          %s1587 = scalar_lea.sflag [#allocation5], %s1586
          %s1588 = sand.u32 %s219, 1
          %s1589 = smul.addr %s1588, 8
          %s1590 = scalar_lea.vmem [#allocation4], %s1589
          %1591 = dma.done %s1587, 128
        $region64: #{tpu_custom_call.1} parent=55 // pred_fallthru
          _
      $region56: #{tpu_custom_call.1} parent=5 // pred_fallthru
        _
    $region6: #{tpu_custom_call.1} parent=1 // loop_footer
      %s24 = sadd.s32 1, %s20
    $region7: #{tpu_custom_call.1} parent=1 // loop_footer_branch
      %19 = sbr.rel target = $region3
    $region8: #{tpu_custom_call.1} parent=1 // loop_exit
      _
    %1592 = vsyncpa [#allocation3], 1
    %s1593 = scalar_lea.sflag [#allocation3], 1
    %1594 = vsyncpa %s1593, 1
    %1595 = vsyncpa [#allocation5], 1
    %s1596 = scalar_lea.sflag [#allocation5], 1
    %1597 = vsyncpa %s1596, 1

</llo_original>
